<compile_context>
chip_gen: v6e
topology: v6e:2x2x1
jax: 0.10.0
libtpu: 0.0.40
codegen_flags: <defaults>
</compile_context>

<pallas_src>
import jax
import jax.numpy as jnp
from jax.experimental import pallas as pl
from jax.experimental.pallas import tpu as pltpu


def _round_up(v, m):
    return -(-v // m) * m


# ----------------------------------------------------------------------------
# One GatedGraphConv layer:  h_new = GRUCell( (A @ h) @ W_l , h )
# Optionally fused with the head:  out = Dropout(ReLU(h_new)) @ w_fc + b_fc
# ----------------------------------------------------------------------------
def _make_layer_kernel(fuse_head: bool, inv_keep: float):
    inv_keep = float(inv_keep)

    def kernel(a_ref, h_ref, w_ref, wih_ref, whh_ref, bih_ref, bhh_ref, *rest):
        if fuse_head:
            mask_ref, wfc_ref, bfc_ref, out_ref = rest
        else:
            (out_ref,) = rest

        i = pl.program_id(0)
        tn = out_ref.shape[0]
        hdim = h_ref.shape[1]

        # Aggregation over ALL source nodes in one MXU pass; h is fully
        # VMEM-resident (constant-index BlockSpec), A comes in as a row stripe.
        #   agg = A[i-tile, :] @ h                    (bf16 MXU, f32 accumulate)
        agg = jnp.dot(a_ref[...], h_ref[...], preferred_element_type=jnp.float32)

        # Associativity trick: A @ (h @ W_l) == (A @ h) @ W_l, so the per-layer
        # linear is applied once per row tile.
        m = jnp.dot(agg.astype(jnp.bfloat16), w_ref[...],
                    preferred_element_type=jnp.float32)

        # Previous hidden state for this row tile, sliced out of the resident h
        # (avoids a second per-tile HBM stream of h).
        h_prev = h_ref[pl.ds(i * tn, tn), :]                      # bf16 (tn, H)

        # GRUCell, PyTorch gate ordering (r, z, n).  hdim is lane-aligned, so
        # the gate slices land on vreg lane boundaries.
        gi = jnp.dot(m.astype(jnp.bfloat16), wih_ref[...],
                     preferred_element_type=jnp.float32) + bih_ref[...]
        gh = jnp.dot(h_prev, whh_ref[...],
                     preferred_element_type=jnp.float32) + bhh_ref[...]
        r = jax.nn.sigmoid(gi[:, 0:hdim] + gh[:, 0:hdim])
        z = jax.nn.sigmoid(gi[:, hdim:2 * hdim] + gh[:, hdim:2 * hdim])
        c = jnp.tanh(gi[:, 2 * hdim:] + r * gh[:, 2 * hdim:])
        h_new = (1.0 - z) * c + z * h_prev.astype(jnp.float32)

        if fuse_head:
            # ReLU -> inverted dropout (precomputed {0,1} keep mask, f32 rescale)
            # -> Linear(H, 1) as a VPU multiply + lane reduction (an (H,1) MXU
            # matmul would use 1/128 of the MXU width).
            y = jnp.maximum(h_new, 0.0)
            y = y * mask_ref[...].astype(jnp.float32) * inv_keep
            out_ref[...] = (jnp.sum(y * wfc_ref[...], axis=-1, keepdims=True)
                            + bfc_ref[...])
        else:
            out_ref[...] = h_new.astype(out_ref.dtype)            # bf16 carry

    return kernel


def gated_graph_layer(a, h, w_l, w_ih, w_hh, b_ih, b_hh, *, tn=256, head=None):
    """One GRU layer.  If `head` is given, fuse ReLU->dropout->Linear(H,1)."""
    n_pad, hdim = h.shape
    assert n_pad % tn == 0 and hdim % 128 == 0

    fuse = head is not None
    if fuse:
        keep_mask, w_fc, b_fc, drop_p = head
        assert 0.0 <= float(drop_p) < 1.0
        inv_keep = 1.0 / (1.0 - float(drop_p))
    else:
        inv_keep = 1.0

    in_specs = [
        pl.BlockSpec((tn, n_pad), lambda i: (i, 0)),           # A row stripe (bf16)
        pl.BlockSpec((n_pad, hdim), lambda i: (0, 0)),         # h, VMEM-resident (bf16)
        pl.BlockSpec((hdim, hdim), lambda i: (0, 0)),          # W_l   (bf16, resident)
        pl.BlockSpec((hdim, 3 * hdim), lambda i: (0, 0)),      # W_ih  (bf16, resident)
        pl.BlockSpec((hdim, 3 * hdim), lambda i: (0, 0)),      # W_hh  (bf16, resident)
        pl.BlockSpec((1, 3 * hdim), lambda i: (0, 0)),         # b_ih  (f32)
        pl.BlockSpec((1, 3 * hdim), lambda i: (0, 0)),         # b_hh  (f32)
    ]
    args = [a, h, w_l, w_ih, w_hh, b_ih, b_hh]

    if fuse:
        in_specs += [
            pl.BlockSpec((tn, hdim), lambda i: (i, 0)),        # dropout keep mask (bf16)
            pl.BlockSpec((1, hdim), lambda i: (0, 0)),         # w_fc as a row vector
            pl.BlockSpec((1, 1), lambda i: (0, 0)),            # b_fc
        ]
        args += [keep_mask, w_fc, b_fc]
        out_shape = jax.ShapeDtypeStruct((n_pad, 1), jnp.float32)
        out_spec = pl.BlockSpec((tn, 1), lambda i: (i, 0))
    else:
        out_shape = jax.ShapeDtypeStruct((n_pad, hdim), jnp.bfloat16)
        out_spec = pl.BlockSpec((tn, hdim), lambda i: (i, 0))

    return pl.pallas_call(
        _make_layer_kernel(fuse, inv_keep),
        out_shape=out_shape,
        grid_spec=pltpu.PrefetchScalarGridSpec(
            num_scalar_prefetch=0,
            grid=(n_pad // tn,),
            in_specs=in_specs,
            out_specs=out_spec,
        ),
        compiler_params=pltpu.CompilerParams(
            dimension_semantics=("parallel",),          # shards row tiles on v7x's 2 TCs
            vmem_limit_bytes=64 * 1024 * 1024,          # above the 16/32 MiB default scope
        ),
    )(*args)


# ----------------------------------------------------------------------------
# Host-side glue: padding, dtype casts, adjacency, layer loop
# ----------------------------------------------------------------------------
def _prepare_params(params, hidden, hdim):
    """Zero-pad the hidden dim to `hdim` (lane-aligned) and cast MXU weights to bf16."""
    num_layers = params["w_layers"].shape[0]
    w_layers = (jnp.zeros((num_layers, hdim, hdim), jnp.float32)
                .at[:, :hidden, :hidden].set(params["w_layers"])).astype(jnp.bfloat16)

    def pad_gate_cols(w):                     # (rows, 3*hidden) -> (rows, 3*hdim)
        rows = w.shape[0]
        w3 = w.reshape(rows, 3, hidden)
        return (jnp.zeros((rows, 3, hdim), jnp.float32)
                .at[:, :, :hidden].set(w3)).reshape(rows, 3 * hdim)

    def pad_rows(w):                          # (hidden, C) -> (hdim, C)
        return jnp.zeros((hdim,) + w.shape[1:], w.dtype).at[:hidden].set(w)

    w_ih = pad_rows(pad_gate_cols(params["w_ih"])).astype(jnp.bfloat16)
    w_hh = pad_rows(pad_gate_cols(params["w_hh"])).astype(jnp.bfloat16)
    b_ih = pad_gate_cols(params["b_ih"])                       # f32 (1, 3*hdim)
    b_hh = pad_gate_cols(params["b_hh"])
    # fc weight as a (1, hdim) row vector for the in-kernel VPU reduction.
    w_fc = jnp.zeros((1, hdim), jnp.float32).at[0, :hidden].set(params["w_fc"][:, 0])
    b_fc = params["b_fc"].astype(jnp.float32)                  # (1, 1)
    return w_layers, w_ih, w_hh, b_ih, b_hh, w_fc, b_fc


def build_adjacency(edge_index, edge_weight, num_nodes, n_pad):
    # A[dst, src] = sum of edge_weight over edges (src -> dst)   (aggr='add')
    a = jnp.zeros((n_pad, n_pad), jnp.float32)
    a = a.at[edge_index[1], edge_index[0]].add(edge_weight)
    return a.astype(jnp.bfloat16)            # halves the A HBM stream; validated ok for GNN weights


def ggnn_forward(x, edge_index, edge_weight, params, prob, dropout_key, *, tn=256):
    n, f = x.shape
    hidden = params["w_ih"].shape[0]
    assert f <= hidden, "input feature dim must be <= out_channels"
    assert 0.0 <= float(prob) < 1.0

    hdim = _round_up(hidden, 128)             # 1000 -> 1024 in the real module
    n_pad = _round_up(n, tn)

    w_layers, w_ih, w_hh, b_ih, b_hh, w_fc, b_fc = _prepare_params(params, hidden, hdim)

    # GatedGraphConv zero-pads features up to out_channels; also pad rows to the
    # grid.  h is carried between layers in bf16.  (Padded rows pick up nonzero
    # GRU state from the biases, but padded A columns are zero and the output is
    # sliced back to [:n], so they never contaminate real rows.)
    h = (jnp.zeros((n_pad, hdim), jnp.float32).at[:n, :f].set(x)).astype(jnp.bfloat16)
    a = build_adjacency(edge_index, edge_weight, n, n_pad)

    # Inverted-dropout keep mask (F.dropout training-mode semantics), host-side.
    keep_p = 1.0 - float(prob)
    keep_mask = (jax.random.uniform(dropout_key, (n_pad, hdim)) < keep_p
                 ).astype(jnp.bfloat16)

    num_layers = w_layers.shape[0]
    for i in range(num_layers - 1):
        h = gated_graph_layer(a, h, w_layers[i], w_ih, w_hh, b_ih, b_hh, tn=tn)
    out = gated_graph_layer(a, h, w_layers[num_layers - 1], w_ih, w_hh, b_ih, b_hh,
                            tn=tn, head=(keep_mask, w_fc, b_fc, float(prob)))
    return out[:n]


def init_params(key, hidden, num_layers):
    ks = jax.random.split(key, 7)
    s = 0.1
    return {
        # gconv1: per-layer linear weights (x @ W[i]), shared GRUCell (gates r,z,n)
        "w_layers": s * jax.random.normal(ks[0], (num_layers, hidden, hidden), jnp.float32),
        "w_ih": s * jax.random.normal(ks[1], (hidden, 3 * hidden), jnp.float32),
        "w_hh": s * jax.random.normal(ks[2], (hidden, 3 * hidden), jnp.float32),
        "b_ih": s * jax.random.normal(ks[3], (1, 3 * hidden), jnp.float32),
        "b_hh": s * jax.random.normal(ks[4], (1, 3 * hidden), jnp.float32),
        # fully_con1: Linear(hidden, 1)
        "w_fc": s * jax.random.normal(ks[5], (hidden, 1), jnp.float32),
        "b_fc": s * jax.random.normal(ks[6], (1, 1), jnp.float32),
    }


if __name__ == "__main__":
    key = jax.random.PRNGKey(0)
    k_x, k_e, k_p, k_d = jax.random.split(key, 4)

    # Small stand-in shapes (real module hard-codes out_channels=1000, which the
    # wrapper would pad to 1024).  HIDDEN=120 exercises the lane-padding path.
    NUM_NODES = 512
    NUM_FEATURES = 16
    HIDDEN = 120
    NUM_LAYERS = 3
    NUM_EDGES = 2048
    DROP_P = 0.1
    TN = 256          # multiple of 256 for v6e/v7x MXU; keeps >=2 row tiles here

    x = jax.random.normal(k_x, (NUM_NODES, NUM_FEATURES), jnp.float32)

    ke1, ke2, ke3 = jax.random.split(k_e, 3)
    src = jax.random.randint(ke1, (NUM_EDGES,), 0, NUM_NODES)
    dst = jax.random.randint(ke2, (NUM_EDGES,), 0, NUM_NODES)
    edge_index = jnp.stack([src, dst])
    edge_weight = jax.random.uniform(ke3, (NUM_EDGES,), jnp.float32, 0.1, 1.0)

    params = init_params(k_p, HIDDEN, NUM_LAYERS)

    out = ggnn_forward(x, edge_index, edge_weight, params, DROP_P, k_d, tn=TN)
    out = jax.block_until_ready(out)

    assert out.shape == (NUM_NODES, 1)
    assert bool(jnp.all(jnp.isfinite(out)))
    print("KERNEL_OK")
</pallas_src>

<mosaic_0001>
module attributes {stable_mosaic.version = 11 : i64} {
  func.func @kernel(%arg0: i32, %arg1: memref<256x512xbf16, #tpu.memory_space<vmem>>, %arg2: memref<512x128xbf16, #tpu.memory_space<vmem>>, %arg3: memref<128x128xbf16, #tpu.memory_space<vmem>>, %arg4: memref<128x384xbf16, #tpu.memory_space<vmem>>, %arg5: memref<128x384xbf16, #tpu.memory_space<vmem>>, %arg6: memref<1x384xf32, #tpu.memory_space<vmem>>, %arg7: memref<1x384xf32, #tpu.memory_space<vmem>>, %arg8: memref<256x128xbf16, #tpu.memory_space<vmem>>) attributes {dimension_semantics = [#tpu.dimension_semantics<parallel>], iteration_bounds = array<i64: 2>, scalar_prefetch = 0 : i64, scratch_operands = 0 : i64, tpu.core_type = #tpu.core_type<tc>, window_params = [{transform_indices = @transform_0, window_bounds = array<i64: 256, 512>}, {pipeline_mode = #tpu.pipeline_mode<synchronous>, transform_indices = @transform_1, window_bounds = array<i64: 512, 128>}, {pipeline_mode = #tpu.pipeline_mode<synchronous>, transform_indices = @transform_2, window_bounds = array<i64: 128, 128>}, {pipeline_mode = #tpu.pipeline_mode<synchronous>, transform_indices = @transform_3, window_bounds = array<i64: 128, 384>}, {pipeline_mode = #tpu.pipeline_mode<synchronous>, transform_indices = @transform_4, window_bounds = array<i64: 128, 384>}, {pipeline_mode = #tpu.pipeline_mode<synchronous>, transform_indices = @transform_5, window_bounds = array<i64: 1, 384>}, {pipeline_mode = #tpu.pipeline_mode<synchronous>, transform_indices = @transform_6, window_bounds = array<i64: 1, 384>}, {transform_indices = @transform_7, window_bounds = array<i64: 256, 128>}]} {
    %c0 = arith.constant 0 : index
    %c0_0 = arith.constant 0 : index
    %0 = vector.load %arg1[%c0, %c0_0] : memref<256x512xbf16, #tpu.memory_space<vmem>>, vector<256x512xbf16>
    %c0_1 = arith.constant 0 : index
    %c0_2 = arith.constant 0 : index
    %1 = vector.load %arg2[%c0_1, %c0_2] : memref<512x128xbf16, #tpu.memory_space<vmem>>, vector<512x128xbf16>
    %cst = arith.constant dense<0.000000e+00> : vector<256x128xf32>
    %2 = tpu.matmul %0, %1, %cst {dimension_numbers = #tpu.dot_dimension_numbers<[1], [0], [0], [1], [0, 0, 1, 1], [], []>} : vector<256x512xbf16>, vector<512x128xbf16>, vector<256x128xf32> -> vector<256x128xf32>
    %3 = arith.truncf %2 : vector<256x128xf32> to vector<256x128xbf16>
    %c0_3 = arith.constant 0 : index
    %c0_4 = arith.constant 0 : index
    %4 = vector.load %arg3[%c0_3, %c0_4] : memref<128x128xbf16, #tpu.memory_space<vmem>>, vector<128x128xbf16>
    %cst_5 = arith.constant dense<0.000000e+00> : vector<256x128xf32>
    %5 = tpu.matmul %3, %4, %cst_5 {dimension_numbers = #tpu.dot_dimension_numbers<[1], [0], [0], [1], [0, 0, 1, 1], [], []>} : vector<256x128xbf16>, vector<128x128xbf16>, vector<256x128xf32> -> vector<256x128xf32>
    %c256_i32 = arith.constant 256 : i32
    %6 = arith.muli %arg0, %c256_i32 : i32
    %7 = arith.index_cast %6 : i32 to index
    %c0_6 = arith.constant 0 : index
    %8 = vector.load %arg2[%7, %c0_6] : memref<512x128xbf16, #tpu.memory_space<vmem>>, vector<256x128xbf16>
    %9 = arith.truncf %5 : vector<256x128xf32> to vector<256x128xbf16>
    %c0_7 = arith.constant 0 : index
    %c0_8 = arith.constant 0 : index
    %10 = vector.load %arg4[%c0_7, %c0_8] : memref<128x384xbf16, #tpu.memory_space<vmem>>, vector<128x384xbf16>
    %cst_9 = arith.constant dense<0.000000e+00> : vector<256x384xf32>
    %11 = tpu.matmul %9, %10, %cst_9 {dimension_numbers = #tpu.dot_dimension_numbers<[1], [0], [0], [1], [0, 0, 1, 1], [], []>} : vector<256x128xbf16>, vector<128x384xbf16>, vector<256x384xf32> -> vector<256x384xf32>
    %c0_10 = arith.constant 0 : index
    %c0_11 = arith.constant 0 : index
    %12 = vector.load %arg6[%c0_10, %c0_11] : memref<1x384xf32, #tpu.memory_space<vmem>>, vector<1x384xf32>
    %13 = vector.broadcast %12 : vector<1x384xf32> to vector<256x384xf32>
    %14 = arith.addf %11, %13 : vector<256x384xf32>
    %c0_12 = arith.constant 0 : index
    %c0_13 = arith.constant 0 : index
    %15 = vector.load %arg5[%c0_12, %c0_13] : memref<128x384xbf16, #tpu.memory_space<vmem>>, vector<128x384xbf16>
    %cst_14 = arith.constant dense<0.000000e+00> : vector<256x384xf32>
    %16 = tpu.matmul %8, %15, %cst_14 {dimension_numbers = #tpu.dot_dimension_numbers<[1], [0], [0], [1], [0, 0, 1, 1], [], []>} : vector<256x128xbf16>, vector<128x384xbf16>, vector<256x384xf32> -> vector<256x384xf32>
    %c0_15 = arith.constant 0 : index
    %c0_16 = arith.constant 0 : index
    %17 = vector.load %arg7[%c0_15, %c0_16] : memref<1x384xf32, #tpu.memory_space<vmem>>, vector<1x384xf32>
    %18 = vector.broadcast %17 : vector<1x384xf32> to vector<256x384xf32>
    %19 = arith.addf %16, %18 : vector<256x384xf32>
    %20 = vector.extract_strided_slice %14 {offsets = [0, 0], sizes = [256, 128], strides = [1, 1]} : vector<256x384xf32> to vector<256x128xf32>
    %21 = vector.extract_strided_slice %19 {offsets = [0, 0], sizes = [256, 128], strides = [1, 1]} : vector<256x384xf32> to vector<256x128xf32>
    %22 = arith.addf %20, %21 : vector<256x128xf32>
    %23 = arith.negf %22 : vector<256x128xf32>
    %24 = math.exp %23 : vector<256x128xf32>
    %cst_17 = arith.constant 1.000000e+00 : f32
    %25 = vector.broadcast %cst_17 : f32 to vector<256x128xf32>
    %26 = arith.addf %25, %24 : vector<256x128xf32>
    %27 = arith.divf %25, %26 : vector<256x128xf32>
    %28 = vector.extract_strided_slice %14 {offsets = [0, 128], sizes = [256, 128], strides = [1, 1]} : vector<256x384xf32> to vector<256x128xf32>
    %29 = vector.extract_strided_slice %19 {offsets = [0, 128], sizes = [256, 128], strides = [1, 1]} : vector<256x384xf32> to vector<256x128xf32>
    %30 = arith.addf %28, %29 : vector<256x128xf32>
    %31 = arith.negf %30 : vector<256x128xf32>
    %32 = math.exp %31 : vector<256x128xf32>
    %cst_18 = arith.constant 1.000000e+00 : f32
    %33 = vector.broadcast %cst_18 : f32 to vector<256x128xf32>
    %34 = arith.addf %33, %32 : vector<256x128xf32>
    %35 = arith.divf %33, %34 : vector<256x128xf32>
    %36 = vector.extract_strided_slice %14 {offsets = [0, 256], sizes = [256, 128], strides = [1, 1]} : vector<256x384xf32> to vector<256x128xf32>
    %37 = vector.extract_strided_slice %19 {offsets = [0, 256], sizes = [256, 128], strides = [1, 1]} : vector<256x384xf32> to vector<256x128xf32>
    %38 = arith.mulf %27, %37 : vector<256x128xf32>
    %39 = arith.addf %36, %38 : vector<256x128xf32>
    %40 = math.tanh %39 : vector<256x128xf32>
    %cst_19 = arith.constant 1.000000e+00 : f32
    %41 = vector.broadcast %cst_19 : f32 to vector<256x128xf32>
    %42 = arith.subf %41, %35 : vector<256x128xf32>
    %43 = arith.mulf %42, %40 : vector<256x128xf32>
    %44 = arith.extf %8 : vector<256x128xbf16> to vector<256x128xf32>
    %45 = arith.mulf %35, %44 : vector<256x128xf32>
    %46 = arith.addf %43, %45 : vector<256x128xf32>
    %47 = arith.truncf %46 : vector<256x128xf32> to vector<256x128xbf16>
    %c0_20 = arith.constant 0 : index
    %c0_21 = arith.constant 0 : index
    %48 = vector.load %arg8[%c0_20, %c0_21] : memref<256x128xbf16, #tpu.memory_space<vmem>>, vector<256x128xbf16>
    tpu.vector_store %arg8[%c0_20, %c0_21], %47 {strides = array<i32>} : memref<256x128xbf16, #tpu.memory_space<vmem>>, vector<256x128xbf16>,
    return
  }
  func.func @transform_0(%arg0: i32) -> (i32, i32) {
    %c0_i32 = arith.constant 0 : i32
    %c0_i32_0 = arith.constant 0 : i32
    return %arg0, %c0_i32 : i32, i32
  }
  func.func @transform_1(%arg0: i32) -> (i32, i32) {
    %c0_i32 = arith.constant 0 : i32
    %c0_i32_0 = arith.constant 0 : i32
    %c0_i32_1 = arith.constant 0 : i32
    return %c0_i32, %c0_i32_0 : i32, i32
  }
  func.func @transform_2(%arg0: i32) -> (i32, i32) {
    %c0_i32 = arith.constant 0 : i32
    %c0_i32_0 = arith.constant 0 : i32
    %c0_i32_1 = arith.constant 0 : i32
    return %c0_i32, %c0_i32_0 : i32, i32
  }
  func.func @transform_3(%arg0: i32) -> (i32, i32) {
    %c0_i32 = arith.constant 0 : i32
    %c0_i32_0 = arith.constant 0 : i32
    %c0_i32_1 = arith.constant 0 : i32
    return %c0_i32, %c0_i32_0 : i32, i32
  }
  func.func @transform_4(%arg0: i32) -> (i32, i32) {
    %c0_i32 = arith.constant 0 : i32
    %c0_i32_0 = arith.constant 0 : i32
    %c0_i32_1 = arith.constant 0 : i32
    return %c0_i32, %c0_i32_0 : i32, i32
  }
  func.func @transform_5(%arg0: i32) -> (i32, i32) {
    %c0_i32 = arith.constant 0 : i32
    %c0_i32_0 = arith.constant 0 : i32
    %c0_i32_1 = arith.constant 0 : i32
    return %c0_i32, %c0_i32_0 : i32, i32
  }
  func.func @transform_6(%arg0: i32) -> (i32, i32) {
    %c0_i32 = arith.constant 0 : i32
    %c0_i32_0 = arith.constant 0 : i32
    %c0_i32_1 = arith.constant 0 : i32
    return %c0_i32, %c0_i32_0 : i32, i32
  }
  func.func @transform_7(%arg0: i32) -> (i32, i32) {
    %c0_i32 = arith.constant 0 : i32
    %c0_i32_0 = arith.constant 0 : i32
    return %arg0, %c0_i32 : i32, i32
  }
}

</mosaic_0001>

<llo_original>
// kernel: tpu_custom_call.1
$region0: #{tpu_custom_call.1}
  #allocation0 [shape = 'u32[]', space=smem, size = 0x4, offset = 0x4, fixed_abs, tag = 'smem constant byte address 0x4 - core index']
  #allocation1 [shape = 'u32[144,128]{1,0:T(1,128)}', space=vmem, size = 0x12000, scoped, tag = 'internal scratch']
  %s0 = inlined_call_operand.hbm [shape: bf16[512,512], index: 0, kind: input, shape index: {}]
  %s1 = inlined_call_operand.hbm [shape: bf16[512,128], index: 1, kind: input, shape index: {}]
  %s2 = inlined_call_operand.hbm [shape: bf16[128,128], index: 2, kind: input, shape index: {}]
  %s3 = inlined_call_operand.hbm [shape: bf16[128,384], index: 3, kind: input, shape index: {}]
  %s4 = inlined_call_operand.hbm [shape: bf16[128,384], index: 4, kind: input, shape index: {}]
  %s5 = inlined_call_operand.vmem [shape: f32[1,384], index: 5, kind: input, shape index: {}]
  %s6 = inlined_call_operand.vmem [shape: f32[1,384], index: 6, kind: input, shape index: {}]
  %s7 = inlined_call_operand.hbm [shape: bf16[512,128], index: 7, kind: output, shape index: {}]
  %s8 = sld [smem:[#allocation0]]
  $region81: #{tpu_custom_call.1} parent=0
    _
  %s10 = ssub.s32 1, %s8
  %s11 = scalar_select 0, %s10, %s8
  $region1: #{tpu_custom_call.1} parent=0
    #allocation2 [shape = 'u8[524288]{0}', space=vmem, size = 0x80000, scoped, tag = 'input window, operand 0']
    #allocation3 [shape = 's32[2]{0}', space=sflag, size = 0x8, scoped, tag = 'scoped memory for tpu_custom_call.1']
    #allocation4 [shape = 's32[2]{0}', space=sflag, size = 0x8, scoped, tag = 'scoped memory for tpu_custom_call.1']
    #allocation5 [shape = 'u8[131072]{0}', space=vmem, size = 0x20000, scoped, tag = 'input window, operand 1, single buffered']
    #allocation6 [shape = 's32[1]{0}', space=sflag, size = 0x4, scoped, tag = 'scoped memory for tpu_custom_call.1']
    #allocation7 [shape = 'u8[32768]{0}', space=vmem, size = 0x8000, scoped, tag = 'input window, operand 2, single buffered']
    #allocation8 [shape = 'u8[98304]{0}', space=vmem, size = 0x18000, scoped, tag = 'input window, operand 3, single buffered']
    #allocation9 [shape = 's32[1]{0}', space=sflag, size = 0x4, scoped, tag = 'scoped memory for tpu_custom_call.1']
    #allocation10 [shape = 'u8[98304]{0}', space=vmem, size = 0x18000, scoped, tag = 'input window, operand 4, single buffered']
    #allocation11 [shape = 'u8[131072]{0}', space=vmem, size = 0x20000, scoped, tag = 'output window, operand 0']
    %12 = vsyncpa [#allocation3], 0
    %s13 = scalar_lea.sflag [#allocation3], 1
    %14 = vsyncpa %s13, 0
    %15 = vsyncpa [#allocation6], 0
    %16 = vsyncpa [#allocation9], 0
    %17 = vsyncpa [#allocation4], 0
    %s18 = scalar_lea.sflag [#allocation4], 1
    %19 = vsyncpa %s18, 0
    loop: start=0, step=1, limit=4
    $region2: #{tpu_custom_call.1} parent=1 // loop_pre_header
      _
    $region3: #{tpu_custom_call.1} parent=1 // loop_header
      %s21 = sphi 0, %s25
      %p22 = scmp.ge.s32.totalorder %s21, 4
      %s31 = sphi 0, %s33
      %s34 = sphi 0, %s31
      %s35 = sphi 0, %s34
      %s51 = sphi 0, %s35
      %s55 = sphi 0, %s55
      %s57 = sphi 0, %s55
      %s58 = sphi 0, %s57
      %s72 = sphi 0, %s58
      %s76 = sphi 0, %s76
      %s78 = sphi 0, %s76
      %s79 = sphi 0, %s78
      %s93 = sphi 0, %s79
      %s97 = sphi 0, %s97
      %s99 = sphi 0, %s97
      %s100 = sphi 0, %s99
      %s114 = sphi 0, %s100
      %s118 = sphi 0, %s118
      %s120 = sphi 0, %s118
      %s121 = sphi 0, %s120
      %s135 = sphi 0, %s121
      %s139 = sphi 0, %s139
      %s141 = sphi 0, %s139
      %s142 = sphi 0, %s141
      %s156 = sphi 0, %s142
      %s160 = sphi 0, %s160
      %s162 = sphi 0, %s160
      %s163 = sphi 0, %s162
      %s177 = sphi 0, %s163
      %s183 = sphi 0, %s185
      %s186 = sphi 0, %s183
      %s187 = sphi 0, %s186
      %s203 = sphi 0, %s187
    $region4: #{tpu_custom_call.1} parent=1 // loop_header_branch
      %24 = sbr.rel (%p22) target = $region8
    $region5: #{tpu_custom_call.1} parent=1 // loop_body
      %s26 = ssub.s32 %s21, 1
      %s27 = ssub.s32 %s21, 2
      %s28 = sadd.s32 %s21, 1
      %s29 = ssub.s32 %s21, %s28
      %p30 = scmp.eq.s32.totalorder %s29, 0
      %s32 = sadd.s32 %s31, 1
      %s33 = scalar_select %p30, %s31, %s32
      %p36 = pneg %p30
      %p37 = scmp.eq.s32.totalorder %s21, 1
      %p38 = por %p36, %p37
      %p39 = scmp.ne.s32.totalorder %s31, %s34
      %p40 = scmp.eq.s32.totalorder %s21, 0
      %p41 = por %p39, %p40
      %p42 = scmp.ne.s32.totalorder %s31, %s34
      %p43 = scmp.eq.s32.totalorder %s26, 1
      %p44 = por %p42, %p43
      %p45 = scmp.ne.s32.totalorder %s34, %s35
      %p46 = scmp.eq.s32.totalorder %s26, 0
      %p47 = por %p45, %p46
      %p48 = scmp.ne.s32.totalorder %s34, %s35
      %p49 = scmp.eq.s32.totalorder %s27, 1
      %p50 = por %p48, %p49
      %p52 = scmp.ne.s32.totalorder %s35, %s51
      %p53 = scmp.eq.s32.totalorder %s27, 0
      %p54 = por %p52, %p53
      %s56 = sadd.s32 %s55, 1
      %p59 = scmp.eq.s32.totalorder %s21, 1
      %p60 = scmp.ne.s32.totalorder %s55, %s57
      %p61 = scmp.eq.s32.totalorder %s21, 0
      %p62 = por %p60, %p61
      %p63 = scmp.ne.s32.totalorder %s55, %s57
      %p64 = scmp.eq.s32.totalorder %s26, 1
      %p65 = por %p63, %p64
      %p66 = scmp.ne.s32.totalorder %s57, %s58
      %p67 = scmp.eq.s32.totalorder %s26, 0
      %p68 = por %p66, %p67
      %p69 = scmp.ne.s32.totalorder %s57, %s58
      %p70 = scmp.eq.s32.totalorder %s27, 1
      %p71 = por %p69, %p70
      %p73 = scmp.ne.s32.totalorder %s58, %s72
      %p74 = scmp.eq.s32.totalorder %s27, 0
      %p75 = por %p73, %p74
      %s77 = sadd.s32 %s76, 1
      %p80 = scmp.eq.s32.totalorder %s21, 1
      %p81 = scmp.ne.s32.totalorder %s76, %s78
      %p82 = scmp.eq.s32.totalorder %s21, 0
      %p83 = por %p81, %p82
      %p84 = scmp.ne.s32.totalorder %s76, %s78
      %p85 = scmp.eq.s32.totalorder %s26, 1
      %p86 = por %p84, %p85
      %p87 = scmp.ne.s32.totalorder %s78, %s79
      %p88 = scmp.eq.s32.totalorder %s26, 0
      %p89 = por %p87, %p88
      %p90 = scmp.ne.s32.totalorder %s78, %s79
      %p91 = scmp.eq.s32.totalorder %s27, 1
      %p92 = por %p90, %p91
      %p94 = scmp.ne.s32.totalorder %s79, %s93
      %p95 = scmp.eq.s32.totalorder %s27, 0
      %p96 = por %p94, %p95
      %s98 = sadd.s32 %s97, 1
      %p101 = scmp.eq.s32.totalorder %s21, 1
      %p102 = scmp.ne.s32.totalorder %s97, %s99
      %p103 = scmp.eq.s32.totalorder %s21, 0
      %p104 = por %p102, %p103
      %p105 = scmp.ne.s32.totalorder %s97, %s99
      %p106 = scmp.eq.s32.totalorder %s26, 1
      %p107 = por %p105, %p106
      %p108 = scmp.ne.s32.totalorder %s99, %s100
      %p109 = scmp.eq.s32.totalorder %s26, 0
      %p110 = por %p108, %p109
      %p111 = scmp.ne.s32.totalorder %s99, %s100
      %p112 = scmp.eq.s32.totalorder %s27, 1
      %p113 = por %p111, %p112
      %p115 = scmp.ne.s32.totalorder %s100, %s114
      %p116 = scmp.eq.s32.totalorder %s27, 0
      %p117 = por %p115, %p116
      %s119 = sadd.s32 %s118, 1
      %p122 = scmp.eq.s32.totalorder %s21, 1
      %p123 = scmp.ne.s32.totalorder %s118, %s120
      %p124 = scmp.eq.s32.totalorder %s21, 0
      %p125 = por %p123, %p124
      %p126 = scmp.ne.s32.totalorder %s118, %s120
      %p127 = scmp.eq.s32.totalorder %s26, 1
      %p128 = por %p126, %p127
      %p129 = scmp.ne.s32.totalorder %s120, %s121
      %p130 = scmp.eq.s32.totalorder %s26, 0
      %p131 = por %p129, %p130
      %p132 = scmp.ne.s32.totalorder %s120, %s121
      %p133 = scmp.eq.s32.totalorder %s27, 1
      %p134 = por %p132, %p133
      %p136 = scmp.ne.s32.totalorder %s121, %s135
      %p137 = scmp.eq.s32.totalorder %s27, 0
      %p138 = por %p136, %p137
      %s140 = sadd.s32 %s139, 1
      %p143 = scmp.eq.s32.totalorder %s21, 1
      %p144 = scmp.ne.s32.totalorder %s139, %s141
      %p145 = scmp.eq.s32.totalorder %s21, 0
      %p146 = por %p144, %p145
      %p147 = scmp.ne.s32.totalorder %s139, %s141
      %p148 = scmp.eq.s32.totalorder %s26, 1
      %p149 = por %p147, %p148
      %p150 = scmp.ne.s32.totalorder %s141, %s142
      %p151 = scmp.eq.s32.totalorder %s26, 0
      %p152 = por %p150, %p151
      %p153 = scmp.ne.s32.totalorder %s141, %s142
      %p154 = scmp.eq.s32.totalorder %s27, 1
      %p155 = por %p153, %p154
      %p157 = scmp.ne.s32.totalorder %s142, %s156
      %p158 = scmp.eq.s32.totalorder %s27, 0
      %p159 = por %p157, %p158
      %s161 = sadd.s32 %s160, 1
      %p164 = scmp.eq.s32.totalorder %s21, 1
      %p165 = scmp.ne.s32.totalorder %s160, %s162
      %p166 = scmp.eq.s32.totalorder %s21, 0
      %p167 = por %p165, %p166
      %p168 = scmp.ne.s32.totalorder %s160, %s162
      %p169 = scmp.eq.s32.totalorder %s26, 1
      %p170 = por %p168, %p169
      %p171 = scmp.ne.s32.totalorder %s162, %s163
      %p172 = scmp.eq.s32.totalorder %s26, 0
      %p173 = por %p171, %p172
      %p174 = scmp.ne.s32.totalorder %s162, %s163
      %p175 = scmp.eq.s32.totalorder %s27, 1
      %p176 = por %p174, %p175
      %p178 = scmp.ne.s32.totalorder %s163, %s177
      %p179 = scmp.eq.s32.totalorder %s27, 0
      %p180 = por %p178, %p179
      %s181 = ssub.s32 %s21, %s28
      %p182 = scmp.eq.s32.totalorder %s181, 0
      %s184 = sadd.s32 %s183, 1
      %s185 = scalar_select %p182, %s183, %s184
      %p188 = pneg %p182
      %p189 = scmp.eq.s32.totalorder %s21, 1
      %p190 = por %p188, %p189
      %p191 = scmp.ne.s32.totalorder %s183, %s186
      %p192 = scmp.eq.s32.totalorder %s21, 0
      %p193 = por %p191, %p192
      %p194 = scmp.ne.s32.totalorder %s183, %s186
      %p195 = scmp.eq.s32.totalorder %s26, 1
      %p196 = por %p194, %p195
      %p197 = scmp.ne.s32.totalorder %s186, %s187
      %p198 = scmp.eq.s32.totalorder %s26, 0
      %p199 = por %p197, %p198
      %p200 = scmp.ne.s32.totalorder %s186, %s187
      %p201 = scmp.eq.s32.totalorder %s27, 1
      %p202 = por %p200, %p201
      %p204 = scmp.ne.s32.totalorder %s187, %s203
      %p205 = scmp.eq.s32.totalorder %s27, 0
      %p206 = por %p204, %p205
      %p207 = scmp.le.s32.totalorder 1, %s21
      %p208 = scmp.lt.s32.totalorder %s21, 3
      %p209 = pnand %p207, %p208
      %p210 = pneg %p209
      // Predicated region
      $region9: #{tpu_custom_call.1} parent=5 // pred_check
        _
      $region10: #{tpu_custom_call.1} parent=5 // pred_check_branch
        %212 = sbr.rel (%p209) target = $region12
      $region11: #{tpu_custom_call.1} parent=5 // pred_region
        %s213 = ssub.s32 %s21, 1
        // Predicated region
        $region13: #{tpu_custom_call.1} parent=11 // pred_check
          %p214 = pneg %p68
        $region14: #{tpu_custom_call.1} parent=11 // pred_check_branch
          %216 = sbr.rel (%p214) target = $region16
        $region15: #{tpu_custom_call.1} parent=11 // pred_region
          %s218 = ssub.s32 4096, 4096
          %219 = vsyncadd [#allocation6], %s218
          %s220 = sshll.u32 [#allocation5], 4
          %s221 = int_to_ptr.vmem [resolvable:$true] %s220
          %226 = dma.hbm_to_vmem [thread:$0]  %s1, 4096, %s221, [#allocation6], 64, 64, 4
        $region16: #{tpu_custom_call.1} parent=11 // pred_fallthru
          _
        // Predicated region
        $region17: #{tpu_custom_call.1} parent=11 // pred_check
          %p227 = pneg %p89
        $region18: #{tpu_custom_call.1} parent=11 // pred_check_branch
          %229 = sbr.rel (%p227) target = $region20
        $region19: #{tpu_custom_call.1} parent=11 // pred_region
          %s231 = ssub.s32 1024, 1024
          %232 = vsyncadd [#allocation6], %s231
          %s233 = sshll.u32 [#allocation7], 4
          %s234 = int_to_ptr.vmem [resolvable:$true] %s233
          %239 = dma.hbm_to_vmem [thread:$0]  %s2, 1024, %s234, [#allocation6], 64, 64, 4
        $region20: #{tpu_custom_call.1} parent=11 // pred_fallthru
          _
        // Predicated region
        $region21: #{tpu_custom_call.1} parent=11 // pred_check
          %p240 = pneg %p110
        $region22: #{tpu_custom_call.1} parent=11 // pred_check_branch
          %242 = sbr.rel (%p240) target = $region24
        $region23: #{tpu_custom_call.1} parent=11 // pred_region
          %s244 = ssub.s32 3072, 3072
          %245 = vsyncadd [#allocation9], %s244
          %s246 = sshll.u32 [#allocation8], 4
          %s247 = int_to_ptr.vmem [resolvable:$true] %s246
          %252 = dma.hbm_to_vmem [thread:$0]  %s3, 3072, %s247, [#allocation9], 192, 192, 12
        $region24: #{tpu_custom_call.1} parent=11 // pred_fallthru
          _
        // Predicated region
        $region25: #{tpu_custom_call.1} parent=11 // pred_check
          %p253 = pneg %p131
        $region26: #{tpu_custom_call.1} parent=11 // pred_check_branch
          %255 = sbr.rel (%p253) target = $region28
        $region27: #{tpu_custom_call.1} parent=11 // pred_region
          %s257 = ssub.s32 3072, 3072
          %258 = vsyncadd [#allocation9], %s257
          %s259 = sshll.u32 [#allocation10], 4
          %s260 = int_to_ptr.vmem [resolvable:$true] %s259
          %265 = dma.hbm_to_vmem [thread:$0]  %s4, 3072, %s260, [#allocation9], 192, 192, 12
        $region28: #{tpu_custom_call.1} parent=11 // pred_fallthru
          _
        // Predicated region
        $region29: #{tpu_custom_call.1} parent=11 // pred_check
          %p266 = pneg %p152
        $region30: #{tpu_custom_call.1} parent=11 // pred_check_branch
          %268 = sbr.rel (%p266) target = $region32
        $region31: #{tpu_custom_call.1} parent=11 // pred_region
          _
        $region32: #{tpu_custom_call.1} parent=11 // pred_fallthru
          _
        // Predicated region
        $region33: #{tpu_custom_call.1} parent=11 // pred_check
          %p269 = pneg %p173
        $region34: #{tpu_custom_call.1} parent=11 // pred_check_branch
          %271 = sbr.rel (%p269) target = $region36
        $region35: #{tpu_custom_call.1} parent=11 // pred_region
          _
        $region36: #{tpu_custom_call.1} parent=11 // pred_fallthru
          _
      $region12: #{tpu_custom_call.1} parent=5 // pred_fallthru
        _
      %p272 = scmp.lt.s32.totalorder %s21, 2
      // Predicated region
      $region37: #{tpu_custom_call.1} parent=5 // pred_check
        %p273 = pneg %p272
      $region38: #{tpu_custom_call.1} parent=5 // pred_check_branch
        %275 = sbr.rel (%p273) target = $region40
      $region39: #{tpu_custom_call.1} parent=5 // pred_region
        // Predicated region
        $region41: #{tpu_custom_call.1} parent=39 // pred_check
          %p276 = pneg %p41
        $region42: #{tpu_custom_call.1} parent=39 // pred_check_branch
          %278 = sbr.rel (%p276) target = $region44
        $region43: #{tpu_custom_call.1} parent=39 // pred_region
          %s279 = sand.u32 %s31, 1
          %s280 = scalar_lea.sflag [#allocation3], %s279
          %s281 = sand.u32 %s31, 1
          %s282 = smul.addr %s281, 512
          %s283 = scalar_lea.vmem [#allocation2], %s282
          %s284 = smul.u32 32, %s21
          %s286 = ssub.s32 8192, 8192
          %287 = vsyncadd %s280, %s286
          %s288 = smul.addr %s284, 4
          %s289 = smul.addr %s288, 64
          %s290 = scalar_lea.hbm %s0, %s289
          %s291 = sshll.u32 %s283, 4
          %s292 = int_to_ptr.vmem [resolvable:$true] %s291
          %297 = dma.hbm_to_vmem [thread:$0]  %s290, 8192, %s292, %s280, 256, 256, 16
        $region44: #{tpu_custom_call.1} parent=39 // pred_fallthru
          _
      $region40: #{tpu_custom_call.1} parent=5 // pred_fallthru
        _
      %p298 = scmp.le.s32.totalorder 1, %s21
      %p299 = scmp.lt.s32.totalorder %s21, 3
      %p300 = pnand %p298, %p299
      %p301 = pneg %p300
      // Predicated region
      $region45: #{tpu_custom_call.1} parent=5 // pred_check
        _
      $region46: #{tpu_custom_call.1} parent=5 // pred_check_branch
        %303 = sbr.rel (%p300) target = $region48
      $region47: #{tpu_custom_call.1} parent=5 // pred_region
        %s304 = ssub.s32 %s21, 1
        %s305 = sand.u32 %s34, 1
        %s306 = scalar_lea.sflag [#allocation3], %s305
        %s307 = sand.u32 %s34, 1
        %s308 = smul.addr %s307, 512
        %s309 = scalar_lea.vmem [#allocation2], %s308
        // Predicated region
        $region49: #{tpu_custom_call.1} parent=47 // pred_check
          %p310 = pneg %p47
        $region50: #{tpu_custom_call.1} parent=47 // pred_check_branch
          %312 = sbr.rel (%p310) target = $region52
        $region51: #{tpu_custom_call.1} parent=47 // pred_region
          %313 = dma.done %s306, 8192
        $region52: #{tpu_custom_call.1} parent=47 // pred_fallthru
          _
        // Predicated region
        $region53: #{tpu_custom_call.1} parent=47 // pred_check
          %p314 = pneg %p68
        $region54: #{tpu_custom_call.1} parent=47 // pred_check_branch
          %316 = sbr.rel (%p314) target = $region56
        $region55: #{tpu_custom_call.1} parent=47 // pred_region
          %317 = dma.done [#allocation6], 4096
        $region56: #{tpu_custom_call.1} parent=47 // pred_fallthru
          _
        // Predicated region
        $region57: #{tpu_custom_call.1} parent=47 // pred_check
          %p318 = pneg %p89
        $region58: #{tpu_custom_call.1} parent=47 // pred_check_branch
          %320 = sbr.rel (%p318) target = $region60
        $region59: #{tpu_custom_call.1} parent=47 // pred_region
          %321 = dma.done [#allocation6], 1024
        $region60: #{tpu_custom_call.1} parent=47 // pred_fallthru
          _
        // Predicated region
        $region61: #{tpu_custom_call.1} parent=47 // pred_check
          %p322 = pneg %p110
        $region62: #{tpu_custom_call.1} parent=47 // pred_check_branch
          %324 = sbr.rel (%p322) target = $region64
        $region63: #{tpu_custom_call.1} parent=47 // pred_region
          %325 = dma.done [#allocation9], 3072
        $region64: #{tpu_custom_call.1} parent=47 // pred_fallthru
          _
        // Predicated region
        $region65: #{tpu_custom_call.1} parent=47 // pred_check
          %p326 = pneg %p131
        $region66: #{tpu_custom_call.1} parent=47 // pred_check_branch
          %328 = sbr.rel (%p326) target = $region68
        $region67: #{tpu_custom_call.1} parent=47 // pred_region
          %329 = dma.done [#allocation9], 3072
        $region68: #{tpu_custom_call.1} parent=47 // pred_fallthru
          _
        %s330 = sand.u32 %s34, 1
        %s331 = scalar_lea.sflag [#allocation3], %s330
        %s332 = sand.u32 %s34, 1
        %s333 = smul.addr %s332, 512
        %s334 = scalar_lea.vmem [#allocation2], %s333
        %p335 = pneg %p47
        %p336 = pneg %p44
        %p337 = pneg %p68
        %p338 = pneg %p65
        %p339 = pneg %p89
        %p340 = pneg %p86
        %p341 = pneg %p110
        %p342 = pneg %p107
        %p343 = pneg %p131
        %p344 = pneg %p128
        %p345 = pneg %p152
        %p346 = pneg %p149
        %p347 = pneg %p173
        %p348 = pneg %p170
        %p349 = pneg %p199
        %p350 = pneg %p196
        %s351 = sand.u32 %s186, 1
        %s352 = scalar_lea.sflag [#allocation4], %s351
        %s353 = sand.u32 %s186, 1
        %s354 = smul.addr %s353, 128
        %s355 = scalar_lea.vmem [#allocation11], %s354
        %s356 = smul.u32 32, %s26
        %s357 = smul.u32 32, %s26
        %v359 = vld [vmem:[%s309] sm:$0xff]
        %v360 = vld [vmem:[%s309 + $0x8] sm:$0xff]
        %v361 = vld [vmem:[%s309 + $0x10] sm:$0xff]
        %v362 = vld [vmem:[%s309 + $0x18] sm:$0xff]
        %v363 = vld [vmem:[%s309 + $0x20] sm:$0xff]
        %v364 = vld [vmem:[%s309 + $0x28] sm:$0xff]
        %v365 = vld [vmem:[%s309 + $0x30] sm:$0xff]
        %v366 = vld [vmem:[%s309 + $0x38] sm:$0xff]
        %v367 = vld [vmem:[%s309 + $0x40] sm:$0xff]
        %v368 = vld [vmem:[%s309 + $0x48] sm:$0xff]
        %v369 = vld [vmem:[%s309 + $0x50] sm:$0xff]
        %v370 = vld [vmem:[%s309 + $0x58] sm:$0xff]
        %v371 = vld [vmem:[%s309 + $0x60] sm:$0xff]
        %v372 = vld [vmem:[%s309 + $0x68] sm:$0xff]
        %v373 = vld [vmem:[%s309 + $0x70] sm:$0xff]
        %v374 = vld [vmem:[%s309 + $0x78] sm:$0xff]
        %v375 = vld [vmem:[%s309 + $0x80] sm:$0xff]
        %v376 = vld [vmem:[%s309 + $0x88] sm:$0xff]
        %v377 = vld [vmem:[%s309 + $0x90] sm:$0xff]
        %v378 = vld [vmem:[%s309 + $0x98] sm:$0xff]
        %v379 = vld [vmem:[%s309 + $0xa0] sm:$0xff]
        %v380 = vld [vmem:[%s309 + $0xa8] sm:$0xff]
        %v381 = vld [vmem:[%s309 + $0xb0] sm:$0xff]
        %v382 = vld [vmem:[%s309 + $0xb8] sm:$0xff]
        %v383 = vld [vmem:[%s309 + $0xc0] sm:$0xff]
        %v384 = vld [vmem:[%s309 + $0xc8] sm:$0xff]
        %v385 = vld [vmem:[%s309 + $0xd0] sm:$0xff]
        %v386 = vld [vmem:[%s309 + $0xd8] sm:$0xff]
        %v387 = vld [vmem:[%s309 + $0xe0] sm:$0xff]
        %v388 = vld [vmem:[%s309 + $0xe8] sm:$0xff]
        %v389 = vld [vmem:[%s309 + $0xf0] sm:$0xff]
        %v390 = vld [vmem:[%s309 + $0xf8] sm:$0xff]
        %v391 = vld [vmem:[%s309 + $0x100] sm:$0xff]
        %v392 = vld [vmem:[%s309 + $0x108] sm:$0xff]
        %v393 = vld [vmem:[%s309 + $0x110] sm:$0xff]
        %v394 = vld [vmem:[%s309 + $0x118] sm:$0xff]
        %v395 = vld [vmem:[%s309 + $0x120] sm:$0xff]
        %v396 = vld [vmem:[%s309 + $0x128] sm:$0xff]
        %v397 = vld [vmem:[%s309 + $0x130] sm:$0xff]
        %v398 = vld [vmem:[%s309 + $0x138] sm:$0xff]
        %v399 = vld [vmem:[%s309 + $0x140] sm:$0xff]
        %v400 = vld [vmem:[%s309 + $0x148] sm:$0xff]
        %v401 = vld [vmem:[%s309 + $0x150] sm:$0xff]
        %v402 = vld [vmem:[%s309 + $0x158] sm:$0xff]
        %v403 = vld [vmem:[%s309 + $0x160] sm:$0xff]
        %v404 = vld [vmem:[%s309 + $0x168] sm:$0xff]
        %v405 = vld [vmem:[%s309 + $0x170] sm:$0xff]
        %v406 = vld [vmem:[%s309 + $0x178] sm:$0xff]
        %v407 = vld [vmem:[%s309 + $0x180] sm:$0xff]
        %v408 = vld [vmem:[%s309 + $0x188] sm:$0xff]
        %v409 = vld [vmem:[%s309 + $0x190] sm:$0xff]
        %v410 = vld [vmem:[%s309 + $0x198] sm:$0xff]
        %v411 = vld [vmem:[%s309 + $0x1a0] sm:$0xff]
        %v412 = vld [vmem:[%s309 + $0x1a8] sm:$0xff]
        %v413 = vld [vmem:[%s309 + $0x1b0] sm:$0xff]
        %v414 = vld [vmem:[%s309 + $0x1b8] sm:$0xff]
        %v415 = vld [vmem:[%s309 + $0x1c0] sm:$0xff]
        %v416 = vld [vmem:[%s309 + $0x1c8] sm:$0xff]
        %v417 = vld [vmem:[%s309 + $0x1d0] sm:$0xff]
        %v418 = vld [vmem:[%s309 + $0x1d8] sm:$0xff]
        %v419 = vld [vmem:[%s309 + $0x1e0] sm:$0xff]
        %v420 = vld [vmem:[%s309 + $0x1e8] sm:$0xff]
        %v421 = vld [vmem:[%s309 + $0x1f0] sm:$0xff]
        %v422 = vld [vmem:[%s309 + $0x1f8] sm:$0xff]
        %v423 = vld [vmem:[#allocation5] sm:$0xf]
        %v424 = vld [vmem:[#allocation5 + $0x4] sm:$0xf]
        %v425 = vld [vmem:[#allocation5 + $0x8] sm:$0xf]
        %v426 = vld [vmem:[#allocation5 + $0xc] sm:$0xf]
        %v427 = vld [vmem:[#allocation5 + $0x10] sm:$0xf]
        %v428 = vld [vmem:[#allocation5 + $0x14] sm:$0xf]
        %v429 = vld [vmem:[#allocation5 + $0x18] sm:$0xf]
        %v430 = vld [vmem:[#allocation5 + $0x1c] sm:$0xf]
        %v431 = vld [vmem:[#allocation5 + $0x20] sm:$0xf]
        %v432 = vld [vmem:[#allocation5 + $0x24] sm:$0xf]
        %v433 = vld [vmem:[#allocation5 + $0x28] sm:$0xf]
        %v434 = vld [vmem:[#allocation5 + $0x2c] sm:$0xf]
        %v435 = vld [vmem:[#allocation5 + $0x30] sm:$0xf]
        %v436 = vld [vmem:[#allocation5 + $0x34] sm:$0xf]
        %v437 = vld [vmem:[#allocation5 + $0x38] sm:$0xf]
        %v438 = vld [vmem:[#allocation5 + $0x3c] sm:$0xf]
        %v439 = vld [vmem:[#allocation5 + $0x40] sm:$0xf]
        %v440 = vld [vmem:[#allocation5 + $0x44] sm:$0xf]
        %v441 = vld [vmem:[#allocation5 + $0x48] sm:$0xf]
        %v442 = vld [vmem:[#allocation5 + $0x4c] sm:$0xf]
        %v443 = vld [vmem:[#allocation5 + $0x50] sm:$0xf]
        %v444 = vld [vmem:[#allocation5 + $0x54] sm:$0xf]
        %v445 = vld [vmem:[#allocation5 + $0x58] sm:$0xf]
        %v446 = vld [vmem:[#allocation5 + $0x5c] sm:$0xf]
        %v447 = vld [vmem:[#allocation5 + $0x60] sm:$0xf]
        %v448 = vld [vmem:[#allocation5 + $0x64] sm:$0xf]
        %v449 = vld [vmem:[#allocation5 + $0x68] sm:$0xf]
        %v450 = vld [vmem:[#allocation5 + $0x6c] sm:$0xf]
        %v451 = vld [vmem:[#allocation5 + $0x70] sm:$0xf]
        %v452 = vld [vmem:[#allocation5 + $0x74] sm:$0xf]
        %v453 = vld [vmem:[#allocation5 + $0x78] sm:$0xf]
        %v454 = vld [vmem:[#allocation5 + $0x7c] sm:$0xf]
        %v455 = vld [vmem:[#allocation5 + $0x80] sm:$0xf]
        %v456 = vld [vmem:[#allocation5 + $0x84] sm:$0xf]
        %v457 = vld [vmem:[#allocation5 + $0x88] sm:$0xf]
        %v458 = vld [vmem:[#allocation5 + $0x8c] sm:$0xf]
        %v459 = vld [vmem:[#allocation5 + $0x90] sm:$0xf]
        %v460 = vld [vmem:[#allocation5 + $0x94] sm:$0xf]
        %v461 = vld [vmem:[#allocation5 + $0x98] sm:$0xf]
        %v462 = vld [vmem:[#allocation5 + $0x9c] sm:$0xf]
        %v463 = vld [vmem:[#allocation5 + $0xa0] sm:$0xf]
        %v464 = vld [vmem:[#allocation5 + $0xa4] sm:$0xf]
        %v465 = vld [vmem:[#allocation5 + $0xa8] sm:$0xf]
        %v466 = vld [vmem:[#allocation5 + $0xac] sm:$0xf]
        %v467 = vld [vmem:[#allocation5 + $0xb0] sm:$0xf]
        %v468 = vld [vmem:[#allocation5 + $0xb4] sm:$0xf]
        %v469 = vld [vmem:[#allocation5 + $0xb8] sm:$0xf]
        %v470 = vld [vmem:[#allocation5 + $0xbc] sm:$0xf]
        %v471 = vld [vmem:[#allocation5 + $0xc0] sm:$0xf]
        %v472 = vld [vmem:[#allocation5 + $0xc4] sm:$0xf]
        %v473 = vld [vmem:[#allocation5 + $0xc8] sm:$0xf]
        %v474 = vld [vmem:[#allocation5 + $0xcc] sm:$0xf]
        %v475 = vld [vmem:[#allocation5 + $0xd0] sm:$0xf]
        %v476 = vld [vmem:[#allocation5 + $0xd4] sm:$0xf]
        %v477 = vld [vmem:[#allocation5 + $0xd8] sm:$0xf]
        %v478 = vld [vmem:[#allocation5 + $0xdc] sm:$0xf]
        %v479 = vld [vmem:[#allocation5 + $0xe0] sm:$0xf]
        %v480 = vld [vmem:[#allocation5 + $0xe4] sm:$0xf]
        %v481 = vld [vmem:[#allocation5 + $0xe8] sm:$0xf]
        %v482 = vld [vmem:[#allocation5 + $0xec] sm:$0xf]
        %v483 = vld [vmem:[#allocation5 + $0xf0] sm:$0xf]
        %v484 = vld [vmem:[#allocation5 + $0xf4] sm:$0xf]
        %v485 = vld [vmem:[#allocation5 + $0xf8] sm:$0xf]
        %v486 = vld [vmem:[#allocation5 + $0xfc] sm:$0xf]
        %v551 = vunpack.c.l.b16 %v359
        %v552 = vunpack.c.h.b16 %v359
        %v553 = vunpack.c.l.b16 %v360
        %v554 = vunpack.c.h.b16 %v360
        %v555 = vunpack.c.l.b16 %v361
        %v556 = vunpack.c.h.b16 %v361
        %v557 = vunpack.c.l.b16 %v362
        %v558 = vunpack.c.h.b16 %v362
        %v559 = vunpack.c.l.b16 %v363
        %v560 = vunpack.c.h.b16 %v363
        %v561 = vunpack.c.l.b16 %v364
        %v562 = vunpack.c.h.b16 %v364
        %v563 = vunpack.c.l.b16 %v365
        %v564 = vunpack.c.h.b16 %v365
        %v565 = vunpack.c.l.b16 %v366
        %v566 = vunpack.c.h.b16 %v366
        %v567 = vunpack.c.l.b16 %v367
        %v568 = vunpack.c.h.b16 %v367
        %v569 = vunpack.c.l.b16 %v368
        %v570 = vunpack.c.h.b16 %v368
        %v571 = vunpack.c.l.b16 %v369
        %v572 = vunpack.c.h.b16 %v369
        %v573 = vunpack.c.l.b16 %v370
        %v574 = vunpack.c.h.b16 %v370
        %v575 = vunpack.c.l.b16 %v371
        %v576 = vunpack.c.h.b16 %v371
        %v577 = vunpack.c.l.b16 %v372
        %v578 = vunpack.c.h.b16 %v372
        %v579 = vunpack.c.l.b16 %v373
        %v580 = vunpack.c.h.b16 %v373
        %v581 = vunpack.c.l.b16 %v374
        %v582 = vunpack.c.h.b16 %v374
        %v583 = vunpack.c.l.b16 %v375
        %v584 = vunpack.c.h.b16 %v375
        %v585 = vunpack.c.l.b16 %v376
        %v586 = vunpack.c.h.b16 %v376
        %v587 = vunpack.c.l.b16 %v377
        %v588 = vunpack.c.h.b16 %v377
        %v589 = vunpack.c.l.b16 %v378
        %v590 = vunpack.c.h.b16 %v378
        %v591 = vunpack.c.l.b16 %v379
        %v592 = vunpack.c.h.b16 %v379
        %v593 = vunpack.c.l.b16 %v380
        %v594 = vunpack.c.h.b16 %v380
        %v595 = vunpack.c.l.b16 %v381
        %v596 = vunpack.c.h.b16 %v381
        %v597 = vunpack.c.l.b16 %v382
        %v598 = vunpack.c.h.b16 %v382
        %v599 = vunpack.c.l.b16 %v383
        %v600 = vunpack.c.h.b16 %v383
        %v601 = vunpack.c.l.b16 %v384
        %v602 = vunpack.c.h.b16 %v384
        %v603 = vunpack.c.l.b16 %v385
        %v604 = vunpack.c.h.b16 %v385
        %v605 = vunpack.c.l.b16 %v386
        %v606 = vunpack.c.h.b16 %v386
        %v607 = vunpack.c.l.b16 %v387
        %v608 = vunpack.c.h.b16 %v387
        %v609 = vunpack.c.l.b16 %v388
        %v610 = vunpack.c.h.b16 %v388
        %v611 = vunpack.c.l.b16 %v389
        %v612 = vunpack.c.h.b16 %v389
        %v613 = vunpack.c.l.b16 %v390
        %v614 = vunpack.c.h.b16 %v390
        %v615 = vunpack.c.l.b16 %v391
        %v616 = vunpack.c.h.b16 %v391
        %v617 = vunpack.c.l.b16 %v392
        %v618 = vunpack.c.h.b16 %v392
        %v619 = vunpack.c.l.b16 %v393
        %v620 = vunpack.c.h.b16 %v393
        %v621 = vunpack.c.l.b16 %v394
        %v622 = vunpack.c.h.b16 %v394
        %v623 = vunpack.c.l.b16 %v395
        %v624 = vunpack.c.h.b16 %v395
        %v625 = vunpack.c.l.b16 %v396
        %v626 = vunpack.c.h.b16 %v396
        %v627 = vunpack.c.l.b16 %v397
        %v628 = vunpack.c.h.b16 %v397
        %v629 = vunpack.c.l.b16 %v398
        %v630 = vunpack.c.h.b16 %v398
        %v631 = vunpack.c.l.b16 %v399
        %v632 = vunpack.c.h.b16 %v399
        %v633 = vunpack.c.l.b16 %v400
        %v634 = vunpack.c.h.b16 %v400
        %v635 = vunpack.c.l.b16 %v401
        %v636 = vunpack.c.h.b16 %v401
        %v637 = vunpack.c.l.b16 %v402
        %v638 = vunpack.c.h.b16 %v402
        %v639 = vunpack.c.l.b16 %v403
        %v640 = vunpack.c.h.b16 %v403
        %v641 = vunpack.c.l.b16 %v404
        %v642 = vunpack.c.h.b16 %v404
        %v643 = vunpack.c.l.b16 %v405
        %v644 = vunpack.c.h.b16 %v405
        %v645 = vunpack.c.l.b16 %v406
        %v646 = vunpack.c.h.b16 %v406
        %v647 = vunpack.c.l.b16 %v407
        %v648 = vunpack.c.h.b16 %v407
        %v649 = vunpack.c.l.b16 %v408
        %v650 = vunpack.c.h.b16 %v408
        %v651 = vunpack.c.l.b16 %v409
        %v652 = vunpack.c.h.b16 %v409
        %v653 = vunpack.c.l.b16 %v410
        %v654 = vunpack.c.h.b16 %v410
        %v655 = vunpack.c.l.b16 %v411
        %v656 = vunpack.c.h.b16 %v411
        %v657 = vunpack.c.l.b16 %v412
        %v658 = vunpack.c.h.b16 %v412
        %v659 = vunpack.c.l.b16 %v413
        %v660 = vunpack.c.h.b16 %v413
        %v661 = vunpack.c.l.b16 %v414
        %v662 = vunpack.c.h.b16 %v414
        %v663 = vunpack.c.l.b16 %v415
        %v664 = vunpack.c.h.b16 %v415
        %v665 = vunpack.c.l.b16 %v416
        %v666 = vunpack.c.h.b16 %v416
        %v667 = vunpack.c.l.b16 %v417
        %v668 = vunpack.c.h.b16 %v417
        %v669 = vunpack.c.l.b16 %v418
        %v670 = vunpack.c.h.b16 %v418
        %v671 = vunpack.c.l.b16 %v419
        %v672 = vunpack.c.h.b16 %v419
        %v673 = vunpack.c.l.b16 %v420
        %v674 = vunpack.c.h.b16 %v420
        %v675 = vunpack.c.l.b16 %v421
        %v676 = vunpack.c.h.b16 %v421
        %v677 = vunpack.c.l.b16 %v422
        %v678 = vunpack.c.h.b16 %v422
        %v679 = vpack.c.b16 %v555, %v551
        %v680 = vpack.c.b16 %v556, %v552
        %v681 = vpack.c.b16 %v557, %v553
        %v682 = vpack.c.b16 %v558, %v554
        %v683 = vpack.c.b16 %v563, %v559
        %v684 = vpack.c.b16 %v564, %v560
        %v685 = vpack.c.b16 %v565, %v561
        %v686 = vpack.c.b16 %v566, %v562
        %v687 = vpack.c.b16 %v571, %v567
        %v688 = vpack.c.b16 %v572, %v568
        %v689 = vpack.c.b16 %v573, %v569
        %v690 = vpack.c.b16 %v574, %v570
        %v691 = vpack.c.b16 %v579, %v575
        %v692 = vpack.c.b16 %v580, %v576
        %v693 = vpack.c.b16 %v581, %v577
        %v694 = vpack.c.b16 %v582, %v578
        %v695 = vpack.c.b16 %v587, %v583
        %v696 = vpack.c.b16 %v588, %v584
        %v697 = vpack.c.b16 %v589, %v585
        %v698 = vpack.c.b16 %v590, %v586
        %v699 = vpack.c.b16 %v595, %v591
        %v700 = vpack.c.b16 %v596, %v592
        %v701 = vpack.c.b16 %v597, %v593
        %v702 = vpack.c.b16 %v598, %v594
        %v703 = vpack.c.b16 %v603, %v599
        %v704 = vpack.c.b16 %v604, %v600
        %v705 = vpack.c.b16 %v605, %v601
        %v706 = vpack.c.b16 %v606, %v602
        %v707 = vpack.c.b16 %v611, %v607
        %v708 = vpack.c.b16 %v612, %v608
        %v709 = vpack.c.b16 %v613, %v609
        %v710 = vpack.c.b16 %v614, %v610
        %v711 = vpack.c.b16 %v619, %v615
        %v712 = vpack.c.b16 %v620, %v616
        %v713 = vpack.c.b16 %v621, %v617
        %v714 = vpack.c.b16 %v622, %v618
        %v715 = vpack.c.b16 %v627, %v623
        %v716 = vpack.c.b16 %v628, %v624
        %v717 = vpack.c.b16 %v629, %v625
        %v718 = vpack.c.b16 %v630, %v626
        %v719 = vpack.c.b16 %v635, %v631
        %v720 = vpack.c.b16 %v636, %v632
        %v721 = vpack.c.b16 %v637, %v633
        %v722 = vpack.c.b16 %v638, %v634
        %v723 = vpack.c.b16 %v643, %v639
        %v724 = vpack.c.b16 %v644, %v640
        %v725 = vpack.c.b16 %v645, %v641
        %v726 = vpack.c.b16 %v646, %v642
        %v727 = vpack.c.b16 %v651, %v647
        %v728 = vpack.c.b16 %v652, %v648
        %v729 = vpack.c.b16 %v653, %v649
        %v730 = vpack.c.b16 %v654, %v650
        %v731 = vpack.c.b16 %v659, %v655
        %v732 = vpack.c.b16 %v660, %v656
        %v733 = vpack.c.b16 %v661, %v657
        %v734 = vpack.c.b16 %v662, %v658
        %v735 = vpack.c.b16 %v667, %v663
        %v736 = vpack.c.b16 %v668, %v664
        %v737 = vpack.c.b16 %v669, %v665
        %v738 = vpack.c.b16 %v670, %v666
        %v739 = vpack.c.b16 %v675, %v671
        %v740 = vpack.c.b16 %v676, %v672
        %v741 = vpack.c.b16 %v677, %v673
        %v742 = vpack.c.b16 %v678, %v674
        %v871 = vunpack.c.l.b16 %v423
        %v872 = vunpack.c.l.b16 %v424
        %v873 = vunpack.c.l.b16 %v425
        %v874 = vunpack.c.l.b16 %v426
        %v875 = vunpack.c.l.b16 %v427
        %v876 = vunpack.c.l.b16 %v428
        %v877 = vunpack.c.l.b16 %v429
        %v878 = vunpack.c.l.b16 %v430
        %v879 = vunpack.c.l.b16 %v431
        %v880 = vunpack.c.l.b16 %v432
        %v881 = vunpack.c.l.b16 %v433
        %v882 = vunpack.c.l.b16 %v434
        %v883 = vunpack.c.l.b16 %v435
        %v884 = vunpack.c.l.b16 %v436
        %v885 = vunpack.c.l.b16 %v437
        %v886 = vunpack.c.l.b16 %v438
        %v887 = vunpack.c.l.b16 %v439
        %v888 = vunpack.c.l.b16 %v440
        %v889 = vunpack.c.l.b16 %v441
        %v890 = vunpack.c.l.b16 %v442
        %v891 = vunpack.c.l.b16 %v443
        %v892 = vunpack.c.l.b16 %v444
        %v893 = vunpack.c.l.b16 %v445
        %v894 = vunpack.c.l.b16 %v446
        %v895 = vunpack.c.l.b16 %v447
        %v896 = vunpack.c.l.b16 %v448
        %v897 = vunpack.c.l.b16 %v449
        %v898 = vunpack.c.l.b16 %v450
        %v899 = vunpack.c.l.b16 %v451
        %v900 = vunpack.c.l.b16 %v452
        %v901 = vunpack.c.l.b16 %v453
        %v902 = vunpack.c.l.b16 %v454
        %v903 = vunpack.c.l.b16 %v455
        %v904 = vunpack.c.l.b16 %v456
        %v905 = vunpack.c.l.b16 %v457
        %v906 = vunpack.c.l.b16 %v458
        %v907 = vunpack.c.l.b16 %v459
        %v908 = vunpack.c.l.b16 %v460
        %v909 = vunpack.c.l.b16 %v461
        %v910 = vunpack.c.l.b16 %v462
        %v911 = vunpack.c.l.b16 %v463
        %v912 = vunpack.c.l.b16 %v464
        %v913 = vunpack.c.l.b16 %v465
        %v914 = vunpack.c.l.b16 %v466
        %v915 = vunpack.c.l.b16 %v467
        %v916 = vunpack.c.l.b16 %v468
        %v917 = vunpack.c.l.b16 %v469
        %v918 = vunpack.c.l.b16 %v470
        %v919 = vunpack.c.l.b16 %v471
        %v920 = vunpack.c.l.b16 %v472
        %v921 = vunpack.c.l.b16 %v473
        %v922 = vunpack.c.l.b16 %v474
        %v923 = vunpack.c.l.b16 %v475
        %v924 = vunpack.c.l.b16 %v476
        %v925 = vunpack.c.l.b16 %v477
        %v926 = vunpack.c.l.b16 %v478
        %v927 = vunpack.c.l.b16 %v479
        %v928 = vunpack.c.l.b16 %v480
        %v929 = vunpack.c.l.b16 %v481
        %v930 = vunpack.c.l.b16 %v482
        %v931 = vunpack.c.l.b16 %v483
        %v932 = vunpack.c.l.b16 %v484
        %v933 = vunpack.c.l.b16 %v485
        %v934 = vunpack.c.l.b16 %v486
        %v935 = vpack.c.b16 %v872, %v871
        %v936 = vpack.c.b16 %v874, %v873
        %v937 = vpack.c.b16 %v876, %v875
        %v938 = vpack.c.b16 %v878, %v877
        %v939 = vpack.c.b16 %v880, %v879
        %v940 = vpack.c.b16 %v882, %v881
        %v941 = vpack.c.b16 %v884, %v883
        %v942 = vpack.c.b16 %v886, %v885
        %v943 = vpack.c.b16 %v888, %v887
        %v944 = vpack.c.b16 %v890, %v889
        %v945 = vpack.c.b16 %v892, %v891
        %v946 = vpack.c.b16 %v894, %v893
        %v947 = vpack.c.b16 %v896, %v895
        %v948 = vpack.c.b16 %v898, %v897
        %v949 = vpack.c.b16 %v900, %v899
        %v950 = vpack.c.b16 %v902, %v901
        %v951 = vpack.c.b16 %v904, %v903
        %v952 = vpack.c.b16 %v906, %v905
        %v953 = vpack.c.b16 %v908, %v907
        %v954 = vpack.c.b16 %v910, %v909
        %v955 = vpack.c.b16 %v912, %v911
        %v956 = vpack.c.b16 %v914, %v913
        %v957 = vpack.c.b16 %v916, %v915
        %v958 = vpack.c.b16 %v918, %v917
        %v959 = vpack.c.b16 %v920, %v919
        %v960 = vpack.c.b16 %v922, %v921
        %v961 = vpack.c.b16 %v924, %v923
        %v962 = vpack.c.b16 %v926, %v925
        %v963 = vpack.c.b16 %v928, %v927
        %v964 = vpack.c.b16 %v930, %v929
        %v965 = vpack.c.b16 %v932, %v931
        %v966 = vpack.c.b16 %v934, %v933
        %999 = vmatprep.subr.bf16.mxu0 0
        %1000 = vmatpush1.bf16.msra.mxu0 %v942
        %1001 = vmatprep.subr.bf16.mxu0 0
        %1002 = vmatpush1.bf16.msra.mxu0 %v941
        %1003 = vmatprep.subr.bf16.mxu0 0
        %1004 = vmatpush1.bf16.msra.mxu0 %v940
        %1005 = vmatprep.subr.bf16.mxu0 0
        %1006 = vmatpush1.bf16.msra.mxu0 %v939
        %1007 = vmatprep.subr.bf16.mxu0 0
        %1008 = vmatpush1.bf16.msra.mxu0 %v938
        %1009 = vmatprep.subr.bf16.mxu0 0
        %1010 = vmatpush1.bf16.msra.mxu0 %v937
        %1011 = vmatprep.subr.bf16.mxu0 0
        %1012 = vmatpush1.bf16.msra.mxu0 %v936
        %1013 = vmatprep.subr.bf16.mxu0 0
        %1014 = vmatpush1.bf16.msra.mxu0 %v935
        %1015 = vmatprep.subr.bf16.mxu0 0
        %1016 = vmatpush2.bf16.msra.mxu0 %v950
        %1017 = vmatprep.subr.bf16.mxu0 0
        %1018 = vmatpush2.bf16.msra.mxu0 %v949
        %1019 = vmatprep.subr.bf16.mxu0 0
        %1020 = vmatpush2.bf16.msra.mxu0 %v948
        %1021 = vmatprep.subr.bf16.mxu0 0
        %1022 = vmatpush2.bf16.msra.mxu0 %v947
        %1023 = vmatprep.subr.bf16.mxu0 0
        %1024 = vmatpush2.bf16.msra.mxu0 %v946
        %1025 = vmatprep.subr.bf16.mxu0 0
        %1026 = vmatpush2.bf16.msra.mxu0 %v945
        %1027 = vmatprep.subr.bf16.mxu0 0
        %1028 = vmatpush2.bf16.msra.mxu0 %v944
        %1029 = vmatprep.subr.bf16.mxu0 0
        %1030 = vmatpush2.bf16.msra.mxu0 %v943
        %1031 = vmatprep.mubr.bf16.mxu0 %v680
        %1032 = vmatmul.mubr.bf16.gmra.mxu0 %v679
        %v1033 = vpop.f32.mrf.mxu0
        %v1034 = vadd.f32 0.0, %v1033
        %v1035 = vpop.f32.mrf.mxu0
        %v1036 = vpop.f32.mrf.mxu0
        %v1037 = vadd.f32 0.0, %v1036
        %v1038 = vpop.f32.mrf.mxu0
        %1039 = vmatprep.mubr.bf16.mxu0 %v684
        %1040 = vmatmul.mubr.bf16.gmra.mxu0 %v683
        %v1041 = vpop.f32.mrf.mxu0
        %v1042 = vadd.f32 0.0, %v1041
        %v1043 = vpop.f32.mrf.mxu0
        %v1044 = vpop.f32.mrf.mxu0
        %v1045 = vadd.f32 0.0, %v1044
        %v1046 = vpop.f32.mrf.mxu0
        %1047 = vmatprep.mubr.bf16.mxu0 %v688
        %1048 = vmatmul.mubr.bf16.gmra.mxu0 %v687
        %v1049 = vpop.f32.mrf.mxu0
        %v1050 = vadd.f32 0.0, %v1049
        %v1051 = vpop.f32.mrf.mxu0
        %v1052 = vpop.f32.mrf.mxu0
        %v1053 = vadd.f32 0.0, %v1052
        %v1054 = vpop.f32.mrf.mxu0
        %1055 = vmatprep.mubr.bf16.mxu0 %v692
        %1056 = vmatmul.mubr.bf16.gmra.mxu0 %v691
        %v1057 = vpop.f32.mrf.mxu0
        %v1058 = vadd.f32 0.0, %v1057
        %v1059 = vpop.f32.mrf.mxu0
        %v1060 = vpop.f32.mrf.mxu0
        %v1061 = vadd.f32 0.0, %v1060
        %v1062 = vpop.f32.mrf.mxu0
        %1063 = vmatprep.mubr.bf16.mxu0 %v696
        %1064 = vmatmul.mubr.bf16.gmra.mxu0 %v695
        %v1065 = vpop.f32.mrf.mxu0
        %v1066 = vadd.f32 0.0, %v1065
        %v1067 = vpop.f32.mrf.mxu0
        %v1068 = vpop.f32.mrf.mxu0
        %v1069 = vadd.f32 0.0, %v1068
        %v1070 = vpop.f32.mrf.mxu0
        %1071 = vmatprep.mubr.bf16.mxu0 %v700
        %1072 = vmatmul.mubr.bf16.gmra.mxu0 %v699
        %v1073 = vpop.f32.mrf.mxu0
        %v1074 = vadd.f32 0.0, %v1073
        %v1075 = vpop.f32.mrf.mxu0
        %v1076 = vpop.f32.mrf.mxu0
        %v1077 = vadd.f32 0.0, %v1076
        %v1078 = vpop.f32.mrf.mxu0
        %1079 = vmatprep.mubr.bf16.mxu0 %v704
        %1080 = vmatmul.mubr.bf16.gmra.mxu0 %v703
        %v1081 = vpop.f32.mrf.mxu0
        %v1082 = vadd.f32 0.0, %v1081
        %v1083 = vpop.f32.mrf.mxu0
        %v1084 = vpop.f32.mrf.mxu0
        %v1085 = vadd.f32 0.0, %v1084
        %v1086 = vpop.f32.mrf.mxu0
        %1087 = vmatprep.mubr.bf16.mxu0 %v708
        %1088 = vmatmul.mubr.bf16.gmra.mxu0 %v707
        %v1089 = vpop.f32.mrf.mxu0
        %v1090 = vadd.f32 0.0, %v1089
        %v1091 = vpop.f32.mrf.mxu0
        %v1092 = vpop.f32.mrf.mxu0
        %v1093 = vadd.f32 0.0, %v1092
        %v1094 = vpop.f32.mrf.mxu0
        %1095 = vmatprep.mubr.bf16.mxu0 %v712
        %1096 = vmatmul.mubr.bf16.gmra.mxu0 %v711
        %v1097 = vpop.f32.mrf.mxu0
        %v1098 = vadd.f32 0.0, %v1097
        %v1099 = vpop.f32.mrf.mxu0
        %v1100 = vpop.f32.mrf.mxu0
        %v1101 = vadd.f32 0.0, %v1100
        %v1102 = vpop.f32.mrf.mxu0
        %1103 = vmatprep.mubr.bf16.mxu0 %v716
        %1104 = vmatmul.mubr.bf16.gmra.mxu0 %v715
        %v1105 = vpop.f32.mrf.mxu0
        %v1106 = vadd.f32 0.0, %v1105
        %v1107 = vpop.f32.mrf.mxu0
        %v1108 = vpop.f32.mrf.mxu0
        %v1109 = vadd.f32 0.0, %v1108
        %v1110 = vpop.f32.mrf.mxu0
        %1111 = vmatprep.mubr.bf16.mxu0 %v720
        %1112 = vmatmul.mubr.bf16.gmra.mxu0 %v719
        %v1113 = vpop.f32.mrf.mxu0
        %v1114 = vadd.f32 0.0, %v1113
        %v1115 = vpop.f32.mrf.mxu0
        %v1116 = vpop.f32.mrf.mxu0
        %v1117 = vadd.f32 0.0, %v1116
        %v1118 = vpop.f32.mrf.mxu0
        %1119 = vmatprep.mubr.bf16.mxu0 %v724
        %1120 = vmatmul.mubr.bf16.gmra.mxu0 %v723
        %v1121 = vpop.f32.mrf.mxu0
        %v1122 = vadd.f32 0.0, %v1121
        %v1123 = vpop.f32.mrf.mxu0
        %v1124 = vpop.f32.mrf.mxu0
        %v1125 = vadd.f32 0.0, %v1124
        %v1126 = vpop.f32.mrf.mxu0
        %1127 = vmatprep.mubr.bf16.mxu0 %v728
        %1128 = vmatmul.mubr.bf16.gmra.mxu0 %v727
        %v1129 = vpop.f32.mrf.mxu0
        %v1130 = vadd.f32 0.0, %v1129
        %v1131 = vpop.f32.mrf.mxu0
        %v1132 = vpop.f32.mrf.mxu0
        %v1133 = vadd.f32 0.0, %v1132
        %v1134 = vpop.f32.mrf.mxu0
        %1135 = vmatprep.mubr.bf16.mxu0 %v732
        %1136 = vmatmul.mubr.bf16.gmra.mxu0 %v731
        %v1137 = vpop.f32.mrf.mxu0
        %v1138 = vadd.f32 0.0, %v1137
        %v1139 = vpop.f32.mrf.mxu0
        %v1140 = vpop.f32.mrf.mxu0
        %v1141 = vadd.f32 0.0, %v1140
        %v1142 = vpop.f32.mrf.mxu0
        %1143 = vmatprep.mubr.bf16.mxu0 %v736
        %1144 = vmatmul.mubr.bf16.gmra.mxu0 %v735
        %v1145 = vpop.f32.mrf.mxu0
        %v1146 = vadd.f32 0.0, %v1145
        %v1147 = vpop.f32.mrf.mxu0
        %v1148 = vpop.f32.mrf.mxu0
        %v1149 = vadd.f32 0.0, %v1148
        %v1150 = vpop.f32.mrf.mxu0
        %1151 = vmatprep.mubr.bf16.mxu0 %v740
        %1152 = vmatmul.mubr.bf16.gmra.mxu0 %v739
        %v1153 = vpop.f32.mrf.mxu0
        %v1154 = vadd.f32 0.0, %v1153
        %v1155 = vpop.f32.mrf.mxu0
        %v1156 = vpop.f32.mrf.mxu0
        %v1157 = vadd.f32 0.0, %v1156
        %v1158 = vpop.f32.mrf.mxu0
        %1159 = vdwg.mxu0
        %1160 = vmatprep.subr.bf16.mxu0 0
        %1161 = vmatpush1.bf16.msra.mxu0 %v958
        %1162 = vmatprep.subr.bf16.mxu0 0
        %1163 = vmatpush1.bf16.msra.mxu0 %v957
        %1164 = vmatprep.subr.bf16.mxu0 0
        %1165 = vmatpush1.bf16.msra.mxu0 %v956
        %1166 = vmatprep.subr.bf16.mxu0 0
        %1167 = vmatpush1.bf16.msra.mxu0 %v955
        %1168 = vmatprep.subr.bf16.mxu0 0
        %1169 = vmatpush1.bf16.msra.mxu0 %v954
        %1170 = vmatprep.subr.bf16.mxu0 0
        %1171 = vmatpush1.bf16.msra.mxu0 %v953
        %1172 = vmatprep.subr.bf16.mxu0 0
        %1173 = vmatpush1.bf16.msra.mxu0 %v952
        %1174 = vmatprep.subr.bf16.mxu0 0
        %1175 = vmatpush1.bf16.msra.mxu0 %v951
        %1176 = vmatprep.subr.bf16.mxu0 0
        %1177 = vmatpush2.bf16.msra.mxu0 %v966
        %1178 = vmatprep.subr.bf16.mxu0 0
        %1179 = vmatpush2.bf16.msra.mxu0 %v965
        %1180 = vmatprep.subr.bf16.mxu0 0
        %1181 = vmatpush2.bf16.msra.mxu0 %v964
        %1182 = vmatprep.subr.bf16.mxu0 0
        %1183 = vmatpush2.bf16.msra.mxu0 %v963
        %1184 = vmatprep.subr.bf16.mxu0 0
        %1185 = vmatpush2.bf16.msra.mxu0 %v962
        %1186 = vmatprep.subr.bf16.mxu0 0
        %1187 = vmatpush2.bf16.msra.mxu0 %v961
        %1188 = vmatprep.subr.bf16.mxu0 0
        %1189 = vmatpush2.bf16.msra.mxu0 %v960
        %1190 = vmatprep.subr.bf16.mxu0 0
        %1191 = vmatpush2.bf16.msra.mxu0 %v959
        %1192 = vmatprep.mubr.bf16.mxu0 %v682
        %1193 = vmatmul.mubr.bf16.gmra.mxu0 %v681
        %v1194 = vpop.f32.mrf.mxu0
        %v1195 = vadd.f32 %v1034, %v1194
        %v1196 = vpop.f32.mrf.mxu0
        %v1197 = vpop.f32.mrf.mxu0
        %v1198 = vadd.f32 %v1037, %v1197
        %v1199 = vpop.f32.mrf.mxu0
        %1200 = vmatprep.mubr.bf16.mxu0 %v686
        %1201 = vmatmul.mubr.bf16.gmra.mxu0 %v685
        %v1202 = vpop.f32.mrf.mxu0
        %v1203 = vadd.f32 %v1042, %v1202
        %v1204 = vpop.f32.mrf.mxu0
        %v1205 = vpop.f32.mrf.mxu0
        %v1206 = vadd.f32 %v1045, %v1205
        %v1207 = vpop.f32.mrf.mxu0
        %1208 = vmatprep.mubr.bf16.mxu0 %v690
        %1209 = vmatmul.mubr.bf16.gmra.mxu0 %v689
        %v1210 = vpop.f32.mrf.mxu0
        %v1211 = vadd.f32 %v1050, %v1210
        %v1212 = vpop.f32.mrf.mxu0
        %v1213 = vpop.f32.mrf.mxu0
        %v1214 = vadd.f32 %v1053, %v1213
        %v1215 = vpop.f32.mrf.mxu0
        %1216 = vmatprep.mubr.bf16.mxu0 %v694
        %1217 = vmatmul.mubr.bf16.gmra.mxu0 %v693
        %v1218 = vpop.f32.mrf.mxu0
        %v1219 = vadd.f32 %v1058, %v1218
        %v1220 = vpop.f32.mrf.mxu0
        %v1221 = vpop.f32.mrf.mxu0
        %v1222 = vadd.f32 %v1061, %v1221
        %v1223 = vpop.f32.mrf.mxu0
        %1224 = vmatprep.mubr.bf16.mxu0 %v698
        %1225 = vmatmul.mubr.bf16.gmra.mxu0 %v697
        %v1226 = vpop.f32.mrf.mxu0
        %v1227 = vadd.f32 %v1066, %v1226
        %v1228 = vpop.f32.mrf.mxu0
        %v1229 = vpop.f32.mrf.mxu0
        %v1230 = vadd.f32 %v1069, %v1229
        %v1231 = vpop.f32.mrf.mxu0
        %1232 = vmatprep.mubr.bf16.mxu0 %v702
        %1233 = vmatmul.mubr.bf16.gmra.mxu0 %v701
        %v1234 = vpop.f32.mrf.mxu0
        %v1235 = vadd.f32 %v1074, %v1234
        %v1236 = vpop.f32.mrf.mxu0
        %v1237 = vpop.f32.mrf.mxu0
        %v1238 = vadd.f32 %v1077, %v1237
        %v1239 = vpop.f32.mrf.mxu0
        %1240 = vmatprep.mubr.bf16.mxu0 %v706
        %1241 = vmatmul.mubr.bf16.gmra.mxu0 %v705
        %v1242 = vpop.f32.mrf.mxu0
        %v1243 = vadd.f32 %v1082, %v1242
        %v1244 = vpop.f32.mrf.mxu0
        %v1245 = vpop.f32.mrf.mxu0
        %v1246 = vadd.f32 %v1085, %v1245
        %v1247 = vpop.f32.mrf.mxu0
        %1248 = vmatprep.mubr.bf16.mxu0 %v710
        %1249 = vmatmul.mubr.bf16.gmra.mxu0 %v709
        %v1250 = vpop.f32.mrf.mxu0
        %v1251 = vadd.f32 %v1090, %v1250
        %v1252 = vpop.f32.mrf.mxu0
        %v1253 = vpop.f32.mrf.mxu0
        %v1254 = vadd.f32 %v1093, %v1253
        %v1255 = vpop.f32.mrf.mxu0
        %1256 = vmatprep.mubr.bf16.mxu0 %v714
        %1257 = vmatmul.mubr.bf16.gmra.mxu0 %v713
        %v1258 = vpop.f32.mrf.mxu0
        %v1259 = vadd.f32 %v1098, %v1258
        %v1260 = vpop.f32.mrf.mxu0
        %v1261 = vpop.f32.mrf.mxu0
        %v1262 = vadd.f32 %v1101, %v1261
        %v1263 = vpop.f32.mrf.mxu0
        %1264 = vmatprep.mubr.bf16.mxu0 %v718
        %1265 = vmatmul.mubr.bf16.gmra.mxu0 %v717
        %v1266 = vpop.f32.mrf.mxu0
        %v1267 = vadd.f32 %v1106, %v1266
        %v1268 = vpop.f32.mrf.mxu0
        %v1269 = vpop.f32.mrf.mxu0
        %v1270 = vadd.f32 %v1109, %v1269
        %v1271 = vpop.f32.mrf.mxu0
        %1272 = vmatprep.mubr.bf16.mxu0 %v722
        %1273 = vmatmul.mubr.bf16.gmra.mxu0 %v721
        %v1274 = vpop.f32.mrf.mxu0
        %v1275 = vadd.f32 %v1114, %v1274
        %v1276 = vpop.f32.mrf.mxu0
        %v1277 = vpop.f32.mrf.mxu0
        %v1278 = vadd.f32 %v1117, %v1277
        %v1279 = vpop.f32.mrf.mxu0
        %1280 = vmatprep.mubr.bf16.mxu0 %v726
        %1281 = vmatmul.mubr.bf16.gmra.mxu0 %v725
        %v1282 = vpop.f32.mrf.mxu0
        %v1283 = vadd.f32 %v1122, %v1282
        %v1284 = vpop.f32.mrf.mxu0
        %v1285 = vpop.f32.mrf.mxu0
        %v1286 = vadd.f32 %v1125, %v1285
        %v1287 = vpop.f32.mrf.mxu0
        %1288 = vmatprep.mubr.bf16.mxu0 %v730
        %1289 = vmatmul.mubr.bf16.gmra.mxu0 %v729
        %v1290 = vpop.f32.mrf.mxu0
        %v1291 = vadd.f32 %v1130, %v1290
        %v1292 = vpop.f32.mrf.mxu0
        %v1293 = vpop.f32.mrf.mxu0
        %v1294 = vadd.f32 %v1133, %v1293
        %v1295 = vpop.f32.mrf.mxu0
        %1296 = vmatprep.mubr.bf16.mxu0 %v734
        %1297 = vmatmul.mubr.bf16.gmra.mxu0 %v733
        %v1298 = vpop.f32.mrf.mxu0
        %v1299 = vadd.f32 %v1138, %v1298
        %v1300 = vpop.f32.mrf.mxu0
        %v1301 = vpop.f32.mrf.mxu0
        %v1302 = vadd.f32 %v1141, %v1301
        %v1303 = vpop.f32.mrf.mxu0
        %1304 = vmatprep.mubr.bf16.mxu0 %v738
        %1305 = vmatmul.mubr.bf16.gmra.mxu0 %v737
        %v1306 = vpop.f32.mrf.mxu0
        %v1307 = vadd.f32 %v1146, %v1306
        %v1308 = vpop.f32.mrf.mxu0
        %v1309 = vpop.f32.mrf.mxu0
        %v1310 = vadd.f32 %v1149, %v1309
        %v1311 = vpop.f32.mrf.mxu0
        %1312 = vmatprep.mubr.bf16.mxu0 %v742
        %1313 = vmatmul.mubr.bf16.gmra.mxu0 %v741
        %v1314 = vpop.f32.mrf.mxu0
        %v1315 = vadd.f32 %v1154, %v1314
        %v1316 = vpop.f32.mrf.mxu0
        %v1317 = vpop.f32.mrf.mxu0
        %v1318 = vadd.f32 %v1157, %v1317
        %v1319 = vpop.f32.mrf.mxu0
        %1320 = vdwg.mxu0
        %v1321 = vpack.c.bf16 %v1198, %v1195
        %v1322 = vpack.c.bf16 %v1206, %v1203
        %v1323 = vpack.c.bf16 %v1214, %v1211
        %v1324 = vpack.c.bf16 %v1222, %v1219
        %v1325 = vpack.c.bf16 %v1230, %v1227
        %v1326 = vpack.c.bf16 %v1238, %v1235
        %v1327 = vpack.c.bf16 %v1246, %v1243
        %v1328 = vpack.c.bf16 %v1254, %v1251
        %v1329 = vpack.c.bf16 %v1262, %v1259
        %v1330 = vpack.c.bf16 %v1270, %v1267
        %v1331 = vpack.c.bf16 %v1278, %v1275
        %v1332 = vpack.c.bf16 %v1286, %v1283
        %v1333 = vpack.c.bf16 %v1294, %v1291
        %v1334 = vpack.c.bf16 %v1302, %v1299
        %v1335 = vpack.c.bf16 %v1310, %v1307
        %v1336 = vpack.c.bf16 %v1318, %v1315
        %v1337 = vld [vmem:[#allocation7] sm:$0xf]
        %v1338 = vld [vmem:[#allocation7 + $0x4] sm:$0xf]
        %v1339 = vld [vmem:[#allocation7 + $0x8] sm:$0xf]
        %v1340 = vld [vmem:[#allocation7 + $0xc] sm:$0xf]
        %v1341 = vld [vmem:[#allocation7 + $0x10] sm:$0xf]
        %v1342 = vld [vmem:[#allocation7 + $0x14] sm:$0xf]
        %v1343 = vld [vmem:[#allocation7 + $0x18] sm:$0xf]
        %v1344 = vld [vmem:[#allocation7 + $0x1c] sm:$0xf]
        %v1345 = vld [vmem:[#allocation7 + $0x20] sm:$0xf]
        %v1346 = vld [vmem:[#allocation7 + $0x24] sm:$0xf]
        %v1347 = vld [vmem:[#allocation7 + $0x28] sm:$0xf]
        %v1348 = vld [vmem:[#allocation7 + $0x2c] sm:$0xf]
        %v1349 = vld [vmem:[#allocation7 + $0x30] sm:$0xf]
        %v1350 = vld [vmem:[#allocation7 + $0x34] sm:$0xf]
        %v1351 = vld [vmem:[#allocation7 + $0x38] sm:$0xf]
        %v1352 = vld [vmem:[#allocation7 + $0x3c] sm:$0xf]
        %v1369 = vunpack.c.l.b16 %v1337
        %v1370 = vunpack.c.l.b16 %v1338
        %v1371 = vunpack.c.l.b16 %v1339
        %v1372 = vunpack.c.l.b16 %v1340
        %v1373 = vunpack.c.l.b16 %v1341
        %v1374 = vunpack.c.l.b16 %v1342
        %v1375 = vunpack.c.l.b16 %v1343
        %v1376 = vunpack.c.l.b16 %v1344
        %v1377 = vunpack.c.l.b16 %v1345
        %v1378 = vunpack.c.l.b16 %v1346
        %v1379 = vunpack.c.l.b16 %v1347
        %v1380 = vunpack.c.l.b16 %v1348
        %v1381 = vunpack.c.l.b16 %v1349
        %v1382 = vunpack.c.l.b16 %v1350
        %v1383 = vunpack.c.l.b16 %v1351
        %v1384 = vunpack.c.l.b16 %v1352
        %v1385 = vpack.c.b16 %v1370, %v1369
        %v1386 = vpack.c.b16 %v1372, %v1371
        %v1387 = vpack.c.b16 %v1374, %v1373
        %v1388 = vpack.c.b16 %v1376, %v1375
        %v1389 = vpack.c.b16 %v1378, %v1377
        %v1390 = vpack.c.b16 %v1380, %v1379
        %v1391 = vpack.c.b16 %v1382, %v1381
        %v1392 = vpack.c.b16 %v1384, %v1383
        %1401 = vmatprep.subr.bf16.mxu0 0
        %1402 = vmatpush1.bf16.msra.mxu0 %v1392
        %1403 = vmatprep.subr.bf16.mxu0 0
        %1404 = vmatpush1.bf16.msra.mxu0 %v1391
        %1405 = vmatprep.subr.bf16.mxu0 0
        %1406 = vmatpush1.bf16.msra.mxu0 %v1390
        %1407 = vmatprep.subr.bf16.mxu0 0
        %1408 = vmatpush1.bf16.msra.mxu0 %v1389
        %1409 = vmatprep.subr.bf16.mxu0 0
        %1410 = vmatpush1.bf16.msra.mxu0 %v1388
        %1411 = vmatprep.subr.bf16.mxu0 0
        %1412 = vmatpush1.bf16.msra.mxu0 %v1387
        %1413 = vmatprep.subr.bf16.mxu0 0
        %1414 = vmatpush1.bf16.msra.mxu0 %v1386
        %1415 = vmatprep.subr.bf16.mxu0 0
        %1416 = vmatpush1.bf16.msra.mxu0 %v1385
        %1417 = vmatprep.subr.bf16.mxu0 0
        %1418 = vmatpush2.bf16.msra.mxu0 0
        %1419 = vmatprep.subr.bf16.mxu0 0
        %1420 = vmatpush2.bf16.msra.mxu0 0
        %1421 = vmatprep.subr.bf16.mxu0 0
        %1422 = vmatpush2.bf16.msra.mxu0 0
        %1423 = vmatprep.subr.bf16.mxu0 0
        %1424 = vmatpush2.bf16.msra.mxu0 0
        %1425 = vmatprep.subr.bf16.mxu0 0
        %1426 = vmatpush2.bf16.msra.mxu0 0
        %1427 = vmatprep.subr.bf16.mxu0 0
        %1428 = vmatpush2.bf16.msra.mxu0 0
        %1429 = vmatprep.subr.bf16.mxu0 0
        %1430 = vmatpush2.bf16.msra.mxu0 0
        %1431 = vmatprep.subr.bf16.mxu0 0
        %1432 = vmatpush2.bf16.msra.mxu0 0
        %1433 = vmatprep.mubr.bf16.mxu0 0
        %1434 = vmatmul.mubr.bf16.gmra.mxu0 %v1321
        %v1435 = vpop.f32.mrf.mxu0
        %v1436 = vadd.f32 0.0, %v1435
        %v1437 = vpop.f32.mrf.mxu0
        %v1438 = vpop.f32.mrf.mxu0
        %v1439 = vadd.f32 0.0, %v1438
        %v1440 = vpop.f32.mrf.mxu0
        %1441 = vmatprep.mubr.bf16.mxu0 0
        %1442 = vmatmul.mubr.bf16.gmra.mxu0 %v1322
        %v1443 = vpop.f32.mrf.mxu0
        %v1444 = vadd.f32 0.0, %v1443
        %v1445 = vpop.f32.mrf.mxu0
        %v1446 = vpop.f32.mrf.mxu0
        %v1447 = vadd.f32 0.0, %v1446
        %v1448 = vpop.f32.mrf.mxu0
        %1449 = vmatprep.mubr.bf16.mxu0 0
        %1450 = vmatmul.mubr.bf16.gmra.mxu0 %v1323
        %v1451 = vpop.f32.mrf.mxu0
        %v1452 = vadd.f32 0.0, %v1451
        %v1453 = vpop.f32.mrf.mxu0
        %v1454 = vpop.f32.mrf.mxu0
        %v1455 = vadd.f32 0.0, %v1454
        %v1456 = vpop.f32.mrf.mxu0
        %1457 = vmatprep.mubr.bf16.mxu0 0
        %1458 = vmatmul.mubr.bf16.gmra.mxu0 %v1324
        %v1459 = vpop.f32.mrf.mxu0
        %v1460 = vadd.f32 0.0, %v1459
        %v1461 = vpop.f32.mrf.mxu0
        %v1462 = vpop.f32.mrf.mxu0
        %v1463 = vadd.f32 0.0, %v1462
        %v1464 = vpop.f32.mrf.mxu0
        %1465 = vmatprep.mubr.bf16.mxu0 0
        %1466 = vmatmul.mubr.bf16.gmra.mxu0 %v1325
        %v1467 = vpop.f32.mrf.mxu0
        %v1468 = vadd.f32 0.0, %v1467
        %v1469 = vpop.f32.mrf.mxu0
        %v1470 = vpop.f32.mrf.mxu0
        %v1471 = vadd.f32 0.0, %v1470
        %v1472 = vpop.f32.mrf.mxu0
        %1473 = vmatprep.mubr.bf16.mxu0 0
        %1474 = vmatmul.mubr.bf16.gmra.mxu0 %v1326
        %v1475 = vpop.f32.mrf.mxu0
        %v1476 = vadd.f32 0.0, %v1475
        %v1477 = vpop.f32.mrf.mxu0
        %v1478 = vpop.f32.mrf.mxu0
        %v1479 = vadd.f32 0.0, %v1478
        %v1480 = vpop.f32.mrf.mxu0
        %1481 = vmatprep.mubr.bf16.mxu0 0
        %1482 = vmatmul.mubr.bf16.gmra.mxu0 %v1327
        %v1483 = vpop.f32.mrf.mxu0
        %v1484 = vadd.f32 0.0, %v1483
        %v1485 = vpop.f32.mrf.mxu0
        %v1486 = vpop.f32.mrf.mxu0
        %v1487 = vadd.f32 0.0, %v1486
        %v1488 = vpop.f32.mrf.mxu0
        %1489 = vmatprep.mubr.bf16.mxu0 0
        %1490 = vmatmul.mubr.bf16.gmra.mxu0 %v1328
        %v1491 = vpop.f32.mrf.mxu0
        %v1492 = vadd.f32 0.0, %v1491
        %v1493 = vpop.f32.mrf.mxu0
        %v1494 = vpop.f32.mrf.mxu0
        %v1495 = vadd.f32 0.0, %v1494
        %v1496 = vpop.f32.mrf.mxu0
        %1497 = vmatprep.mubr.bf16.mxu0 0
        %1498 = vmatmul.mubr.bf16.gmra.mxu0 %v1329
        %v1499 = vpop.f32.mrf.mxu0
        %v1500 = vadd.f32 0.0, %v1499
        %v1501 = vpop.f32.mrf.mxu0
        %v1502 = vpop.f32.mrf.mxu0
        %v1503 = vadd.f32 0.0, %v1502
        %v1504 = vpop.f32.mrf.mxu0
        %1505 = vmatprep.mubr.bf16.mxu0 0
        %1506 = vmatmul.mubr.bf16.gmra.mxu0 %v1330
        %v1507 = vpop.f32.mrf.mxu0
        %v1508 = vadd.f32 0.0, %v1507
        %v1509 = vpop.f32.mrf.mxu0
        %v1510 = vpop.f32.mrf.mxu0
        %v1511 = vadd.f32 0.0, %v1510
        %v1512 = vpop.f32.mrf.mxu0
        %1513 = vmatprep.mubr.bf16.mxu0 0
        %1514 = vmatmul.mubr.bf16.gmra.mxu0 %v1331
        %v1515 = vpop.f32.mrf.mxu0
        %v1516 = vadd.f32 0.0, %v1515
        %v1517 = vpop.f32.mrf.mxu0
        %v1518 = vpop.f32.mrf.mxu0
        %v1519 = vadd.f32 0.0, %v1518
        %v1520 = vpop.f32.mrf.mxu0
        %1521 = vmatprep.mubr.bf16.mxu0 0
        %1522 = vmatmul.mubr.bf16.gmra.mxu0 %v1332
        %v1523 = vpop.f32.mrf.mxu0
        %v1524 = vadd.f32 0.0, %v1523
        %v1525 = vpop.f32.mrf.mxu0
        %v1526 = vpop.f32.mrf.mxu0
        %v1527 = vadd.f32 0.0, %v1526
        %v1528 = vpop.f32.mrf.mxu0
        %1529 = vmatprep.mubr.bf16.mxu0 0
        %1530 = vmatmul.mubr.bf16.gmra.mxu0 %v1333
        %v1531 = vpop.f32.mrf.mxu0
        %v1532 = vadd.f32 0.0, %v1531
        %v1533 = vpop.f32.mrf.mxu0
        %v1534 = vpop.f32.mrf.mxu0
        %v1535 = vadd.f32 0.0, %v1534
        %v1536 = vpop.f32.mrf.mxu0
        %1537 = vmatprep.mubr.bf16.mxu0 0
        %1538 = vmatmul.mubr.bf16.gmra.mxu0 %v1334
        %v1539 = vpop.f32.mrf.mxu0
        %v1540 = vadd.f32 0.0, %v1539
        %v1541 = vpop.f32.mrf.mxu0
        %v1542 = vpop.f32.mrf.mxu0
        %v1543 = vadd.f32 0.0, %v1542
        %v1544 = vpop.f32.mrf.mxu0
        %1545 = vmatprep.mubr.bf16.mxu0 0
        %1546 = vmatmul.mubr.bf16.gmra.mxu0 %v1335
        %v1547 = vpop.f32.mrf.mxu0
        %v1548 = vadd.f32 0.0, %v1547
        %v1549 = vpop.f32.mrf.mxu0
        %v1550 = vpop.f32.mrf.mxu0
        %v1551 = vadd.f32 0.0, %v1550
        %v1552 = vpop.f32.mrf.mxu0
        %1553 = vmatprep.mubr.bf16.mxu0 0
        %1554 = vmatmul.mubr.bf16.gmra.mxu0 %v1336
        %v1555 = vpop.f32.mrf.mxu0
        %v1556 = vadd.f32 0.0, %v1555
        %v1557 = vpop.f32.mrf.mxu0
        %v1558 = vpop.f32.mrf.mxu0
        %v1559 = vadd.f32 0.0, %v1558
        %v1560 = vpop.f32.mrf.mxu0
        %1561 = vdwg.mxu0
        %s1562 = smul.u32 %s26, 256
        %s1563 = sshra.s32 %s1562, 3
        %s1564 = sand.u32 %s1562, 7
        %s1565 = smul.addr %s1563, 4
        %s1566 = scalar_lea.vmem [#allocation5], %s1565
        %v1567 = vld [vmem:[%s1566] sm:$0xf]
        %v1568 = vld [vmem:[%s1566 + $0x4] sm:$0xf]
        %v1569 = vld [vmem:[%s1566 + $0x8] sm:$0xf]
        %v1570 = vld [vmem:[%s1566 + $0xc] sm:$0xf]
        %v1571 = vld [vmem:[%s1566 + $0x10] sm:$0xf]
        %v1572 = vld [vmem:[%s1566 + $0x14] sm:$0xf]
        %v1573 = vld [vmem:[%s1566 + $0x18] sm:$0xf]
        %v1574 = vld [vmem:[%s1566 + $0x1c] sm:$0xf]
        %v1575 = vld [vmem:[%s1566 + $0x20] sm:$0xf]
        %v1576 = vld [vmem:[%s1566 + $0x24] sm:$0xf]
        %v1577 = vld [vmem:[%s1566 + $0x28] sm:$0xf]
        %v1578 = vld [vmem:[%s1566 + $0x2c] sm:$0xf]
        %v1579 = vld [vmem:[%s1566 + $0x30] sm:$0xf]
        %v1580 = vld [vmem:[%s1566 + $0x34] sm:$0xf]
        %v1581 = vld [vmem:[%s1566 + $0x38] sm:$0xf]
        %v1582 = vld [vmem:[%s1566 + $0x3c] sm:$0xf]
        %v1583 = vld [vmem:[%s1566 + $0x40] sm:$0xf]
        %v1584 = vld [vmem:[%s1566 + $0x44] sm:$0xf]
        %v1585 = vld [vmem:[%s1566 + $0x48] sm:$0xf]
        %v1586 = vld [vmem:[%s1566 + $0x4c] sm:$0xf]
        %v1587 = vld [vmem:[%s1566 + $0x50] sm:$0xf]
        %v1588 = vld [vmem:[%s1566 + $0x54] sm:$0xf]
        %v1589 = vld [vmem:[%s1566 + $0x58] sm:$0xf]
        %v1590 = vld [vmem:[%s1566 + $0x5c] sm:$0xf]
        %v1591 = vld [vmem:[%s1566 + $0x60] sm:$0xf]
        %v1592 = vld [vmem:[%s1566 + $0x64] sm:$0xf]
        %v1593 = vld [vmem:[%s1566 + $0x68] sm:$0xf]
        %v1594 = vld [vmem:[%s1566 + $0x6c] sm:$0xf]
        %v1595 = vld [vmem:[%s1566 + $0x70] sm:$0xf]
        %v1596 = vld [vmem:[%s1566 + $0x74] sm:$0xf]
        %v1597 = vld [vmem:[%s1566 + $0x78] sm:$0xf]
        %v1598 = vld [vmem:[%s1566 + $0x7c] sm:$0xf]
        %v1599 = vpack.c.bf16 %v1439, %v1436
        %v1600 = vpack.c.bf16 %v1447, %v1444
        %v1601 = vpack.c.bf16 %v1455, %v1452
        %v1602 = vpack.c.bf16 %v1463, %v1460
        %v1603 = vpack.c.bf16 %v1471, %v1468
        %v1604 = vpack.c.bf16 %v1479, %v1476
        %v1605 = vpack.c.bf16 %v1487, %v1484
        %v1606 = vpack.c.bf16 %v1495, %v1492
        %v1607 = vpack.c.bf16 %v1503, %v1500
        %v1608 = vpack.c.bf16 %v1511, %v1508
        %v1609 = vpack.c.bf16 %v1519, %v1516
        %v1610 = vpack.c.bf16 %v1527, %v1524
        %v1611 = vpack.c.bf16 %v1535, %v1532
        %v1612 = vpack.c.bf16 %v1543, %v1540
        %v1613 = vpack.c.bf16 %v1551, %v1548
        %v1614 = vpack.c.bf16 %v1559, %v1556
        %v1615 = vld [vmem:[#allocation8] sm:$0xff]
        %v1616 = vld [vmem:[#allocation8 + $0x8] sm:$0xf]
        %v1617 = vld [vmem:[#allocation8 + $0xc] sm:$0xff]
        %v1618 = vld [vmem:[#allocation8 + $0x14] sm:$0xf]
        %v1619 = vld [vmem:[#allocation8 + $0x18] sm:$0xff]
        %v1620 = vld [vmem:[#allocation8 + $0x20] sm:$0xf]
        %v1621 = vld [vmem:[#allocation8 + $0x24] sm:$0xff]
        %v1622 = vld [vmem:[#allocation8 + $0x2c] sm:$0xf]
        %v1623 = vld [vmem:[#allocation8 + $0x30] sm:$0xff]
        %v1624 = vld [vmem:[#allocation8 + $0x38] sm:$0xf]
        %v1625 = vld [vmem:[#allocation8 + $0x3c] sm:$0xff]
        %v1626 = vld [vmem:[#allocation8 + $0x44] sm:$0xf]
        %v1627 = vld [vmem:[#allocation8 + $0x48] sm:$0xff]
        %v1628 = vld [vmem:[#allocation8 + $0x50] sm:$0xf]
        %v1629 = vld [vmem:[#allocation8 + $0x54] sm:$0xff]
        %v1630 = vld [vmem:[#allocation8 + $0x5c] sm:$0xf]
        %v1631 = vld [vmem:[#allocation8 + $0x60] sm:$0xff]
        %v1632 = vld [vmem:[#allocation8 + $0x68] sm:$0xf]
        %v1633 = vld [vmem:[#allocation8 + $0x6c] sm:$0xff]
        %v1634 = vld [vmem:[#allocation8 + $0x74] sm:$0xf]
        %v1635 = vld [vmem:[#allocation8 + $0x78] sm:$0xff]
        %v1636 = vld [vmem:[#allocation8 + $0x80] sm:$0xf]
        %v1637 = vld [vmem:[#allocation8 + $0x84] sm:$0xff]
        %v1638 = vld [vmem:[#allocation8 + $0x8c] sm:$0xf]
        %v1639 = vld [vmem:[#allocation8 + $0x90] sm:$0xff]
        %v1640 = vld [vmem:[#allocation8 + $0x98] sm:$0xf]
        %v1641 = vld [vmem:[#allocation8 + $0x9c] sm:$0xff]
        %v1642 = vld [vmem:[#allocation8 + $0xa4] sm:$0xf]
        %v1643 = vld [vmem:[#allocation8 + $0xa8] sm:$0xff]
        %v1644 = vld [vmem:[#allocation8 + $0xb0] sm:$0xf]
        %v1645 = vld [vmem:[#allocation8 + $0xb4] sm:$0xff]
        %v1646 = vld [vmem:[#allocation8 + $0xbc] sm:$0xf]
        %v1647 = vld [vmem:[%s5] sm:$0x7]
        %v1649 = vlaneseq
        %v1650 = vshrl.u32 %v1649, 7
        %v1651 = vsub.s32 0, %v1650
        %v1652 = vrot.slane %v1647, %v1651
        %v1653 = vlaneseq
        %v1654 = vshrl.u32 %v1653, 7
        %v1655 = vsub.s32 1, %v1654
        %v1656 = vrot.slane %v1647, %v1655
        %v1657 = vlaneseq
        %v1658 = vshrl.u32 %v1657, 7
        %v1659 = vsub.s32 2, %v1658
        %v1660 = vrot.slane %v1647, %v1659
        %v1696 = vunpack.c.l.b16 %v1615
        %v1697 = vunpack.c.h.b16 %v1615
        %v1698 = vunpack.c.l.b16 %v1616
        %v1699 = vunpack.c.l.b16 %v1617
        %v1700 = vunpack.c.h.b16 %v1617
        %v1701 = vunpack.c.l.b16 %v1618
        %v1702 = vunpack.c.l.b16 %v1619
        %v1703 = vunpack.c.h.b16 %v1619
        %v1704 = vunpack.c.l.b16 %v1620
        %v1705 = vunpack.c.l.b16 %v1621
        %v1706 = vunpack.c.h.b16 %v1621
        %v1707 = vunpack.c.l.b16 %v1622
        %v1708 = vunpack.c.l.b16 %v1623
        %v1709 = vunpack.c.h.b16 %v1623
        %v1710 = vunpack.c.l.b16 %v1624
        %v1711 = vunpack.c.l.b16 %v1625
        %v1712 = vunpack.c.h.b16 %v1625
        %v1713 = vunpack.c.l.b16 %v1626
        %v1714 = vunpack.c.l.b16 %v1627
        %v1715 = vunpack.c.h.b16 %v1627
        %v1716 = vunpack.c.l.b16 %v1628
        %v1717 = vunpack.c.l.b16 %v1629
        %v1718 = vunpack.c.h.b16 %v1629
        %v1719 = vunpack.c.l.b16 %v1630
        %v1720 = vunpack.c.l.b16 %v1631
        %v1721 = vunpack.c.h.b16 %v1631
        %v1722 = vunpack.c.l.b16 %v1632
        %v1723 = vunpack.c.l.b16 %v1633
        %v1724 = vunpack.c.h.b16 %v1633
        %v1725 = vunpack.c.l.b16 %v1634
        %v1726 = vunpack.c.l.b16 %v1635
        %v1727 = vunpack.c.h.b16 %v1635
        %v1728 = vunpack.c.l.b16 %v1636
        %v1729 = vunpack.c.l.b16 %v1637
        %v1730 = vunpack.c.h.b16 %v1637
        %v1731 = vunpack.c.l.b16 %v1638
        %v1732 = vunpack.c.l.b16 %v1639
        %v1733 = vunpack.c.h.b16 %v1639
        %v1734 = vunpack.c.l.b16 %v1640
        %v1735 = vunpack.c.l.b16 %v1641
        %v1736 = vunpack.c.h.b16 %v1641
        %v1737 = vunpack.c.l.b16 %v1642
        %v1738 = vunpack.c.l.b16 %v1643
        %v1739 = vunpack.c.h.b16 %v1643
        %v1740 = vunpack.c.l.b16 %v1644
        %v1741 = vunpack.c.l.b16 %v1645
        %v1742 = vunpack.c.h.b16 %v1645
        %v1743 = vunpack.c.l.b16 %v1646
        %v1744 = vpack.c.b16 %v1699, %v1696
        %v1745 = vpack.c.b16 %v1700, %v1697
        %v1746 = vpack.c.b16 %v1701, %v1698
        %v1747 = vpack.c.b16 %v1705, %v1702
        %v1748 = vpack.c.b16 %v1706, %v1703
        %v1749 = vpack.c.b16 %v1707, %v1704
        %v1750 = vpack.c.b16 %v1711, %v1708
        %v1751 = vpack.c.b16 %v1712, %v1709
        %v1752 = vpack.c.b16 %v1713, %v1710
        %v1753 = vpack.c.b16 %v1717, %v1714
        %v1754 = vpack.c.b16 %v1718, %v1715
        %v1755 = vpack.c.b16 %v1719, %v1716
        %v1756 = vpack.c.b16 %v1723, %v1720
        %v1757 = vpack.c.b16 %v1724, %v1721
        %v1758 = vpack.c.b16 %v1725, %v1722
        %v1759 = vpack.c.b16 %v1729, %v1726
        %v1760 = vpack.c.b16 %v1730, %v1727
        %v1761 = vpack.c.b16 %v1731, %v1728
        %v1762 = vpack.c.b16 %v1735, %v1732
        %v1763 = vpack.c.b16 %v1736, %v1733
        %v1764 = vpack.c.b16 %v1737, %v1734
        %v1765 = vpack.c.b16 %v1741, %v1738
        %v1766 = vpack.c.b16 %v1742, %v1739
        %v1767 = vpack.c.b16 %v1743, %v1740
        %1792 = vmatprep.subr.bf16.mxu0 %v1766
        %1793 = vmatpush1.bf16.msra.mxu0 %v1765
        %1794 = vmatprep.subr.bf16.mxu0 %v1763
        %1795 = vmatpush1.bf16.msra.mxu0 %v1762
        %1796 = vmatprep.subr.bf16.mxu0 %v1760
        %1797 = vmatpush1.bf16.msra.mxu0 %v1759
        %1798 = vmatprep.subr.bf16.mxu0 %v1757
        %1799 = vmatpush1.bf16.msra.mxu0 %v1756
        %1800 = vmatprep.subr.bf16.mxu0 %v1754
        %1801 = vmatpush1.bf16.msra.mxu0 %v1753
        %1802 = vmatprep.subr.bf16.mxu0 %v1751
        %1803 = vmatpush1.bf16.msra.mxu0 %v1750
        %1804 = vmatprep.subr.bf16.mxu0 %v1748
        %1805 = vmatpush1.bf16.msra.mxu0 %v1747
        %1806 = vmatprep.subr.bf16.mxu0 %v1745
        %1807 = vmatpush1.bf16.msra.mxu0 %v1744
        %1808 = vmatprep.subr.bf16.mxu0 0
        %1809 = vmatpush2.bf16.msra.mxu0 0
        %1810 = vmatprep.subr.bf16.mxu0 0
        %1811 = vmatpush2.bf16.msra.mxu0 0
        %1812 = vmatprep.subr.bf16.mxu0 0
        %1813 = vmatpush2.bf16.msra.mxu0 0
        %1814 = vmatprep.subr.bf16.mxu0 0
        %1815 = vmatpush2.bf16.msra.mxu0 0
        %1816 = vmatprep.subr.bf16.mxu0 0
        %1817 = vmatpush2.bf16.msra.mxu0 0
        %1818 = vmatprep.subr.bf16.mxu0 0
        %1819 = vmatpush2.bf16.msra.mxu0 0
        %1820 = vmatprep.subr.bf16.mxu0 0
        %1821 = vmatpush2.bf16.msra.mxu0 0
        %1822 = vmatprep.subr.bf16.mxu0 0
        %1823 = vmatpush2.bf16.msra.mxu0 0
        %1824 = vmatprep.mubr.bf16.mxu0 0
        %1825 = vmatmul.mubr.bf16.gmra.mxu0 %v1599
        %v1826 = vpop.f32.mrf.mxu0
        %v1827 = vadd.f32 %v1652, %v1826
        %v1828 = vpop.f32.mrf.mxu0
        %v1829 = vadd.f32 %v1656, %v1828
        %v1830 = vpop.f32.mrf.mxu0
        %v1831 = vadd.f32 %v1652, %v1830
        %v1832 = vpop.f32.mrf.mxu0
        %v1833 = vadd.f32 %v1656, %v1832
        %1834 = vmatprep.mubr.bf16.mxu0 0
        %1835 = vmatmul.mubr.bf16.gmra.mxu0 %v1600
        %v1836 = vpop.f32.mrf.mxu0
        %v1837 = vadd.f32 %v1652, %v1836
        %v1838 = vpop.f32.mrf.mxu0
        %v1839 = vadd.f32 %v1656, %v1838
        %v1840 = vpop.f32.mrf.mxu0
        %v1841 = vadd.f32 %v1652, %v1840
        %v1842 = vpop.f32.mrf.mxu0
        %v1843 = vadd.f32 %v1656, %v1842
        %1844 = vmatprep.mubr.bf16.mxu0 0
        %1845 = vmatmul.mubr.bf16.gmra.mxu0 %v1601
        %v1846 = vpop.f32.mrf.mxu0
        %v1847 = vadd.f32 %v1652, %v1846
        %v1848 = vpop.f32.mrf.mxu0
        %v1849 = vadd.f32 %v1656, %v1848
        %v1850 = vpop.f32.mrf.mxu0
        %v1851 = vadd.f32 %v1652, %v1850
        %v1852 = vpop.f32.mrf.mxu0
        %v1853 = vadd.f32 %v1656, %v1852
        %1854 = vmatprep.mubr.bf16.mxu0 0
        %1855 = vmatmul.mubr.bf16.gmra.mxu0 %v1602
        %v1856 = vpop.f32.mrf.mxu0
        %v1857 = vadd.f32 %v1652, %v1856
        %v1858 = vpop.f32.mrf.mxu0
        %v1859 = vadd.f32 %v1656, %v1858
        %v1860 = vpop.f32.mrf.mxu0
        %v1861 = vadd.f32 %v1652, %v1860
        %v1862 = vpop.f32.mrf.mxu0
        %v1863 = vadd.f32 %v1656, %v1862
        %1864 = vmatprep.mubr.bf16.mxu0 0
        %1865 = vmatmul.mubr.bf16.gmra.mxu0 %v1603
        %v1866 = vpop.f32.mrf.mxu0
        %v1867 = vadd.f32 %v1652, %v1866
        %v1868 = vpop.f32.mrf.mxu0
        %v1869 = vadd.f32 %v1656, %v1868
        %v1870 = vpop.f32.mrf.mxu0
        %v1871 = vadd.f32 %v1652, %v1870
        %v1872 = vpop.f32.mrf.mxu0
        %v1873 = vadd.f32 %v1656, %v1872
        %1874 = vmatprep.mubr.bf16.mxu0 0
        %1875 = vmatmul.mubr.bf16.gmra.mxu0 %v1604
        %v1876 = vpop.f32.mrf.mxu0
        %v1877 = vadd.f32 %v1652, %v1876
        %v1878 = vpop.f32.mrf.mxu0
        %v1879 = vadd.f32 %v1656, %v1878
        %v1880 = vpop.f32.mrf.mxu0
        %v1881 = vadd.f32 %v1652, %v1880
        %v1882 = vpop.f32.mrf.mxu0
        %v1883 = vadd.f32 %v1656, %v1882
        %1884 = vmatprep.mubr.bf16.mxu0 0
        %1885 = vmatmul.mubr.bf16.gmra.mxu0 %v1605
        %v1886 = vpop.f32.mrf.mxu0
        %v1887 = vadd.f32 %v1652, %v1886
        %v1888 = vpop.f32.mrf.mxu0
        %v1889 = vadd.f32 %v1656, %v1888
        %v1890 = vpop.f32.mrf.mxu0
        %v1891 = vadd.f32 %v1652, %v1890
        %v1892 = vpop.f32.mrf.mxu0
        %v1893 = vadd.f32 %v1656, %v1892
        %1894 = vmatprep.mubr.bf16.mxu0 0
        %1895 = vmatmul.mubr.bf16.gmra.mxu0 %v1606
        %v1896 = vpop.f32.mrf.mxu0
        %v1897 = vadd.f32 %v1652, %v1896
        %v1898 = vpop.f32.mrf.mxu0
        %v1899 = vadd.f32 %v1656, %v1898
        %v1900 = vpop.f32.mrf.mxu0
        %v1901 = vadd.f32 %v1652, %v1900
        %v1902 = vpop.f32.mrf.mxu0
        %v1903 = vadd.f32 %v1656, %v1902
        %1904 = vmatprep.mubr.bf16.mxu0 0
        %1905 = vmatmul.mubr.bf16.gmra.mxu0 %v1607
        %v1906 = vpop.f32.mrf.mxu0
        %v1907 = vadd.f32 %v1652, %v1906
        %v1908 = vpop.f32.mrf.mxu0
        %v1909 = vadd.f32 %v1656, %v1908
        %v1910 = vpop.f32.mrf.mxu0
        %v1911 = vadd.f32 %v1652, %v1910
        %v1912 = vpop.f32.mrf.mxu0
        %v1913 = vadd.f32 %v1656, %v1912
        %1914 = vmatprep.mubr.bf16.mxu0 0
        %1915 = vmatmul.mubr.bf16.gmra.mxu0 %v1608
        %v1916 = vpop.f32.mrf.mxu0
        %v1917 = vadd.f32 %v1652, %v1916
        %v1918 = vpop.f32.mrf.mxu0
        %v1919 = vadd.f32 %v1656, %v1918
        %v1920 = vpop.f32.mrf.mxu0
        %v1921 = vadd.f32 %v1652, %v1920
        %v1922 = vpop.f32.mrf.mxu0
        %v1923 = vadd.f32 %v1656, %v1922
        %1924 = vmatprep.mubr.bf16.mxu0 0
        %1925 = vmatmul.mubr.bf16.gmra.mxu0 %v1609
        %v1926 = vpop.f32.mrf.mxu0
        %v1927 = vadd.f32 %v1652, %v1926
        %v1928 = vpop.f32.mrf.mxu0
        %v1929 = vadd.f32 %v1656, %v1928
        %v1930 = vpop.f32.mrf.mxu0
        %v1931 = vadd.f32 %v1652, %v1930
        %v1932 = vpop.f32.mrf.mxu0
        %v1933 = vadd.f32 %v1656, %v1932
        %1934 = vmatprep.mubr.bf16.mxu0 0
        %1935 = vmatmul.mubr.bf16.gmra.mxu0 %v1610
        %v1936 = vpop.f32.mrf.mxu0
        %v1937 = vadd.f32 %v1652, %v1936
        %v1938 = vpop.f32.mrf.mxu0
        %v1939 = vadd.f32 %v1656, %v1938
        %v1940 = vpop.f32.mrf.mxu0
        %v1941 = vadd.f32 %v1652, %v1940
        %v1942 = vpop.f32.mrf.mxu0
        %v1943 = vadd.f32 %v1656, %v1942
        %1944 = vmatprep.mubr.bf16.mxu0 0
        %1945 = vmatmul.mubr.bf16.gmra.mxu0 %v1611
        %v1946 = vpop.f32.mrf.mxu0
        %v1947 = vadd.f32 %v1652, %v1946
        %v1948 = vpop.f32.mrf.mxu0
        %v1949 = vadd.f32 %v1656, %v1948
        %v1950 = vpop.f32.mrf.mxu0
        %v1951 = vadd.f32 %v1652, %v1950
        %v1952 = vpop.f32.mrf.mxu0
        %v1953 = vadd.f32 %v1656, %v1952
        %1954 = vmatprep.mubr.bf16.mxu0 0
        %1955 = vmatmul.mubr.bf16.gmra.mxu0 %v1612
        %v1956 = vpop.f32.mrf.mxu0
        %v1957 = vadd.f32 %v1652, %v1956
        %v1958 = vpop.f32.mrf.mxu0
        %v1959 = vadd.f32 %v1656, %v1958
        %v1960 = vpop.f32.mrf.mxu0
        %v1961 = vadd.f32 %v1652, %v1960
        %v1962 = vpop.f32.mrf.mxu0
        %v1963 = vadd.f32 %v1656, %v1962
        %1964 = vmatprep.mubr.bf16.mxu0 0
        %1965 = vmatmul.mubr.bf16.gmra.mxu0 %v1613
        %v1966 = vpop.f32.mrf.mxu0
        %v1967 = vadd.f32 %v1652, %v1966
        %v1968 = vpop.f32.mrf.mxu0
        %v1969 = vadd.f32 %v1656, %v1968
        %v1970 = vpop.f32.mrf.mxu0
        %v1971 = vadd.f32 %v1652, %v1970
        %v1972 = vpop.f32.mrf.mxu0
        %v1973 = vadd.f32 %v1656, %v1972
        %1974 = vmatprep.mubr.bf16.mxu0 0
        %1975 = vmatmul.mubr.bf16.gmra.mxu0 %v1614
        %v1976 = vpop.f32.mrf.mxu0
        %v1977 = vadd.f32 %v1652, %v1976
        %v1978 = vpop.f32.mrf.mxu0
        %v1979 = vadd.f32 %v1656, %v1978
        %v1980 = vpop.f32.mrf.mxu0
        %v1981 = vadd.f32 %v1652, %v1980
        %v1982 = vpop.f32.mrf.mxu0
        %v1983 = vadd.f32 %v1656, %v1982
        %1984 = vdwg.mxu0
        %1985 = vmatprep.subr.bf16.mxu0 0
        %1986 = vmatpush1.bf16.msra.mxu0 %v1767
        %1987 = vmatprep.subr.bf16.mxu0 0
        %1988 = vmatpush1.bf16.msra.mxu0 %v1764
        %1989 = vmatprep.subr.bf16.mxu0 0
        %1990 = vmatpush1.bf16.msra.mxu0 %v1761
        %1991 = vmatprep.subr.bf16.mxu0 0
        %1992 = vmatpush1.bf16.msra.mxu0 %v1758
        %1993 = vmatprep.subr.bf16.mxu0 0
        %1994 = vmatpush1.bf16.msra.mxu0 %v1755
        %1995 = vmatprep.subr.bf16.mxu0 0
        %1996 = vmatpush1.bf16.msra.mxu0 %v1752
        %1997 = vmatprep.subr.bf16.mxu0 0
        %1998 = vmatpush1.bf16.msra.mxu0 %v1749
        %1999 = vmatprep.subr.bf16.mxu0 0
        %2000 = vmatpush1.bf16.msra.mxu0 %v1746
        %2001 = vmatprep.subr.bf16.mxu0 0
        %2002 = vmatpush2.bf16.msra.mxu0 0
        %2003 = vmatprep.subr.bf16.mxu0 0
        %2004 = vmatpush2.bf16.msra.mxu0 0
        %2005 = vmatprep.subr.bf16.mxu0 0
        %2006 = vmatpush2.bf16.msra.mxu0 0
        %2007 = vmatprep.subr.bf16.mxu0 0
        %2008 = vmatpush2.bf16.msra.mxu0 0
        %2009 = vmatprep.subr.bf16.mxu0 0
        %2010 = vmatpush2.bf16.msra.mxu0 0
        %2011 = vmatprep.subr.bf16.mxu0 0
        %2012 = vmatpush2.bf16.msra.mxu0 0
        %2013 = vmatprep.subr.bf16.mxu0 0
        %2014 = vmatpush2.bf16.msra.mxu0 0
        %2015 = vmatprep.subr.bf16.mxu0 0
        %2016 = vmatpush2.bf16.msra.mxu0 0
        %2017 = vmatprep.mubr.bf16.mxu0 0
        %2018 = vmatmul.mubr.bf16.gmra.mxu0 %v1599
        %v2019 = vpop.f32.mrf.mxu0
        %v2020 = vadd.f32 %v1660, %v2019
        %v2021 = vpop.f32.mrf.mxu0
        %v2022 = vpop.f32.mrf.mxu0
        %v2023 = vadd.f32 %v1660, %v2022
        %v2024 = vpop.f32.mrf.mxu0
        %2025 = vmatprep.mubr.bf16.mxu0 0
        %2026 = vmatmul.mubr.bf16.gmra.mxu0 %v1600
        %v2027 = vpop.f32.mrf.mxu0
        %v2028 = vadd.f32 %v1660, %v2027
        %v2029 = vpop.f32.mrf.mxu0
        %v2030 = vpop.f32.mrf.mxu0
        %v2031 = vadd.f32 %v1660, %v2030
        %v2032 = vpop.f32.mrf.mxu0
        %2033 = vmatprep.mubr.bf16.mxu0 0
        %2034 = vmatmul.mubr.bf16.gmra.mxu0 %v1601
        %v2035 = vpop.f32.mrf.mxu0
        %v2036 = vadd.f32 %v1660, %v2035
        %v2037 = vpop.f32.mrf.mxu0
        %v2038 = vpop.f32.mrf.mxu0
        %v2039 = vadd.f32 %v1660, %v2038
        %v2040 = vpop.f32.mrf.mxu0
        %2041 = vmatprep.mubr.bf16.mxu0 0
        %2042 = vmatmul.mubr.bf16.gmra.mxu0 %v1602
        %v2043 = vpop.f32.mrf.mxu0
        %v2044 = vadd.f32 %v1660, %v2043
        %v2045 = vpop.f32.mrf.mxu0
        %v2046 = vpop.f32.mrf.mxu0
        %v2047 = vadd.f32 %v1660, %v2046
        %v2048 = vpop.f32.mrf.mxu0
        %2049 = vmatprep.mubr.bf16.mxu0 0
        %2050 = vmatmul.mubr.bf16.gmra.mxu0 %v1603
        %v2051 = vpop.f32.mrf.mxu0
        %v2052 = vadd.f32 %v1660, %v2051
        %v2053 = vpop.f32.mrf.mxu0
        %v2054 = vpop.f32.mrf.mxu0
        %v2055 = vadd.f32 %v1660, %v2054
        %v2056 = vpop.f32.mrf.mxu0
        %2057 = vmatprep.mubr.bf16.mxu0 0
        %2058 = vmatmul.mubr.bf16.gmra.mxu0 %v1604
        %v2059 = vpop.f32.mrf.mxu0
        %v2060 = vadd.f32 %v1660, %v2059
        %v2061 = vpop.f32.mrf.mxu0
        %v2062 = vpop.f32.mrf.mxu0
        %v2063 = vadd.f32 %v1660, %v2062
        %v2064 = vpop.f32.mrf.mxu0
        %2065 = vmatprep.mubr.bf16.mxu0 0
        %2066 = vmatmul.mubr.bf16.gmra.mxu0 %v1605
        %v2067 = vpop.f32.mrf.mxu0
        %v2068 = vadd.f32 %v1660, %v2067
        %v2069 = vpop.f32.mrf.mxu0
        %v2070 = vpop.f32.mrf.mxu0
        %v2071 = vadd.f32 %v1660, %v2070
        %v2072 = vpop.f32.mrf.mxu0
        %2073 = vmatprep.mubr.bf16.mxu0 0
        %2074 = vmatmul.mubr.bf16.gmra.mxu0 %v1606
        %v2075 = vpop.f32.mrf.mxu0
        %v2076 = vadd.f32 %v1660, %v2075
        %v2077 = vpop.f32.mrf.mxu0
        %v2078 = vpop.f32.mrf.mxu0
        %v2079 = vadd.f32 %v1660, %v2078
        %v2080 = vpop.f32.mrf.mxu0
        %2081 = vmatprep.mubr.bf16.mxu0 0
        %2082 = vmatmul.mubr.bf16.gmra.mxu0 %v1607
        %v2083 = vpop.f32.mrf.mxu0
        %v2084 = vadd.f32 %v1660, %v2083
        %v2085 = vpop.f32.mrf.mxu0
        %v2086 = vpop.f32.mrf.mxu0
        %v2087 = vadd.f32 %v1660, %v2086
        %v2088 = vpop.f32.mrf.mxu0
        %2089 = vmatprep.mubr.bf16.mxu0 0
        %2090 = vmatmul.mubr.bf16.gmra.mxu0 %v1608
        %v2091 = vpop.f32.mrf.mxu0
        %v2092 = vadd.f32 %v1660, %v2091
        %v2093 = vpop.f32.mrf.mxu0
        %v2094 = vpop.f32.mrf.mxu0
        %v2095 = vadd.f32 %v1660, %v2094
        %v2096 = vpop.f32.mrf.mxu0
        %2097 = vmatprep.mubr.bf16.mxu0 0
        %2098 = vmatmul.mubr.bf16.gmra.mxu0 %v1609
        %v2099 = vpop.f32.mrf.mxu0
        %v2100 = vadd.f32 %v1660, %v2099
        %v2101 = vpop.f32.mrf.mxu0
        %v2102 = vpop.f32.mrf.mxu0
        %v2103 = vadd.f32 %v1660, %v2102
        %v2104 = vpop.f32.mrf.mxu0
        %2105 = vmatprep.mubr.bf16.mxu0 0
        %2106 = vmatmul.mubr.bf16.gmra.mxu0 %v1610
        %v2107 = vpop.f32.mrf.mxu0
        %v2108 = vadd.f32 %v1660, %v2107
        %v2109 = vpop.f32.mrf.mxu0
        %v2110 = vpop.f32.mrf.mxu0
        %v2111 = vadd.f32 %v1660, %v2110
        %v2112 = vpop.f32.mrf.mxu0
        %2113 = vmatprep.mubr.bf16.mxu0 0
        %2114 = vmatmul.mubr.bf16.gmra.mxu0 %v1611
        %v2115 = vpop.f32.mrf.mxu0
        %v2116 = vadd.f32 %v1660, %v2115
        %v2117 = vpop.f32.mrf.mxu0
        %v2118 = vpop.f32.mrf.mxu0
        %v2119 = vadd.f32 %v1660, %v2118
        %v2120 = vpop.f32.mrf.mxu0
        %2121 = vmatprep.mubr.bf16.mxu0 0
        %2122 = vmatmul.mubr.bf16.gmra.mxu0 %v1612
        %v2123 = vpop.f32.mrf.mxu0
        %v2124 = vadd.f32 %v1660, %v2123
        %v2125 = vpop.f32.mrf.mxu0
        %v2126 = vpop.f32.mrf.mxu0
        %v2127 = vadd.f32 %v1660, %v2126
        %v2128 = vpop.f32.mrf.mxu0
        %2129 = vmatprep.mubr.bf16.mxu0 0
        %2130 = vmatmul.mubr.bf16.gmra.mxu0 %v1613
        %v2131 = vpop.f32.mrf.mxu0
        %v2132 = vadd.f32 %v1660, %v2131
        %v2133 = vpop.f32.mrf.mxu0
        %v2134 = vpop.f32.mrf.mxu0
        %v2135 = vadd.f32 %v1660, %v2134
        %v2136 = vpop.f32.mrf.mxu0
        %2137 = vmatprep.mubr.bf16.mxu0 0
        %2138 = vmatmul.mubr.bf16.gmra.mxu0 %v1614
        %v2139 = vpop.f32.mrf.mxu0
        %v2140 = vadd.f32 %v1660, %v2139
        %v2141 = vpop.f32.mrf.mxu0
        %v2142 = vpop.f32.mrf.mxu0
        %v2143 = vadd.f32 %v1660, %v2142
        %v2144 = vpop.f32.mrf.mxu0
        %2145 = vdwg.mxu0
        %v2146 = vld [vmem:[#allocation10] sm:$0xff]
        %v2147 = vld [vmem:[#allocation10 + $0x8] sm:$0xf]
        %v2148 = vld [vmem:[#allocation10 + $0xc] sm:$0xff]
        %v2149 = vld [vmem:[#allocation10 + $0x14] sm:$0xf]
        %v2150 = vld [vmem:[#allocation10 + $0x18] sm:$0xff]
        %v2151 = vld [vmem:[#allocation10 + $0x20] sm:$0xf]
        %v2152 = vld [vmem:[#allocation10 + $0x24] sm:$0xff]
        %v2153 = vld [vmem:[#allocation10 + $0x2c] sm:$0xf]
        %v2154 = vld [vmem:[#allocation10 + $0x30] sm:$0xff]
        %v2155 = vld [vmem:[#allocation10 + $0x38] sm:$0xf]
        %v2156 = vld [vmem:[#allocation10 + $0x3c] sm:$0xff]
        %v2157 = vld [vmem:[#allocation10 + $0x44] sm:$0xf]
        %v2158 = vld [vmem:[#allocation10 + $0x48] sm:$0xff]
        %v2159 = vld [vmem:[#allocation10 + $0x50] sm:$0xf]
        %v2160 = vld [vmem:[#allocation10 + $0x54] sm:$0xff]
        %v2161 = vld [vmem:[#allocation10 + $0x5c] sm:$0xf]
        %v2162 = vld [vmem:[#allocation10 + $0x60] sm:$0xff]
        %v2163 = vld [vmem:[#allocation10 + $0x68] sm:$0xf]
        %v2164 = vld [vmem:[#allocation10 + $0x6c] sm:$0xff]
        %v2165 = vld [vmem:[#allocation10 + $0x74] sm:$0xf]
        %v2166 = vld [vmem:[#allocation10 + $0x78] sm:$0xff]
        %v2167 = vld [vmem:[#allocation10 + $0x80] sm:$0xf]
        %v2168 = vld [vmem:[#allocation10 + $0x84] sm:$0xff]
        %v2169 = vld [vmem:[#allocation10 + $0x8c] sm:$0xf]
        %v2170 = vld [vmem:[#allocation10 + $0x90] sm:$0xff]
        %v2171 = vld [vmem:[#allocation10 + $0x98] sm:$0xf]
        %v2172 = vld [vmem:[#allocation10 + $0x9c] sm:$0xff]
        %v2173 = vld [vmem:[#allocation10 + $0xa4] sm:$0xf]
        %v2174 = vld [vmem:[#allocation10 + $0xa8] sm:$0xff]
        %v2175 = vld [vmem:[#allocation10 + $0xb0] sm:$0xf]
        %v2176 = vld [vmem:[#allocation10 + $0xb4] sm:$0xff]
        %v2177 = vld [vmem:[#allocation10 + $0xbc] sm:$0xf]
        %v2178 = vld [vmem:[%s6] sm:$0x7]
        %v2180 = vlaneseq
        %v2181 = vshrl.u32 %v2180, 7
        %v2182 = vsub.s32 0, %v2181
        %v2183 = vrot.slane %v2178, %v2182
        %v2184 = vlaneseq
        %v2185 = vshrl.u32 %v2184, 7
        %v2186 = vsub.s32 1, %v2185
        %v2187 = vrot.slane %v2178, %v2186
        %v2188 = vlaneseq
        %v2189 = vshrl.u32 %v2188, 7
        %v2190 = vsub.s32 2, %v2189
        %v2191 = vrot.slane %v2178, %v2190
        %v2227 = vunpack.c.l.b16 %v1567
        %v2228 = vunpack.c.l.b16 %v1568
        %v2229 = vunpack.c.l.b16 %v1569
        %v2230 = vunpack.c.l.b16 %v1570
        %v2231 = vunpack.c.l.b16 %v1571
        %v2232 = vunpack.c.l.b16 %v1572
        %v2233 = vunpack.c.l.b16 %v1573
        %v2234 = vunpack.c.l.b16 %v1574
        %v2235 = vunpack.c.l.b16 %v1575
        %v2236 = vunpack.c.l.b16 %v1576
        %v2237 = vunpack.c.l.b16 %v1577
        %v2238 = vunpack.c.l.b16 %v1578
        %v2239 = vunpack.c.l.b16 %v1579
        %v2240 = vunpack.c.l.b16 %v1580
        %v2241 = vunpack.c.l.b16 %v1581
        %v2242 = vunpack.c.l.b16 %v1582
        %v2243 = vunpack.c.l.b16 %v1583
        %v2244 = vunpack.c.l.b16 %v1584
        %v2245 = vunpack.c.l.b16 %v1585
        %v2246 = vunpack.c.l.b16 %v1586
        %v2247 = vunpack.c.l.b16 %v1587
        %v2248 = vunpack.c.l.b16 %v1588
        %v2249 = vunpack.c.l.b16 %v1589
        %v2250 = vunpack.c.l.b16 %v1590
        %v2251 = vunpack.c.l.b16 %v1591
        %v2252 = vunpack.c.l.b16 %v1592
        %v2253 = vunpack.c.l.b16 %v1593
        %v2254 = vunpack.c.l.b16 %v1594
        %v2255 = vunpack.c.l.b16 %v1595
        %v2256 = vunpack.c.l.b16 %v1596
        %v2257 = vunpack.c.l.b16 %v1597
        %v2258 = vunpack.c.l.b16 %v1598
        %v2259 = vpack.c.b16 %v2228, %v2227
        %v2260 = vpack.c.b16 %v2230, %v2229
        %v2261 = vpack.c.b16 %v2232, %v2231
        %v2262 = vpack.c.b16 %v2234, %v2233
        %v2263 = vpack.c.b16 %v2236, %v2235
        %v2264 = vpack.c.b16 %v2238, %v2237
        %v2265 = vpack.c.b16 %v2240, %v2239
        %v2266 = vpack.c.b16 %v2242, %v2241
        %v2267 = vpack.c.b16 %v2244, %v2243
        %v2268 = vpack.c.b16 %v2246, %v2245
        %v2269 = vpack.c.b16 %v2248, %v2247
        %v2270 = vpack.c.b16 %v2250, %v2249
        %v2271 = vpack.c.b16 %v2252, %v2251
        %v2272 = vpack.c.b16 %v2254, %v2253
        %v2273 = vpack.c.b16 %v2256, %v2255
        %v2274 = vpack.c.b16 %v2258, %v2257
        %v2323 = vunpack.c.l.b16 %v2146
        %v2324 = vunpack.c.h.b16 %v2146
        %v2325 = vunpack.c.l.b16 %v2147
        %v2326 = vunpack.c.l.b16 %v2148
        %v2327 = vunpack.c.h.b16 %v2148
        %v2328 = vunpack.c.l.b16 %v2149
        %v2329 = vunpack.c.l.b16 %v2150
        %v2330 = vunpack.c.h.b16 %v2150
        %v2331 = vunpack.c.l.b16 %v2151
        %v2332 = vunpack.c.l.b16 %v2152
        %v2333 = vunpack.c.h.b16 %v2152
        %v2334 = vunpack.c.l.b16 %v2153
        %v2335 = vunpack.c.l.b16 %v2154
        %v2336 = vunpack.c.h.b16 %v2154
        %v2337 = vunpack.c.l.b16 %v2155
        %v2338 = vunpack.c.l.b16 %v2156
        %v2339 = vunpack.c.h.b16 %v2156
        %v2340 = vunpack.c.l.b16 %v2157
        %v2341 = vunpack.c.l.b16 %v2158
        %v2342 = vunpack.c.h.b16 %v2158
        %v2343 = vunpack.c.l.b16 %v2159
        %v2344 = vunpack.c.l.b16 %v2160
        %v2345 = vunpack.c.h.b16 %v2160
        %v2346 = vunpack.c.l.b16 %v2161
        %v2347 = vunpack.c.l.b16 %v2162
        %v2348 = vunpack.c.h.b16 %v2162
        %v2349 = vunpack.c.l.b16 %v2163
        %v2350 = vunpack.c.l.b16 %v2164
        %v2351 = vunpack.c.h.b16 %v2164
        %v2352 = vunpack.c.l.b16 %v2165
        %v2353 = vunpack.c.l.b16 %v2166
        %v2354 = vunpack.c.h.b16 %v2166
        %v2355 = vunpack.c.l.b16 %v2167
        %v2356 = vunpack.c.l.b16 %v2168
        %v2357 = vunpack.c.h.b16 %v2168
        %v2358 = vunpack.c.l.b16 %v2169
        %v2359 = vunpack.c.l.b16 %v2170
        %v2360 = vunpack.c.h.b16 %v2170
        %v2361 = vunpack.c.l.b16 %v2171
        %v2362 = vunpack.c.l.b16 %v2172
        %v2363 = vunpack.c.h.b16 %v2172
        %v2364 = vunpack.c.l.b16 %v2173
        %v2365 = vunpack.c.l.b16 %v2174
        %v2366 = vunpack.c.h.b16 %v2174
        %v2367 = vunpack.c.l.b16 %v2175
        %v2368 = vunpack.c.l.b16 %v2176
        %v2369 = vunpack.c.h.b16 %v2176
        %v2370 = vunpack.c.l.b16 %v2177
        %v2371 = vpack.c.b16 %v2326, %v2323
        %v2372 = vpack.c.b16 %v2327, %v2324
        %v2373 = vpack.c.b16 %v2328, %v2325
        %v2374 = vpack.c.b16 %v2332, %v2329
        %v2375 = vpack.c.b16 %v2333, %v2330
        %v2376 = vpack.c.b16 %v2334, %v2331
        %v2377 = vpack.c.b16 %v2338, %v2335
        %v2378 = vpack.c.b16 %v2339, %v2336
        %v2379 = vpack.c.b16 %v2340, %v2337
        %v2380 = vpack.c.b16 %v2344, %v2341
        %v2381 = vpack.c.b16 %v2345, %v2342
        %v2382 = vpack.c.b16 %v2346, %v2343
        %v2383 = vpack.c.b16 %v2350, %v2347
        %v2384 = vpack.c.b16 %v2351, %v2348
        %v2385 = vpack.c.b16 %v2352, %v2349
        %v2386 = vpack.c.b16 %v2356, %v2353
        %v2387 = vpack.c.b16 %v2357, %v2354
        %v2388 = vpack.c.b16 %v2358, %v2355
        %v2389 = vpack.c.b16 %v2362, %v2359
        %v2390 = vpack.c.b16 %v2363, %v2360
        %v2391 = vpack.c.b16 %v2364, %v2361
        %v2392 = vpack.c.b16 %v2368, %v2365
        %v2393 = vpack.c.b16 %v2369, %v2366
        %v2394 = vpack.c.b16 %v2370, %v2367
        %2419 = vmatprep.subr.bf16.mxu0 %v2393
        %2420 = vmatpush1.bf16.msra.mxu0 %v2392
        %2421 = vmatprep.subr.bf16.mxu0 %v2390
        %2422 = vmatpush1.bf16.msra.mxu0 %v2389
        %2423 = vmatprep.subr.bf16.mxu0 %v2387
        %2424 = vmatpush1.bf16.msra.mxu0 %v2386
        %2425 = vmatprep.subr.bf16.mxu0 %v2384
        %2426 = vmatpush1.bf16.msra.mxu0 %v2383
        %2427 = vmatprep.subr.bf16.mxu0 %v2381
        %2428 = vmatpush1.bf16.msra.mxu0 %v2380
        %2429 = vmatprep.subr.bf16.mxu0 %v2378
        %2430 = vmatpush1.bf16.msra.mxu0 %v2377
        %2431 = vmatprep.subr.bf16.mxu0 %v2375
        %2432 = vmatpush1.bf16.msra.mxu0 %v2374
        %2433 = vmatprep.subr.bf16.mxu0 %v2372
        %2434 = vmatpush1.bf16.msra.mxu0 %v2371
        %2435 = vmatprep.subr.bf16.mxu0 0
        %2436 = vmatpush2.bf16.msra.mxu0 0
        %2437 = vmatprep.subr.bf16.mxu0 0
        %2438 = vmatpush2.bf16.msra.mxu0 0
        %2439 = vmatprep.subr.bf16.mxu0 0
        %2440 = vmatpush2.bf16.msra.mxu0 0
        %2441 = vmatprep.subr.bf16.mxu0 0
        %2442 = vmatpush2.bf16.msra.mxu0 0
        %2443 = vmatprep.subr.bf16.mxu0 0
        %2444 = vmatpush2.bf16.msra.mxu0 0
        %2445 = vmatprep.subr.bf16.mxu0 0
        %2446 = vmatpush2.bf16.msra.mxu0 0
        %2447 = vmatprep.subr.bf16.mxu0 0
        %2448 = vmatpush2.bf16.msra.mxu0 0
        %2449 = vmatprep.subr.bf16.mxu0 0
        %2450 = vmatpush2.bf16.msra.mxu0 0
        %2451 = vmatprep.mubr.bf16.mxu0 0
        %2452 = vmatmul.mubr.bf16.gmra.mxu0 %v2259
        %v2453 = vpop.f32.mrf.mxu0
        %v2454 = vadd.f32 %v2183, %v2453
        %v2455 = vpop.f32.mrf.mxu0
        %v2456 = vadd.f32 %v2187, %v2455
        %v2457 = vpop.f32.mrf.mxu0
        %v2458 = vadd.f32 %v2183, %v2457
        %v2459 = vpop.f32.mrf.mxu0
        %v2460 = vadd.f32 %v2187, %v2459
        %2461 = vmatprep.mubr.bf16.mxu0 0
        %2462 = vmatmul.mubr.bf16.gmra.mxu0 %v2260
        %v2463 = vpop.f32.mrf.mxu0
        %v2464 = vadd.f32 %v2183, %v2463
        %v2465 = vpop.f32.mrf.mxu0
        %v2466 = vadd.f32 %v2187, %v2465
        %v2467 = vpop.f32.mrf.mxu0
        %v2468 = vadd.f32 %v2183, %v2467
        %v2469 = vpop.f32.mrf.mxu0
        %v2470 = vadd.f32 %v2187, %v2469
        %2471 = vmatprep.mubr.bf16.mxu0 0
        %2472 = vmatmul.mubr.bf16.gmra.mxu0 %v2261
        %v2473 = vpop.f32.mrf.mxu0
        %v2474 = vadd.f32 %v2183, %v2473
        %v2475 = vpop.f32.mrf.mxu0
        %v2476 = vadd.f32 %v2187, %v2475
        %v2477 = vpop.f32.mrf.mxu0
        %v2478 = vadd.f32 %v2183, %v2477
        %v2479 = vpop.f32.mrf.mxu0
        %v2480 = vadd.f32 %v2187, %v2479
        %2481 = vmatprep.mubr.bf16.mxu0 0
        %2482 = vmatmul.mubr.bf16.gmra.mxu0 %v2262
        %v2483 = vpop.f32.mrf.mxu0
        %v2484 = vadd.f32 %v2183, %v2483
        %v2485 = vpop.f32.mrf.mxu0
        %v2486 = vadd.f32 %v2187, %v2485
        %v2487 = vpop.f32.mrf.mxu0
        %v2488 = vadd.f32 %v2183, %v2487
        %v2489 = vpop.f32.mrf.mxu0
        %v2490 = vadd.f32 %v2187, %v2489
        %2491 = vmatprep.mubr.bf16.mxu0 0
        %2492 = vmatmul.mubr.bf16.gmra.mxu0 %v2263
        %v2493 = vpop.f32.mrf.mxu0
        %v2494 = vadd.f32 %v2183, %v2493
        %v2495 = vpop.f32.mrf.mxu0
        %v2496 = vadd.f32 %v2187, %v2495
        %v2497 = vpop.f32.mrf.mxu0
        %v2498 = vadd.f32 %v2183, %v2497
        %v2499 = vpop.f32.mrf.mxu0
        %v2500 = vadd.f32 %v2187, %v2499
        %2501 = vmatprep.mubr.bf16.mxu0 0
        %2502 = vmatmul.mubr.bf16.gmra.mxu0 %v2264
        %v2503 = vpop.f32.mrf.mxu0
        %v2504 = vadd.f32 %v2183, %v2503
        %v2505 = vpop.f32.mrf.mxu0
        %v2506 = vadd.f32 %v2187, %v2505
        %v2507 = vpop.f32.mrf.mxu0
        %v2508 = vadd.f32 %v2183, %v2507
        %v2509 = vpop.f32.mrf.mxu0
        %v2510 = vadd.f32 %v2187, %v2509
        %2511 = vmatprep.mubr.bf16.mxu0 0
        %2512 = vmatmul.mubr.bf16.gmra.mxu0 %v2265
        %v2513 = vpop.f32.mrf.mxu0
        %v2514 = vadd.f32 %v2183, %v2513
        %v2515 = vpop.f32.mrf.mxu0
        %v2516 = vadd.f32 %v2187, %v2515
        %v2517 = vpop.f32.mrf.mxu0
        %v2518 = vadd.f32 %v2183, %v2517
        %v2519 = vpop.f32.mrf.mxu0
        %v2520 = vadd.f32 %v2187, %v2519
        %2521 = vmatprep.mubr.bf16.mxu0 0
        %2522 = vmatmul.mubr.bf16.gmra.mxu0 %v2266
        %v2523 = vpop.f32.mrf.mxu0
        %v2524 = vadd.f32 %v2183, %v2523
        %v2525 = vpop.f32.mrf.mxu0
        %v2526 = vadd.f32 %v2187, %v2525
        %v2527 = vpop.f32.mrf.mxu0
        %v2528 = vadd.f32 %v2183, %v2527
        %v2529 = vpop.f32.mrf.mxu0
        %v2530 = vadd.f32 %v2187, %v2529
        %2531 = vmatprep.mubr.bf16.mxu0 0
        %2532 = vmatmul.mubr.bf16.gmra.mxu0 %v2267
        %v2533 = vpop.f32.mrf.mxu0
        %v2534 = vadd.f32 %v2183, %v2533
        %v2535 = vpop.f32.mrf.mxu0
        %v2536 = vadd.f32 %v2187, %v2535
        %v2537 = vpop.f32.mrf.mxu0
        %v2538 = vadd.f32 %v2183, %v2537
        %v2539 = vpop.f32.mrf.mxu0
        %v2540 = vadd.f32 %v2187, %v2539
        %2541 = vmatprep.mubr.bf16.mxu0 0
        %2542 = vmatmul.mubr.bf16.gmra.mxu0 %v2268
        %v2543 = vpop.f32.mrf.mxu0
        %v2544 = vadd.f32 %v2183, %v2543
        %v2545 = vpop.f32.mrf.mxu0
        %v2546 = vadd.f32 %v2187, %v2545
        %v2547 = vpop.f32.mrf.mxu0
        %v2548 = vadd.f32 %v2183, %v2547
        %v2549 = vpop.f32.mrf.mxu0
        %v2550 = vadd.f32 %v2187, %v2549
        %2551 = vmatprep.mubr.bf16.mxu0 0
        %2552 = vmatmul.mubr.bf16.gmra.mxu0 %v2269
        %v2553 = vpop.f32.mrf.mxu0
        %v2554 = vadd.f32 %v2183, %v2553
        %v2555 = vpop.f32.mrf.mxu0
        %v2556 = vadd.f32 %v2187, %v2555
        %v2557 = vpop.f32.mrf.mxu0
        %v2558 = vadd.f32 %v2183, %v2557
        %v2559 = vpop.f32.mrf.mxu0
        %v2560 = vadd.f32 %v2187, %v2559
        %2561 = vmatprep.mubr.bf16.mxu0 0
        %2562 = vmatmul.mubr.bf16.gmra.mxu0 %v2270
        %v2563 = vpop.f32.mrf.mxu0
        %v2564 = vadd.f32 %v2183, %v2563
        %v2565 = vpop.f32.mrf.mxu0
        %v2566 = vadd.f32 %v2187, %v2565
        %v2567 = vpop.f32.mrf.mxu0
        %v2568 = vadd.f32 %v2183, %v2567
        %v2569 = vpop.f32.mrf.mxu0
        %v2570 = vadd.f32 %v2187, %v2569
        %2571 = vmatprep.mubr.bf16.mxu0 0
        %2572 = vmatmul.mubr.bf16.gmra.mxu0 %v2271
        %v2573 = vpop.f32.mrf.mxu0
        %v2574 = vadd.f32 %v2183, %v2573
        %v2575 = vpop.f32.mrf.mxu0
        %v2576 = vadd.f32 %v2187, %v2575
        %v2577 = vpop.f32.mrf.mxu0
        %v2578 = vadd.f32 %v2183, %v2577
        %v2579 = vpop.f32.mrf.mxu0
        %v2580 = vadd.f32 %v2187, %v2579
        %2581 = vmatprep.mubr.bf16.mxu0 0
        %2582 = vmatmul.mubr.bf16.gmra.mxu0 %v2272
        %v2583 = vpop.f32.mrf.mxu0
        %v2584 = vadd.f32 %v2183, %v2583
        %v2585 = vpop.f32.mrf.mxu0
        %v2586 = vadd.f32 %v2187, %v2585
        %v2587 = vpop.f32.mrf.mxu0
        %v2588 = vadd.f32 %v2183, %v2587
        %v2589 = vpop.f32.mrf.mxu0
        %v2590 = vadd.f32 %v2187, %v2589
        %2591 = vmatprep.mubr.bf16.mxu0 0
        %2592 = vmatmul.mubr.bf16.gmra.mxu0 %v2273
        %v2593 = vpop.f32.mrf.mxu0
        %v2594 = vadd.f32 %v2183, %v2593
        %v2595 = vpop.f32.mrf.mxu0
        %v2596 = vadd.f32 %v2187, %v2595
        %v2597 = vpop.f32.mrf.mxu0
        %v2598 = vadd.f32 %v2183, %v2597
        %v2599 = vpop.f32.mrf.mxu0
        %v2600 = vadd.f32 %v2187, %v2599
        %2601 = vmatprep.mubr.bf16.mxu0 0
        %2602 = vmatmul.mubr.bf16.gmra.mxu0 %v2274
        %v2603 = vpop.f32.mrf.mxu0
        %v2604 = vadd.f32 %v2183, %v2603
        %v2605 = vpop.f32.mrf.mxu0
        %v2606 = vadd.f32 %v2187, %v2605
        %v2607 = vpop.f32.mrf.mxu0
        %v2608 = vadd.f32 %v2183, %v2607
        %v2609 = vpop.f32.mrf.mxu0
        %v2610 = vadd.f32 %v2187, %v2609
        %2611 = vdwg.mxu0
        %2612 = vmatprep.subr.bf16.mxu0 0
        %2613 = vmatpush1.bf16.msra.mxu0 %v2394
        %2614 = vmatprep.subr.bf16.mxu0 0
        %2615 = vmatpush1.bf16.msra.mxu0 %v2391
        %2616 = vmatprep.subr.bf16.mxu0 0
        %2617 = vmatpush1.bf16.msra.mxu0 %v2388
        %2618 = vmatprep.subr.bf16.mxu0 0
        %2619 = vmatpush1.bf16.msra.mxu0 %v2385
        %2620 = vmatprep.subr.bf16.mxu0 0
        %2621 = vmatpush1.bf16.msra.mxu0 %v2382
        %2622 = vmatprep.subr.bf16.mxu0 0
        %2623 = vmatpush1.bf16.msra.mxu0 %v2379
        %2624 = vmatprep.subr.bf16.mxu0 0
        %2625 = vmatpush1.bf16.msra.mxu0 %v2376
        %2626 = vmatprep.subr.bf16.mxu0 0
        %2627 = vmatpush1.bf16.msra.mxu0 %v2373
        %2628 = vmatprep.subr.bf16.mxu0 0
        %2629 = vmatpush2.bf16.msra.mxu0 0
        %2630 = vmatprep.subr.bf16.mxu0 0
        %2631 = vmatpush2.bf16.msra.mxu0 0
        %2632 = vmatprep.subr.bf16.mxu0 0
        %2633 = vmatpush2.bf16.msra.mxu0 0
        %2634 = vmatprep.subr.bf16.mxu0 0
        %2635 = vmatpush2.bf16.msra.mxu0 0
        %2636 = vmatprep.subr.bf16.mxu0 0
        %2637 = vmatpush2.bf16.msra.mxu0 0
        %2638 = vmatprep.subr.bf16.mxu0 0
        %2639 = vmatpush2.bf16.msra.mxu0 0
        %2640 = vmatprep.subr.bf16.mxu0 0
        %2641 = vmatpush2.bf16.msra.mxu0 0
        %2642 = vmatprep.subr.bf16.mxu0 0
        %2643 = vmatpush2.bf16.msra.mxu0 0
        %2644 = vmatprep.mubr.bf16.mxu0 0
        %2645 = vmatmul.mubr.bf16.gmra.mxu0 %v2259
        %v2646 = vpop.f32.mrf.mxu0
        %v2647 = vadd.f32 %v2191, %v2646
        %v2648 = vpop.f32.mrf.mxu0
        %v2649 = vpop.f32.mrf.mxu0
        %v2650 = vadd.f32 %v2191, %v2649
        %v2651 = vpop.f32.mrf.mxu0
        %2652 = vmatprep.mubr.bf16.mxu0 0
        %2653 = vmatmul.mubr.bf16.gmra.mxu0 %v2260
        %v2654 = vpop.f32.mrf.mxu0
        %v2655 = vadd.f32 %v2191, %v2654
        %v2656 = vpop.f32.mrf.mxu0
        %v2657 = vpop.f32.mrf.mxu0
        %v2658 = vadd.f32 %v2191, %v2657
        %v2659 = vpop.f32.mrf.mxu0
        %2660 = vmatprep.mubr.bf16.mxu0 0
        %2661 = vmatmul.mubr.bf16.gmra.mxu0 %v2261
        %v2662 = vpop.f32.mrf.mxu0
        %v2663 = vadd.f32 %v2191, %v2662
        %v2664 = vpop.f32.mrf.mxu0
        %v2665 = vpop.f32.mrf.mxu0
        %v2666 = vadd.f32 %v2191, %v2665
        %v2667 = vpop.f32.mrf.mxu0
        %2668 = vmatprep.mubr.bf16.mxu0 0
        %2669 = vmatmul.mubr.bf16.gmra.mxu0 %v2262
        %v2670 = vpop.f32.mrf.mxu0
        %v2671 = vadd.f32 %v2191, %v2670
        %v2672 = vpop.f32.mrf.mxu0
        %v2673 = vpop.f32.mrf.mxu0
        %v2674 = vadd.f32 %v2191, %v2673
        %v2675 = vpop.f32.mrf.mxu0
        %2676 = vmatprep.mubr.bf16.mxu0 0
        %2677 = vmatmul.mubr.bf16.gmra.mxu0 %v2263
        %v2678 = vpop.f32.mrf.mxu0
        %v2679 = vadd.f32 %v2191, %v2678
        %v2680 = vpop.f32.mrf.mxu0
        %v2681 = vpop.f32.mrf.mxu0
        %v2682 = vadd.f32 %v2191, %v2681
        %v2683 = vpop.f32.mrf.mxu0
        %2684 = vmatprep.mubr.bf16.mxu0 0
        %2685 = vmatmul.mubr.bf16.gmra.mxu0 %v2264
        %v2686 = vpop.f32.mrf.mxu0
        %v2687 = vadd.f32 %v2191, %v2686
        %v2688 = vpop.f32.mrf.mxu0
        %v2689 = vpop.f32.mrf.mxu0
        %v2690 = vadd.f32 %v2191, %v2689
        %v2691 = vpop.f32.mrf.mxu0
        %2692 = vmatprep.mubr.bf16.mxu0 0
        %2693 = vmatmul.mubr.bf16.gmra.mxu0 %v2265
        %v2694 = vpop.f32.mrf.mxu0
        %v2695 = vadd.f32 %v2191, %v2694
        %v2696 = vpop.f32.mrf.mxu0
        %v2697 = vpop.f32.mrf.mxu0
        %v2698 = vadd.f32 %v2191, %v2697
        %v2699 = vpop.f32.mrf.mxu0
        %2700 = vmatprep.mubr.bf16.mxu0 0
        %2701 = vmatmul.mubr.bf16.gmra.mxu0 %v2266
        %v2702 = vpop.f32.mrf.mxu0
        %v2703 = vadd.f32 %v2191, %v2702
        %v2704 = vpop.f32.mrf.mxu0
        %v2705 = vpop.f32.mrf.mxu0
        %v2706 = vadd.f32 %v2191, %v2705
        %v2707 = vpop.f32.mrf.mxu0
        %2708 = vmatprep.mubr.bf16.mxu0 0
        %2709 = vmatmul.mubr.bf16.gmra.mxu0 %v2267
        %v2710 = vpop.f32.mrf.mxu0
        %v2711 = vadd.f32 %v2191, %v2710
        %v2712 = vpop.f32.mrf.mxu0
        %v2713 = vpop.f32.mrf.mxu0
        %v2714 = vadd.f32 %v2191, %v2713
        %v2715 = vpop.f32.mrf.mxu0
        %2716 = vmatprep.mubr.bf16.mxu0 0
        %2717 = vmatmul.mubr.bf16.gmra.mxu0 %v2268
        %v2718 = vpop.f32.mrf.mxu0
        %v2719 = vadd.f32 %v2191, %v2718
        %v2720 = vpop.f32.mrf.mxu0
        %v2721 = vpop.f32.mrf.mxu0
        %v2722 = vadd.f32 %v2191, %v2721
        %v2723 = vpop.f32.mrf.mxu0
        %2724 = vmatprep.mubr.bf16.mxu0 0
        %2725 = vmatmul.mubr.bf16.gmra.mxu0 %v2269
        %v2726 = vpop.f32.mrf.mxu0
        %v2727 = vadd.f32 %v2191, %v2726
        %v2728 = vpop.f32.mrf.mxu0
        %v2729 = vpop.f32.mrf.mxu0
        %v2730 = vadd.f32 %v2191, %v2729
        %v2731 = vpop.f32.mrf.mxu0
        %2732 = vmatprep.mubr.bf16.mxu0 0
        %2733 = vmatmul.mubr.bf16.gmra.mxu0 %v2270
        %v2734 = vpop.f32.mrf.mxu0
        %v2735 = vadd.f32 %v2191, %v2734
        %v2736 = vpop.f32.mrf.mxu0
        %v2737 = vpop.f32.mrf.mxu0
        %v2738 = vadd.f32 %v2191, %v2737
        %v2739 = vpop.f32.mrf.mxu0
        %2740 = vmatprep.mubr.bf16.mxu0 0
        %2741 = vmatmul.mubr.bf16.gmra.mxu0 %v2271
        %v2742 = vpop.f32.mrf.mxu0
        %v2743 = vadd.f32 %v2191, %v2742
        %v2744 = vpop.f32.mrf.mxu0
        %v2745 = vpop.f32.mrf.mxu0
        %v2746 = vadd.f32 %v2191, %v2745
        %v2747 = vpop.f32.mrf.mxu0
        %2748 = vmatprep.mubr.bf16.mxu0 0
        %2749 = vmatmul.mubr.bf16.gmra.mxu0 %v2272
        %v2750 = vpop.f32.mrf.mxu0
        %v2751 = vadd.f32 %v2191, %v2750
        %v2752 = vpop.f32.mrf.mxu0
        %v2753 = vpop.f32.mrf.mxu0
        %v2754 = vadd.f32 %v2191, %v2753
        %v2755 = vpop.f32.mrf.mxu0
        %2756 = vmatprep.mubr.bf16.mxu0 0
        %2757 = vmatmul.mubr.bf16.gmra.mxu0 %v2273
        %v2758 = vpop.f32.mrf.mxu0
        %v2759 = vadd.f32 %v2191, %v2758
        %v2760 = vpop.f32.mrf.mxu0
        %v2761 = vpop.f32.mrf.mxu0
        %v2762 = vadd.f32 %v2191, %v2761
        %v2763 = vpop.f32.mrf.mxu0
        %2764 = vmatprep.mubr.bf16.mxu0 0
        %2765 = vmatmul.mubr.bf16.gmra.mxu0 %v2274
        %v2766 = vpop.f32.mrf.mxu0
        %v2767 = vadd.f32 %v2191, %v2766
        %v2768 = vpop.f32.mrf.mxu0
        %v2769 = vpop.f32.mrf.mxu0
        %v2770 = vadd.f32 %v2191, %v2769
        %v2771 = vpop.f32.mrf.mxu0
        %2772 = vdwg.mxu0
        %v2773 = vadd.f32 %v1827, %v2454
        %v2774 = vadd.f32 %v1831, %v2458
        %v2775 = vadd.f32 %v1837, %v2464
        %v2776 = vadd.f32 %v1841, %v2468
        %v2777 = vadd.f32 %v1847, %v2474
        %v2778 = vadd.f32 %v1851, %v2478
        %v2779 = vadd.f32 %v1857, %v2484
        %v2780 = vadd.f32 %v1861, %v2488
        %v2781 = vadd.f32 %v1867, %v2494
        %v2782 = vadd.f32 %v1871, %v2498
        %v2783 = vadd.f32 %v1877, %v2504
        %v2784 = vadd.f32 %v1881, %v2508
        %v2785 = vadd.f32 %v1887, %v2514
        %v2786 = vadd.f32 %v1891, %v2518
        %v2787 = vadd.f32 %v1897, %v2524
        %v2788 = vadd.f32 %v1901, %v2528
        %v2789 = vadd.f32 %v1907, %v2534
        %v2790 = vadd.f32 %v1911, %v2538
        %v2791 = vadd.f32 %v1917, %v2544
        %v2792 = vadd.f32 %v1921, %v2548
        %v2793 = vadd.f32 %v1927, %v2554
        %v2794 = vadd.f32 %v1931, %v2558
        %v2795 = vadd.f32 %v1937, %v2564
        %v2796 = vadd.f32 %v1941, %v2568
        %v2797 = vadd.f32 %v1947, %v2574
        %v2798 = vadd.f32 %v1951, %v2578
        %v2799 = vadd.f32 %v1957, %v2584
        %v2800 = vadd.f32 %v1961, %v2588
        %v2801 = vadd.f32 %v1967, %v2594
        %v2802 = vadd.f32 %v1971, %v2598
        %v2803 = vadd.f32 %v1977, %v2604
        %v2804 = vadd.f32 %v1981, %v2608
        %v2805 = vxor.u32 %v2773, 2147483648
        %v2806 = vxor.u32 %v2774, 2147483648
        %v2807 = vxor.u32 %v2775, 2147483648
        %v2808 = vxor.u32 %v2776, 2147483648
        %v2809 = vxor.u32 %v2777, 2147483648
        %v2810 = vxor.u32 %v2778, 2147483648
        %v2811 = vxor.u32 %v2779, 2147483648
        %v2812 = vxor.u32 %v2780, 2147483648
        %v2813 = vxor.u32 %v2781, 2147483648
        %v2814 = vxor.u32 %v2782, 2147483648
        %v2815 = vxor.u32 %v2783, 2147483648
        %v2816 = vxor.u32 %v2784, 2147483648
        %v2817 = vxor.u32 %v2785, 2147483648
        %v2818 = vxor.u32 %v2786, 2147483648
        %v2819 = vxor.u32 %v2787, 2147483648
        %v2820 = vxor.u32 %v2788, 2147483648
        %v2821 = vxor.u32 %v2789, 2147483648
        %v2822 = vxor.u32 %v2790, 2147483648
        %v2823 = vxor.u32 %v2791, 2147483648
        %v2824 = vxor.u32 %v2792, 2147483648
        %v2825 = vxor.u32 %v2793, 2147483648
        %v2826 = vxor.u32 %v2794, 2147483648
        %v2827 = vxor.u32 %v2795, 2147483648
        %v2828 = vxor.u32 %v2796, 2147483648
        %v2829 = vxor.u32 %v2797, 2147483648
        %v2830 = vxor.u32 %v2798, 2147483648
        %v2831 = vxor.u32 %v2799, 2147483648
        %v2832 = vxor.u32 %v2800, 2147483648
        %v2833 = vxor.u32 %v2801, 2147483648
        %v2834 = vxor.u32 %v2802, 2147483648
        %v2835 = vxor.u32 %v2803, 2147483648
        %v2836 = vxor.u32 %v2804, 2147483648
        %v2837 = vmul.f32 %v2805, 1.442695
        %v2838 = vpow.pop %v2837
        %v2839 = vmul.f32 %v2806, 1.442695
        %v2840 = vpow.pop %v2839
        %v2841 = vmul.f32 %v2807, 1.442695
        %v2842 = vpow.pop %v2841
        %v2843 = vmul.f32 %v2808, 1.442695
        %v2844 = vpow.pop %v2843
        %v2845 = vmul.f32 %v2809, 1.442695
        %v2846 = vpow.pop %v2845
        %v2847 = vmul.f32 %v2810, 1.442695
        %v2848 = vpow.pop %v2847
        %v2849 = vmul.f32 %v2811, 1.442695
        %v2850 = vpow.pop %v2849
        %v2851 = vmul.f32 %v2812, 1.442695
        %v2852 = vpow.pop %v2851
        %v2853 = vmul.f32 %v2813, 1.442695
        %v2854 = vpow.pop %v2853
        %v2855 = vmul.f32 %v2814, 1.442695
        %v2856 = vpow.pop %v2855
        %v2857 = vmul.f32 %v2815, 1.442695
        %v2858 = vpow.pop %v2857
        %v2859 = vmul.f32 %v2816, 1.442695
        %v2860 = vpow.pop %v2859
        %v2861 = vmul.f32 %v2817, 1.442695
        %v2862 = vpow.pop %v2861
        %v2863 = vmul.f32 %v2818, 1.442695
        %v2864 = vpow.pop %v2863
        %v2865 = vmul.f32 %v2819, 1.442695
        %v2866 = vpow.pop %v2865
        %v2867 = vmul.f32 %v2820, 1.442695
        %v2868 = vpow.pop %v2867
        %v2869 = vmul.f32 %v2821, 1.442695
        %v2870 = vpow.pop %v2869
        %v2871 = vmul.f32 %v2822, 1.442695
        %v2872 = vpow.pop %v2871
        %v2873 = vmul.f32 %v2823, 1.442695
        %v2874 = vpow.pop %v2873
        %v2875 = vmul.f32 %v2824, 1.442695
        %v2876 = vpow.pop %v2875
        %v2877 = vmul.f32 %v2825, 1.442695
        %v2878 = vpow.pop %v2877
        %v2879 = vmul.f32 %v2826, 1.442695
        %v2880 = vpow.pop %v2879
        %v2881 = vmul.f32 %v2827, 1.442695
        %v2882 = vpow.pop %v2881
        %v2883 = vmul.f32 %v2828, 1.442695
        %v2884 = vpow.pop %v2883
        %v2885 = vmul.f32 %v2829, 1.442695
        %v2886 = vpow.pop %v2885
        %v2887 = vmul.f32 %v2830, 1.442695
        %v2888 = vpow.pop %v2887
        %v2889 = vmul.f32 %v2831, 1.442695
        %v2890 = vpow.pop %v2889
        %v2891 = vmul.f32 %v2832, 1.442695
        %v2892 = vpow.pop %v2891
        %v2893 = vmul.f32 %v2833, 1.442695
        %v2894 = vpow.pop %v2893
        %v2895 = vmul.f32 %v2834, 1.442695
        %v2896 = vpow.pop %v2895
        %v2897 = vmul.f32 %v2835, 1.442695
        %v2898 = vpow.pop %v2897
        %v2899 = vmul.f32 %v2836, 1.442695
        %v2900 = vpow.pop %v2899
        %v2901 = vadd.f32 %v2838, 1.0
        %v2902 = vadd.f32 %v2840, 1.0
        %v2903 = vadd.f32 %v2842, 1.0
        %v2904 = vadd.f32 %v2844, 1.0
        %v2905 = vadd.f32 %v2846, 1.0
        %v2906 = vadd.f32 %v2848, 1.0
        %v2907 = vadd.f32 %v2850, 1.0
        %v2908 = vadd.f32 %v2852, 1.0
        %v2909 = vadd.f32 %v2854, 1.0
        %v2910 = vadd.f32 %v2856, 1.0
        %v2911 = vadd.f32 %v2858, 1.0
        %v2912 = vadd.f32 %v2860, 1.0
        %v2913 = vadd.f32 %v2862, 1.0
        %v2914 = vadd.f32 %v2864, 1.0
        %v2915 = vadd.f32 %v2866, 1.0
        %v2916 = vadd.f32 %v2868, 1.0
        %v2917 = vadd.f32 %v2870, 1.0
        %v2918 = vadd.f32 %v2872, 1.0
        %v2919 = vadd.f32 %v2874, 1.0
        %v2920 = vadd.f32 %v2876, 1.0
        %v2921 = vadd.f32 %v2878, 1.0
        %v2922 = vadd.f32 %v2880, 1.0
        %v2923 = vadd.f32 %v2882, 1.0
        %v2924 = vadd.f32 %v2884, 1.0
        %v2925 = vadd.f32 %v2886, 1.0
        %v2926 = vadd.f32 %v2888, 1.0
        %v2927 = vadd.f32 %v2890, 1.0
        %v2928 = vadd.f32 %v2892, 1.0
        %v2929 = vadd.f32 %v2894, 1.0
        %v2930 = vadd.f32 %v2896, 1.0
        %v2931 = vadd.f32 %v2898, 1.0
        %v2932 = vadd.f32 %v2900, 1.0
        %v2933 = vrcp.pop %v2901
        %v2934 = vmul.f32 1.0, %v2933
        %v2935 = vrcp.pop %v2902
        %v2936 = vmul.f32 1.0, %v2935
        %v2937 = vrcp.pop %v2903
        %v2938 = vmul.f32 1.0, %v2937
        %v2939 = vrcp.pop %v2904
        %v2940 = vmul.f32 1.0, %v2939
        %v2941 = vrcp.pop %v2905
        %v2942 = vmul.f32 1.0, %v2941
        %v2943 = vrcp.pop %v2906
        %v2944 = vmul.f32 1.0, %v2943
        %v2945 = vrcp.pop %v2907
        %v2946 = vmul.f32 1.0, %v2945
        %v2947 = vrcp.pop %v2908
        %v2948 = vmul.f32 1.0, %v2947
        %v2949 = vrcp.pop %v2909
        %v2950 = vmul.f32 1.0, %v2949
        %v2951 = vrcp.pop %v2910
        %v2952 = vmul.f32 1.0, %v2951
        %v2953 = vrcp.pop %v2911
        %v2954 = vmul.f32 1.0, %v2953
        %v2955 = vrcp.pop %v2912
        %v2956 = vmul.f32 1.0, %v2955
        %v2957 = vrcp.pop %v2913
        %v2958 = vmul.f32 1.0, %v2957
        %v2959 = vrcp.pop %v2914
        %v2960 = vmul.f32 1.0, %v2959
        %v2961 = vrcp.pop %v2915
        %v2962 = vmul.f32 1.0, %v2961
        %v2963 = vrcp.pop %v2916
        %v2964 = vmul.f32 1.0, %v2963
        %v2965 = vrcp.pop %v2917
        %v2966 = vmul.f32 1.0, %v2965
        %v2967 = vrcp.pop %v2918
        %v2968 = vmul.f32 1.0, %v2967
        %v2969 = vrcp.pop %v2919
        %v2970 = vmul.f32 1.0, %v2969
        %v2971 = vrcp.pop %v2920
        %v2972 = vmul.f32 1.0, %v2971
        %v2973 = vrcp.pop %v2921
        %v2974 = vmul.f32 1.0, %v2973
        %v2975 = vrcp.pop %v2922
        %v2976 = vmul.f32 1.0, %v2975
        %v2977 = vrcp.pop %v2923
        %v2978 = vmul.f32 1.0, %v2977
        %v2979 = vrcp.pop %v2924
        %v2980 = vmul.f32 1.0, %v2979
        %v2981 = vrcp.pop %v2925
        %v2982 = vmul.f32 1.0, %v2981
        %v2983 = vrcp.pop %v2926
        %v2984 = vmul.f32 1.0, %v2983
        %v2985 = vrcp.pop %v2927
        %v2986 = vmul.f32 1.0, %v2985
        %v2987 = vrcp.pop %v2928
        %v2988 = vmul.f32 1.0, %v2987
        %v2989 = vrcp.pop %v2929
        %v2990 = vmul.f32 1.0, %v2989
        %v2991 = vrcp.pop %v2930
        %v2992 = vmul.f32 1.0, %v2991
        %v2993 = vrcp.pop %v2931
        %v2994 = vmul.f32 1.0, %v2993
        %v2995 = vrcp.pop %v2932
        %v2996 = vmul.f32 1.0, %v2995
        %v2997 = vadd.f32 %v1829, %v2456
        %v2998 = vadd.f32 %v1833, %v2460
        %v2999 = vadd.f32 %v1839, %v2466
        %v3000 = vadd.f32 %v1843, %v2470
        %v3001 = vadd.f32 %v1849, %v2476
        %v3002 = vadd.f32 %v1853, %v2480
        %v3003 = vadd.f32 %v1859, %v2486
        %v3004 = vadd.f32 %v1863, %v2490
        %v3005 = vadd.f32 %v1869, %v2496
        %v3006 = vadd.f32 %v1873, %v2500
        %v3007 = vadd.f32 %v1879, %v2506
        %v3008 = vadd.f32 %v1883, %v2510
        %v3009 = vadd.f32 %v1889, %v2516
        %v3010 = vadd.f32 %v1893, %v2520
        %v3011 = vadd.f32 %v1899, %v2526
        %v3012 = vadd.f32 %v1903, %v2530
        %v3013 = vadd.f32 %v1909, %v2536
        %v3014 = vadd.f32 %v1913, %v2540
        %v3015 = vadd.f32 %v1919, %v2546
        %v3016 = vadd.f32 %v1923, %v2550
        %v3017 = vadd.f32 %v1929, %v2556
        %v3018 = vadd.f32 %v1933, %v2560
        %v3019 = vadd.f32 %v1939, %v2566
        %v3020 = vadd.f32 %v1943, %v2570
        %v3021 = vadd.f32 %v1949, %v2576
        %v3022 = vadd.f32 %v1953, %v2580
        %v3023 = vadd.f32 %v1959, %v2586
        %v3024 = vadd.f32 %v1963, %v2590
        %v3025 = vadd.f32 %v1969, %v2596
        %v3026 = vadd.f32 %v1973, %v2600
        %v3027 = vadd.f32 %v1979, %v2606
        %v3028 = vadd.f32 %v1983, %v2610
        %v3029 = vxor.u32 %v2997, 2147483648
        %v3030 = vxor.u32 %v2998, 2147483648
        %v3031 = vxor.u32 %v2999, 2147483648
        %v3032 = vxor.u32 %v3000, 2147483648
        %v3033 = vxor.u32 %v3001, 2147483648
        %v3034 = vxor.u32 %v3002, 2147483648
        %v3035 = vxor.u32 %v3003, 2147483648
        %v3036 = vxor.u32 %v3004, 2147483648
        %v3037 = vxor.u32 %v3005, 2147483648
        %v3038 = vxor.u32 %v3006, 2147483648
        %v3039 = vxor.u32 %v3007, 2147483648
        %v3040 = vxor.u32 %v3008, 2147483648
        %v3041 = vxor.u32 %v3009, 2147483648
        %v3042 = vxor.u32 %v3010, 2147483648
        %v3043 = vxor.u32 %v3011, 2147483648
        %v3044 = vxor.u32 %v3012, 2147483648
        %v3045 = vxor.u32 %v3013, 2147483648
        %v3046 = vxor.u32 %v3014, 2147483648
        %v3047 = vxor.u32 %v3015, 2147483648
        %v3048 = vxor.u32 %v3016, 2147483648
        %v3049 = vxor.u32 %v3017, 2147483648
        %v3050 = vxor.u32 %v3018, 2147483648
        %v3051 = vxor.u32 %v3019, 2147483648
        %v3052 = vxor.u32 %v3020, 2147483648
        %v3053 = vxor.u32 %v3021, 2147483648
        %v3054 = vxor.u32 %v3022, 2147483648
        %v3055 = vxor.u32 %v3023, 2147483648
        %v3056 = vxor.u32 %v3024, 2147483648
        %v3057 = vxor.u32 %v3025, 2147483648
        %v3058 = vxor.u32 %v3026, 2147483648
        %v3059 = vxor.u32 %v3027, 2147483648
        %v3060 = vxor.u32 %v3028, 2147483648
        %v3061 = vmul.f32 %v3029, 1.442695
        %v3062 = vpow.pop %v3061
        %v3063 = vmul.f32 %v3030, 1.442695
        %v3064 = vpow.pop %v3063
        %v3065 = vmul.f32 %v3031, 1.442695
        %v3066 = vpow.pop %v3065
        %v3067 = vmul.f32 %v3032, 1.442695
        %v3068 = vpow.pop %v3067
        %v3069 = vmul.f32 %v3033, 1.442695
        %v3070 = vpow.pop %v3069
        %v3071 = vmul.f32 %v3034, 1.442695
        %v3072 = vpow.pop %v3071
        %v3073 = vmul.f32 %v3035, 1.442695
        %v3074 = vpow.pop %v3073
        %v3075 = vmul.f32 %v3036, 1.442695
        %v3076 = vpow.pop %v3075
        %v3077 = vmul.f32 %v3037, 1.442695
        %v3078 = vpow.pop %v3077
        %v3079 = vmul.f32 %v3038, 1.442695
        %v3080 = vpow.pop %v3079
        %v3081 = vmul.f32 %v3039, 1.442695
        %v3082 = vpow.pop %v3081
        %v3083 = vmul.f32 %v3040, 1.442695
        %v3084 = vpow.pop %v3083
        %v3085 = vmul.f32 %v3041, 1.442695
        %v3086 = vpow.pop %v3085
        %v3087 = vmul.f32 %v3042, 1.442695
        %v3088 = vpow.pop %v3087
        %v3089 = vmul.f32 %v3043, 1.442695
        %v3090 = vpow.pop %v3089
        %v3091 = vmul.f32 %v3044, 1.442695
        %v3092 = vpow.pop %v3091
        %v3093 = vmul.f32 %v3045, 1.442695
        %v3094 = vpow.pop %v3093
        %v3095 = vmul.f32 %v3046, 1.442695
        %v3096 = vpow.pop %v3095
        %v3097 = vmul.f32 %v3047, 1.442695
        %v3098 = vpow.pop %v3097
        %v3099 = vmul.f32 %v3048, 1.442695
        %v3100 = vpow.pop %v3099
        %v3101 = vmul.f32 %v3049, 1.442695
        %v3102 = vpow.pop %v3101
        %v3103 = vmul.f32 %v3050, 1.442695
        %v3104 = vpow.pop %v3103
        %v3105 = vmul.f32 %v3051, 1.442695
        %v3106 = vpow.pop %v3105
        %v3107 = vmul.f32 %v3052, 1.442695
        %v3108 = vpow.pop %v3107
        %v3109 = vmul.f32 %v3053, 1.442695
        %v3110 = vpow.pop %v3109
        %v3111 = vmul.f32 %v3054, 1.442695
        %v3112 = vpow.pop %v3111
        %v3113 = vmul.f32 %v3055, 1.442695
        %v3114 = vpow.pop %v3113
        %v3115 = vmul.f32 %v3056, 1.442695
        %v3116 = vpow.pop %v3115
        %v3117 = vmul.f32 %v3057, 1.442695
        %v3118 = vpow.pop %v3117
        %v3119 = vmul.f32 %v3058, 1.442695
        %v3120 = vpow.pop %v3119
        %v3121 = vmul.f32 %v3059, 1.442695
        %v3122 = vpow.pop %v3121
        %v3123 = vmul.f32 %v3060, 1.442695
        %v3124 = vpow.pop %v3123
        %v3125 = vadd.f32 %v3062, 1.0
        %v3126 = vadd.f32 %v3064, 1.0
        %v3127 = vadd.f32 %v3066, 1.0
        %v3128 = vadd.f32 %v3068, 1.0
        %v3129 = vadd.f32 %v3070, 1.0
        %v3130 = vadd.f32 %v3072, 1.0
        %v3131 = vadd.f32 %v3074, 1.0
        %v3132 = vadd.f32 %v3076, 1.0
        %v3133 = vadd.f32 %v3078, 1.0
        %v3134 = vadd.f32 %v3080, 1.0
        %v3135 = vadd.f32 %v3082, 1.0
        %v3136 = vadd.f32 %v3084, 1.0
        %v3137 = vadd.f32 %v3086, 1.0
        %v3138 = vadd.f32 %v3088, 1.0
        %v3139 = vadd.f32 %v3090, 1.0
        %v3140 = vadd.f32 %v3092, 1.0
        %v3141 = vadd.f32 %v3094, 1.0
        %v3142 = vadd.f32 %v3096, 1.0
        %v3143 = vadd.f32 %v3098, 1.0
        %v3144 = vadd.f32 %v3100, 1.0
        %v3145 = vadd.f32 %v3102, 1.0
        %v3146 = vadd.f32 %v3104, 1.0
        %v3147 = vadd.f32 %v3106, 1.0
        %v3148 = vadd.f32 %v3108, 1.0
        %v3149 = vadd.f32 %v3110, 1.0
        %v3150 = vadd.f32 %v3112, 1.0
        %v3151 = vadd.f32 %v3114, 1.0
        %v3152 = vadd.f32 %v3116, 1.0
        %v3153 = vadd.f32 %v3118, 1.0
        %v3154 = vadd.f32 %v3120, 1.0
        %v3155 = vadd.f32 %v3122, 1.0
        %v3156 = vadd.f32 %v3124, 1.0
        %v3157 = vrcp.pop %v3125
        %v3158 = vmul.f32 1.0, %v3157
        %v3159 = vrcp.pop %v3126
        %v3160 = vmul.f32 1.0, %v3159
        %v3161 = vrcp.pop %v3127
        %v3162 = vmul.f32 1.0, %v3161
        %v3163 = vrcp.pop %v3128
        %v3164 = vmul.f32 1.0, %v3163
        %v3165 = vrcp.pop %v3129
        %v3166 = vmul.f32 1.0, %v3165
        %v3167 = vrcp.pop %v3130
        %v3168 = vmul.f32 1.0, %v3167
        %v3169 = vrcp.pop %v3131
        %v3170 = vmul.f32 1.0, %v3169
        %v3171 = vrcp.pop %v3132
        %v3172 = vmul.f32 1.0, %v3171
        %v3173 = vrcp.pop %v3133
        %v3174 = vmul.f32 1.0, %v3173
        %v3175 = vrcp.pop %v3134
        %v3176 = vmul.f32 1.0, %v3175
        %v3177 = vrcp.pop %v3135
        %v3178 = vmul.f32 1.0, %v3177
        %v3179 = vrcp.pop %v3136
        %v3180 = vmul.f32 1.0, %v3179
        %v3181 = vrcp.pop %v3137
        %v3182 = vmul.f32 1.0, %v3181
        %v3183 = vrcp.pop %v3138
        %v3184 = vmul.f32 1.0, %v3183
        %v3185 = vrcp.pop %v3139
        %v3186 = vmul.f32 1.0, %v3185
        %v3187 = vrcp.pop %v3140
        %v3188 = vmul.f32 1.0, %v3187
        %v3189 = vrcp.pop %v3141
        %v3190 = vmul.f32 1.0, %v3189
        %v3191 = vrcp.pop %v3142
        %v3192 = vmul.f32 1.0, %v3191
        %v3193 = vrcp.pop %v3143
        %v3194 = vmul.f32 1.0, %v3193
        %v3195 = vrcp.pop %v3144
        %v3196 = vmul.f32 1.0, %v3195
        %v3197 = vrcp.pop %v3145
        %v3198 = vmul.f32 1.0, %v3197
        %v3199 = vrcp.pop %v3146
        %v3200 = vmul.f32 1.0, %v3199
        %v3201 = vrcp.pop %v3147
        %v3202 = vmul.f32 1.0, %v3201
        %v3203 = vrcp.pop %v3148
        %v3204 = vmul.f32 1.0, %v3203
        %v3205 = vrcp.pop %v3149
        %v3206 = vmul.f32 1.0, %v3205
        %v3207 = vrcp.pop %v3150
        %v3208 = vmul.f32 1.0, %v3207
        %v3209 = vrcp.pop %v3151
        %v3210 = vmul.f32 1.0, %v3209
        %v3211 = vrcp.pop %v3152
        %v3212 = vmul.f32 1.0, %v3211
        %v3213 = vrcp.pop %v3153
        %v3214 = vmul.f32 1.0, %v3213
        %v3215 = vrcp.pop %v3154
        %v3216 = vmul.f32 1.0, %v3215
        %v3217 = vrcp.pop %v3155
        %v3218 = vmul.f32 1.0, %v3217
        %v3219 = vrcp.pop %v3156
        %v3220 = vmul.f32 1.0, %v3219
        %v3221 = vmul.f32 %v2934, %v2647
        %v3222 = vmul.f32 %v2936, %v2650
        %v3223 = vmul.f32 %v2938, %v2655
        %v3224 = vmul.f32 %v2940, %v2658
        %v3225 = vmul.f32 %v2942, %v2663
        %v3226 = vmul.f32 %v2944, %v2666
        %v3227 = vmul.f32 %v2946, %v2671
        %v3228 = vmul.f32 %v2948, %v2674
        %v3229 = vmul.f32 %v2950, %v2679
        %v3230 = vmul.f32 %v2952, %v2682
        %v3231 = vmul.f32 %v2954, %v2687
        %v3232 = vmul.f32 %v2956, %v2690
        %v3233 = vmul.f32 %v2958, %v2695
        %v3234 = vmul.f32 %v2960, %v2698
        %v3235 = vmul.f32 %v2962, %v2703
        %v3236 = vmul.f32 %v2964, %v2706
        %v3237 = vmul.f32 %v2966, %v2711
        %v3238 = vmul.f32 %v2968, %v2714
        %v3239 = vmul.f32 %v2970, %v2719
        %v3240 = vmul.f32 %v2972, %v2722
        %v3241 = vmul.f32 %v2974, %v2727
        %v3242 = vmul.f32 %v2976, %v2730
        %v3243 = vmul.f32 %v2978, %v2735
        %v3244 = vmul.f32 %v2980, %v2738
        %v3245 = vmul.f32 %v2982, %v2743
        %v3246 = vmul.f32 %v2984, %v2746
        %v3247 = vmul.f32 %v2986, %v2751
        %v3248 = vmul.f32 %v2988, %v2754
        %v3249 = vmul.f32 %v2990, %v2759
        %v3250 = vmul.f32 %v2992, %v2762
        %v3251 = vmul.f32 %v2994, %v2767
        %v3252 = vmul.f32 %v2996, %v2770
        %v3253 = vadd.f32 %v2020, %v3221
        %v3254 = vadd.f32 %v2023, %v3222
        %v3255 = vadd.f32 %v2028, %v3223
        %v3256 = vadd.f32 %v2031, %v3224
        %v3257 = vadd.f32 %v2036, %v3225
        %v3258 = vadd.f32 %v2039, %v3226
        %v3259 = vadd.f32 %v2044, %v3227
        %v3260 = vadd.f32 %v2047, %v3228
        %v3261 = vadd.f32 %v2052, %v3229
        %v3262 = vadd.f32 %v2055, %v3230
        %v3263 = vadd.f32 %v2060, %v3231
        %v3264 = vadd.f32 %v2063, %v3232
        %v3265 = vadd.f32 %v2068, %v3233
        %v3266 = vadd.f32 %v2071, %v3234
        %v3267 = vadd.f32 %v2076, %v3235
        %v3268 = vadd.f32 %v2079, %v3236
        %v3269 = vadd.f32 %v2084, %v3237
        %v3270 = vadd.f32 %v2087, %v3238
        %v3271 = vadd.f32 %v2092, %v3239
        %v3272 = vadd.f32 %v2095, %v3240
        %v3273 = vadd.f32 %v2100, %v3241
        %v3274 = vadd.f32 %v2103, %v3242
        %v3275 = vadd.f32 %v2108, %v3243
        %v3276 = vadd.f32 %v2111, %v3244
        %v3277 = vadd.f32 %v2116, %v3245
        %v3278 = vadd.f32 %v2119, %v3246
        %v3279 = vadd.f32 %v2124, %v3247
        %v3280 = vadd.f32 %v2127, %v3248
        %v3281 = vadd.f32 %v2132, %v3249
        %v3282 = vadd.f32 %v2135, %v3250
        %v3283 = vadd.f32 %v2140, %v3251
        %v3284 = vadd.f32 %v2143, %v3252
        %v3285 = vtanh.pop %v3253
        %v3286 = vtanh.pop %v3254
        %v3287 = vtanh.pop %v3255
        %v3288 = vtanh.pop %v3256
        %v3289 = vtanh.pop %v3257
        %v3290 = vtanh.pop %v3258
        %v3291 = vtanh.pop %v3259
        %v3292 = vtanh.pop %v3260
        %v3293 = vtanh.pop %v3261
        %v3294 = vtanh.pop %v3262
        %v3295 = vtanh.pop %v3263
        %v3296 = vtanh.pop %v3264
        %v3297 = vtanh.pop %v3265
        %v3298 = vtanh.pop %v3266
        %v3299 = vtanh.pop %v3267
        %v3300 = vtanh.pop %v3268
        %v3301 = vtanh.pop %v3269
        %v3302 = vtanh.pop %v3270
        %v3303 = vtanh.pop %v3271
        %v3304 = vtanh.pop %v3272
        %v3305 = vtanh.pop %v3273
        %v3306 = vtanh.pop %v3274
        %v3307 = vtanh.pop %v3275
        %v3308 = vtanh.pop %v3276
        %v3309 = vtanh.pop %v3277
        %v3310 = vtanh.pop %v3278
        %v3311 = vtanh.pop %v3279
        %v3312 = vtanh.pop %v3280
        %v3313 = vtanh.pop %v3281
        %v3314 = vtanh.pop %v3282
        %v3315 = vtanh.pop %v3283
        %v3316 = vtanh.pop %v3284
        %v3317 = vsub.f32 1.0, %v3158
        %v3318 = vsub.f32 1.0, %v3160
        %v3319 = vsub.f32 1.0, %v3162
        %v3320 = vsub.f32 1.0, %v3164
        %v3321 = vsub.f32 1.0, %v3166
        %v3322 = vsub.f32 1.0, %v3168
        %v3323 = vsub.f32 1.0, %v3170
        %v3324 = vsub.f32 1.0, %v3172
        %v3325 = vsub.f32 1.0, %v3174
        %v3326 = vsub.f32 1.0, %v3176
        %v3327 = vsub.f32 1.0, %v3178
        %v3328 = vsub.f32 1.0, %v3180
        %v3329 = vsub.f32 1.0, %v3182
        %v3330 = vsub.f32 1.0, %v3184
        %v3331 = vsub.f32 1.0, %v3186
        %v3332 = vsub.f32 1.0, %v3188
        %v3333 = vsub.f32 1.0, %v3190
        %v3334 = vsub.f32 1.0, %v3192
        %v3335 = vsub.f32 1.0, %v3194
        %v3336 = vsub.f32 1.0, %v3196
        %v3337 = vsub.f32 1.0, %v3198
        %v3338 = vsub.f32 1.0, %v3200
        %v3339 = vsub.f32 1.0, %v3202
        %v3340 = vsub.f32 1.0, %v3204
        %v3341 = vsub.f32 1.0, %v3206
        %v3342 = vsub.f32 1.0, %v3208
        %v3343 = vsub.f32 1.0, %v3210
        %v3344 = vsub.f32 1.0, %v3212
        %v3345 = vsub.f32 1.0, %v3214
        %v3346 = vsub.f32 1.0, %v3216
        %v3347 = vsub.f32 1.0, %v3218
        %v3348 = vsub.f32 1.0, %v3220
        %v3349 = vmul.f32 %v3317, %v3285
        %v3350 = vmul.f32 %v3318, %v3286
        %v3351 = vmul.f32 %v3319, %v3287
        %v3352 = vmul.f32 %v3320, %v3288
        %v3353 = vmul.f32 %v3321, %v3289
        %v3354 = vmul.f32 %v3322, %v3290
        %v3355 = vmul.f32 %v3323, %v3291
        %v3356 = vmul.f32 %v3324, %v3292
        %v3357 = vmul.f32 %v3325, %v3293
        %v3358 = vmul.f32 %v3326, %v3294
        %v3359 = vmul.f32 %v3327, %v3295
        %v3360 = vmul.f32 %v3328, %v3296
        %v3361 = vmul.f32 %v3329, %v3297
        %v3362 = vmul.f32 %v3330, %v3298
        %v3363 = vmul.f32 %v3331, %v3299
        %v3364 = vmul.f32 %v3332, %v3300
        %v3365 = vmul.f32 %v3333, %v3301
        %v3366 = vmul.f32 %v3334, %v3302
        %v3367 = vmul.f32 %v3335, %v3303
        %v3368 = vmul.f32 %v3336, %v3304
        %v3369 = vmul.f32 %v3337, %v3305
        %v3370 = vmul.f32 %v3338, %v3306
        %v3371 = vmul.f32 %v3339, %v3307
        %v3372 = vmul.f32 %v3340, %v3308
        %v3373 = vmul.f32 %v3341, %v3309
        %v3374 = vmul.f32 %v3342, %v3310
        %v3375 = vmul.f32 %v3343, %v3311
        %v3376 = vmul.f32 %v3344, %v3312
        %v3377 = vmul.f32 %v3345, %v3313
        %v3378 = vmul.f32 %v3346, %v3314
        %v3379 = vmul.f32 %v3347, %v3315
        %v3380 = vmul.f32 %v3348, %v3316
        %v3381 = vunpack.c.l.bf16 %v1567
        %v3382 = vunpack.c.l.bf16 %v1568
        %v3383 = vunpack.c.l.bf16 %v1569
        %v3384 = vunpack.c.l.bf16 %v1570
        %v3385 = vunpack.c.l.bf16 %v1571
        %v3386 = vunpack.c.l.bf16 %v1572
        %v3387 = vunpack.c.l.bf16 %v1573
        %v3388 = vunpack.c.l.bf16 %v1574
        %v3389 = vunpack.c.l.bf16 %v1575
        %v3390 = vunpack.c.l.bf16 %v1576
        %v3391 = vunpack.c.l.bf16 %v1577
        %v3392 = vunpack.c.l.bf16 %v1578
        %v3393 = vunpack.c.l.bf16 %v1579
        %v3394 = vunpack.c.l.bf16 %v1580
        %v3395 = vunpack.c.l.bf16 %v1581
        %v3396 = vunpack.c.l.bf16 %v1582
        %v3397 = vunpack.c.l.bf16 %v1583
        %v3398 = vunpack.c.l.bf16 %v1584
        %v3399 = vunpack.c.l.bf16 %v1585
        %v3400 = vunpack.c.l.bf16 %v1586
        %v3401 = vunpack.c.l.bf16 %v1587
        %v3402 = vunpack.c.l.bf16 %v1588
        %v3403 = vunpack.c.l.bf16 %v1589
        %v3404 = vunpack.c.l.bf16 %v1590
        %v3405 = vunpack.c.l.bf16 %v1591
        %v3406 = vunpack.c.l.bf16 %v1592
        %v3407 = vunpack.c.l.bf16 %v1593
        %v3408 = vunpack.c.l.bf16 %v1594
        %v3409 = vunpack.c.l.bf16 %v1595
        %v3410 = vunpack.c.l.bf16 %v1596
        %v3411 = vunpack.c.l.bf16 %v1597
        %v3412 = vunpack.c.l.bf16 %v1598
        %v3413 = vmul.f32 %v3158, %v3381
        %v3414 = vmul.f32 %v3160, %v3382
        %v3415 = vmul.f32 %v3162, %v3383
        %v3416 = vmul.f32 %v3164, %v3384
        %v3417 = vmul.f32 %v3166, %v3385
        %v3418 = vmul.f32 %v3168, %v3386
        %v3419 = vmul.f32 %v3170, %v3387
        %v3420 = vmul.f32 %v3172, %v3388
        %v3421 = vmul.f32 %v3174, %v3389
        %v3422 = vmul.f32 %v3176, %v3390
        %v3423 = vmul.f32 %v3178, %v3391
        %v3424 = vmul.f32 %v3180, %v3392
        %v3425 = vmul.f32 %v3182, %v3393
        %v3426 = vmul.f32 %v3184, %v3394
        %v3427 = vmul.f32 %v3186, %v3395
        %v3428 = vmul.f32 %v3188, %v3396
        %v3429 = vmul.f32 %v3190, %v3397
        %v3430 = vmul.f32 %v3192, %v3398
        %v3431 = vmul.f32 %v3194, %v3399
        %v3432 = vmul.f32 %v3196, %v3400
        %v3433 = vmul.f32 %v3198, %v3401
        %v3434 = vmul.f32 %v3200, %v3402
        %v3435 = vmul.f32 %v3202, %v3403
        %v3436 = vmul.f32 %v3204, %v3404
        %v3437 = vmul.f32 %v3206, %v3405
        %v3438 = vmul.f32 %v3208, %v3406
        %v3439 = vmul.f32 %v3210, %v3407
        %v3440 = vmul.f32 %v3212, %v3408
        %v3441 = vmul.f32 %v3214, %v3409
        %v3442 = vmul.f32 %v3216, %v3410
        %v3443 = vmul.f32 %v3218, %v3411
        %v3444 = vmul.f32 %v3220, %v3412
        %v3445 = vadd.f32 %v3349, %v3413
        %v3446 = vadd.f32 %v3350, %v3414
        %v3447 = vadd.f32 %v3351, %v3415
        %v3448 = vadd.f32 %v3352, %v3416
        %v3449 = vadd.f32 %v3353, %v3417
        %v3450 = vadd.f32 %v3354, %v3418
        %v3451 = vadd.f32 %v3355, %v3419
        %v3452 = vadd.f32 %v3356, %v3420
        %v3453 = vadd.f32 %v3357, %v3421
        %v3454 = vadd.f32 %v3358, %v3422
        %v3455 = vadd.f32 %v3359, %v3423
        %v3456 = vadd.f32 %v3360, %v3424
        %v3457 = vadd.f32 %v3361, %v3425
        %v3458 = vadd.f32 %v3362, %v3426
        %v3459 = vadd.f32 %v3363, %v3427
        %v3460 = vadd.f32 %v3364, %v3428
        %v3461 = vadd.f32 %v3365, %v3429
        %v3462 = vadd.f32 %v3366, %v3430
        %v3463 = vadd.f32 %v3367, %v3431
        %v3464 = vadd.f32 %v3368, %v3432
        %v3465 = vadd.f32 %v3369, %v3433
        %v3466 = vadd.f32 %v3370, %v3434
        %v3467 = vadd.f32 %v3371, %v3435
        %v3468 = vadd.f32 %v3372, %v3436
        %v3469 = vadd.f32 %v3373, %v3437
        %v3470 = vadd.f32 %v3374, %v3438
        %v3471 = vadd.f32 %v3375, %v3439
        %v3472 = vadd.f32 %v3376, %v3440
        %v3473 = vadd.f32 %v3377, %v3441
        %v3474 = vadd.f32 %v3378, %v3442
        %v3475 = vadd.f32 %v3379, %v3443
        %v3476 = vadd.f32 %v3380, %v3444
        %v3477 = vpack.c.bf16 %v3446, %v3445
        %v3478 = vpack.c.bf16 %v3448, %v3447
        %v3479 = vpack.c.bf16 %v3450, %v3449
        %v3480 = vpack.c.bf16 %v3452, %v3451
        %v3481 = vpack.c.bf16 %v3454, %v3453
        %v3482 = vpack.c.bf16 %v3456, %v3455
        %v3483 = vpack.c.bf16 %v3458, %v3457
        %v3484 = vpack.c.bf16 %v3460, %v3459
        %v3485 = vpack.c.bf16 %v3462, %v3461
        %v3486 = vpack.c.bf16 %v3464, %v3463
        %v3487 = vpack.c.bf16 %v3466, %v3465
        %v3488 = vpack.c.bf16 %v3468, %v3467
        %v3489 = vpack.c.bf16 %v3470, %v3469
        %v3490 = vpack.c.bf16 %v3472, %v3471
        %v3491 = vpack.c.bf16 %v3474, %v3473
        %v3492 = vpack.c.bf16 %v3476, %v3475
        %v3509 = vunpack.c.l.b16 %v3477
        %v3510 = vunpack.c.h.b16 %v3477
        %v3511 = vunpack.c.l.b16 %v3478
        %v3512 = vunpack.c.h.b16 %v3478
        %v3513 = vunpack.c.l.b16 %v3479
        %v3514 = vunpack.c.h.b16 %v3479
        %v3515 = vunpack.c.l.b16 %v3480
        %v3516 = vunpack.c.h.b16 %v3480
        %v3517 = vunpack.c.l.b16 %v3481
        %v3518 = vunpack.c.h.b16 %v3481
        %v3519 = vunpack.c.l.b16 %v3482
        %v3520 = vunpack.c.h.b16 %v3482
        %v3521 = vunpack.c.l.b16 %v3483
        %v3522 = vunpack.c.h.b16 %v3483
        %v3523 = vunpack.c.l.b16 %v3484
        %v3524 = vunpack.c.h.b16 %v3484
        %v3525 = vunpack.c.l.b16 %v3485
        %v3526 = vunpack.c.h.b16 %v3485
        %v3527 = vunpack.c.l.b16 %v3486
        %v3528 = vunpack.c.h.b16 %v3486
        %v3529 = vunpack.c.l.b16 %v3487
        %v3530 = vunpack.c.h.b16 %v3487
        %v3531 = vunpack.c.l.b16 %v3488
        %v3532 = vunpack.c.h.b16 %v3488
        %v3533 = vunpack.c.l.b16 %v3489
        %v3534 = vunpack.c.h.b16 %v3489
        %v3535 = vunpack.c.l.b16 %v3490
        %v3536 = vunpack.c.h.b16 %v3490
        %v3537 = vunpack.c.l.b16 %v3491
        %v3538 = vunpack.c.h.b16 %v3491
        %v3539 = vunpack.c.l.b16 %v3492
        %v3540 = vunpack.c.h.b16 %v3492
        %v3541 = vpack.c.b16 %v3509, %v3509
        %v3542 = vpack.c.b16 %v3510, %v3510
        %v3543 = vpack.c.b16 %v3511, %v3511
        %v3544 = vpack.c.b16 %v3512, %v3512
        %v3545 = vpack.c.b16 %v3513, %v3513
        %v3546 = vpack.c.b16 %v3514, %v3514
        %v3547 = vpack.c.b16 %v3515, %v3515
        %v3548 = vpack.c.b16 %v3516, %v3516
        %v3549 = vpack.c.b16 %v3517, %v3517
        %v3550 = vpack.c.b16 %v3518, %v3518
        %v3551 = vpack.c.b16 %v3519, %v3519
        %v3552 = vpack.c.b16 %v3520, %v3520
        %v3553 = vpack.c.b16 %v3521, %v3521
        %v3554 = vpack.c.b16 %v3522, %v3522
        %v3555 = vpack.c.b16 %v3523, %v3523
        %v3556 = vpack.c.b16 %v3524, %v3524
        %v3557 = vpack.c.b16 %v3525, %v3525
        %v3558 = vpack.c.b16 %v3526, %v3526
        %v3559 = vpack.c.b16 %v3527, %v3527
        %v3560 = vpack.c.b16 %v3528, %v3528
        %v3561 = vpack.c.b16 %v3529, %v3529
        %v3562 = vpack.c.b16 %v3530, %v3530
        %v3563 = vpack.c.b16 %v3531, %v3531
        %v3564 = vpack.c.b16 %v3532, %v3532
        %v3565 = vpack.c.b16 %v3533, %v3533
        %v3566 = vpack.c.b16 %v3534, %v3534
        %v3567 = vpack.c.b16 %v3535, %v3535
        %v3568 = vpack.c.b16 %v3536, %v3536
        %v3569 = vpack.c.b16 %v3537, %v3537
        %v3570 = vpack.c.b16 %v3538, %v3538
        %v3571 = vpack.c.b16 %v3539, %v3539
        %v3572 = vpack.c.b16 %v3540, %v3540
        %3605 = vst [vmem:[%s355] sm:$0xf] %v3541
        %3606 = vst [vmem:[%s355 + $0x4] sm:$0xf] %v3542
        %3607 = vst [vmem:[%s355 + $0x8] sm:$0xf] %v3543
        %3608 = vst [vmem:[%s355 + $0xc] sm:$0xf] %v3544
        %3609 = vst [vmem:[%s355 + $0x10] sm:$0xf] %v3545
        %3610 = vst [vmem:[%s355 + $0x14] sm:$0xf] %v3546
        %3611 = vst [vmem:[%s355 + $0x18] sm:$0xf] %v3547
        %3612 = vst [vmem:[%s355 + $0x1c] sm:$0xf] %v3548
        %3613 = vst [vmem:[%s355 + $0x20] sm:$0xf] %v3549
        %3614 = vst [vmem:[%s355 + $0x24] sm:$0xf] %v3550
        %3615 = vst [vmem:[%s355 + $0x28] sm:$0xf] %v3551
        %3616 = vst [vmem:[%s355 + $0x2c] sm:$0xf] %v3552
        %3617 = vst [vmem:[%s355 + $0x30] sm:$0xf] %v3553
        %3618 = vst [vmem:[%s355 + $0x34] sm:$0xf] %v3554
        %3619 = vst [vmem:[%s355 + $0x38] sm:$0xf] %v3555
        %3620 = vst [vmem:[%s355 + $0x3c] sm:$0xf] %v3556
        %3621 = vst [vmem:[%s355 + $0x40] sm:$0xf] %v3557
        %3622 = vst [vmem:[%s355 + $0x44] sm:$0xf] %v3558
        %3623 = vst [vmem:[%s355 + $0x48] sm:$0xf] %v3559
        %3624 = vst [vmem:[%s355 + $0x4c] sm:$0xf] %v3560
        %3625 = vst [vmem:[%s355 + $0x50] sm:$0xf] %v3561
        %3626 = vst [vmem:[%s355 + $0x54] sm:$0xf] %v3562
        %3627 = vst [vmem:[%s355 + $0x58] sm:$0xf] %v3563
        %3628 = vst [vmem:[%s355 + $0x5c] sm:$0xf] %v3564
        %3629 = vst [vmem:[%s355 + $0x60] sm:$0xf] %v3565
        %3630 = vst [vmem:[%s355 + $0x64] sm:$0xf] %v3566
        %3631 = vst [vmem:[%s355 + $0x68] sm:$0xf] %v3567
        %3632 = vst [vmem:[%s355 + $0x6c] sm:$0xf] %v3568
        %3633 = vst [vmem:[%s355 + $0x70] sm:$0xf] %v3569
        %3634 = vst [vmem:[%s355 + $0x74] sm:$0xf] %v3570
        %3635 = vst [vmem:[%s355 + $0x78] sm:$0xf] %v3571
        %3636 = vst [vmem:[%s355 + $0x7c] sm:$0xf] %v3572
        %s3637 = sand.u32 %s186, 1
        %s3638 = scalar_lea.sflag [#allocation4], %s3637
        %s3639 = sand.u32 %s186, 1
        %s3640 = smul.addr %s3639, 128
        %s3641 = scalar_lea.vmem [#allocation11], %s3640
        // Predicated region
        $region69: #{tpu_custom_call.1} parent=47 // pred_check
          %p3642 = pneg %p196
        $region70: #{tpu_custom_call.1} parent=47 // pred_check_branch
          %3644 = sbr.rel (%p3642) target = $region72
        $region71: #{tpu_custom_call.1} parent=47 // pred_region
          %s3645 = smul.u32 32, %s26
          %s3647 = ssub.s32 2048, 2048
          %3648 = vsyncadd %s3638, %s3647
          %s3649 = smul.addr %s3645, 64
          %s3650 = scalar_lea.hbm %s7, %s3649
          %s3651 = sshll.u32 %s3641, 4
          %s3652 = int_to_ptr.vmem [resolvable:$true] %s3651
          %3657 = dma.vmem_to_hbm [thread:$0]  %s3652, 2048, %s3650, %s3638, 64, 64, 4
        $region72: #{tpu_custom_call.1} parent=47 // pred_fallthru
          _
      $region48: #{tpu_custom_call.1} parent=5 // pred_fallthru
        _
      %p3658 = scmp.le.s32.totalorder 2, %s21
      // Predicated region
      $region73: #{tpu_custom_call.1} parent=5 // pred_check
        %p3659 = pneg %p3658
      $region74: #{tpu_custom_call.1} parent=5 // pred_check_branch
        %3661 = sbr.rel (%p3659) target = $region76
      $region75: #{tpu_custom_call.1} parent=5 // pred_region
        %s3662 = ssub.s32 %s21, 2
        // Predicated region
        $region77: #{tpu_custom_call.1} parent=75 // pred_check
          %p3663 = pneg %p202
        $region78: #{tpu_custom_call.1} parent=75 // pred_check_branch
          %3665 = sbr.rel (%p3663) target = $region80
        $region79: #{tpu_custom_call.1} parent=75 // pred_region
          %s3666 = sand.u32 %s187, 1
          %s3667 = scalar_lea.sflag [#allocation4], %s3666
          %s3668 = sand.u32 %s187, 1
          %s3669 = smul.addr %s3668, 128
          %s3670 = scalar_lea.vmem [#allocation11], %s3669
          %3671 = dma.done %s3667, 2048
        $region80: #{tpu_custom_call.1} parent=75 // pred_fallthru
          _
      $region76: #{tpu_custom_call.1} parent=5 // pred_fallthru
        _
    $region6: #{tpu_custom_call.1} parent=1 // loop_footer
      %s25 = sadd.s32 1, %s21
    $region7: #{tpu_custom_call.1} parent=1 // loop_footer_branch
      %20 = sbr.rel target = $region3
    $region8: #{tpu_custom_call.1} parent=1 // loop_exit
      _
    %3672 = vsyncpa [#allocation3], 1
    %s3673 = scalar_lea.sflag [#allocation3], 1
    %3674 = vsyncpa %s3673, 1
    %3675 = vsyncpa [#allocation6], 1
    %3676 = vsyncpa [#allocation9], 1
    %3677 = vsyncpa [#allocation4], 1
    %s3678 = scalar_lea.sflag [#allocation4], 1
    %3679 = vsyncpa %s3678, 1

</llo_original>
